<compile_context>
chip_gen: v7x
topology: tpu7x:2x2x1
jax: 0.10.0
libtpu: 0.0.40
codegen_flags: <defaults>
</compile_context>

<pallas_src>
import jax
import jax.numpy as jnp
from jax.experimental import pallas as pl
from jax.experimental.pallas import tpu as pltpu

# ---- hyper-parameters (the "config") -------------------------------------
D_MODEL = 32          # config.tf_d_model
N_HEAD = 4            # config.tf_num_head
D_HEAD = D_MODEL // N_HEAD
D_FFN = 64            # config.tf_d_ffn
N_LAYERS = 2          # layer_num
INPUT_DIM = 8         # input_dim
OUTPUT_DIM = 16       # output_dim
EPS = 1e-5            # nn.LayerNorm default eps
NEG_INF = -1e30

PARAM_ORDER = [
    "inproj_w", "inproj_b",
    "sa_q_w", "sa_k_w", "sa_v_w", "sa_q_b", "sa_k_b", "sa_v_b",
    "sa_out_w", "sa_out_b",
    "ca_q_w", "ca_k_w", "ca_v_w", "ca_q_b", "ca_k_b", "ca_v_b",
    "ca_out_w", "ca_out_b",
    "lin1_w", "lin1_b", "lin2_w", "lin2_b",
    "n1_w", "n1_b", "n2_w", "n2_b", "n3_w", "n3_b",
    "out1_w", "out1_b", "out2_w", "out2_b",
]

PARAM_SHAPES = {
    "inproj_w": (D_MODEL, INPUT_DIM), "inproj_b": (1, D_MODEL),
    "sa_q_w": (N_LAYERS, N_HEAD, D_HEAD, D_MODEL),
    "sa_k_w": (N_LAYERS, N_HEAD, D_HEAD, D_MODEL),
    "sa_v_w": (N_LAYERS, N_HEAD, D_HEAD, D_MODEL),
    "sa_q_b": (N_LAYERS, N_HEAD, D_HEAD),
    "sa_k_b": (N_LAYERS, N_HEAD, D_HEAD),
    "sa_v_b": (N_LAYERS, N_HEAD, D_HEAD),
    "sa_out_w": (N_LAYERS, N_HEAD, D_MODEL, D_HEAD),
    "sa_out_b": (N_LAYERS, D_MODEL),
    "ca_q_w": (N_LAYERS, N_HEAD, D_HEAD, D_MODEL),
    "ca_k_w": (N_LAYERS, N_HEAD, D_HEAD, D_MODEL),
    "ca_v_w": (N_LAYERS, N_HEAD, D_HEAD, D_MODEL),
    "ca_q_b": (N_LAYERS, N_HEAD, D_HEAD),
    "ca_k_b": (N_LAYERS, N_HEAD, D_HEAD),
    "ca_v_b": (N_LAYERS, N_HEAD, D_HEAD),
    "ca_out_w": (N_LAYERS, N_HEAD, D_MODEL, D_HEAD),
    "ca_out_b": (N_LAYERS, D_MODEL),
    "lin1_w": (N_LAYERS, D_FFN, D_MODEL), "lin1_b": (N_LAYERS, D_FFN),
    "lin2_w": (N_LAYERS, D_MODEL, D_FFN), "lin2_b": (N_LAYERS, D_MODEL),
    "n1_w": (N_LAYERS, D_MODEL), "n1_b": (N_LAYERS, D_MODEL),
    "n2_w": (N_LAYERS, D_MODEL), "n2_b": (N_LAYERS, D_MODEL),
    "n3_w": (N_LAYERS, D_MODEL), "n3_b": (N_LAYERS, D_MODEL),
    "out1_w": (D_FFN, D_MODEL), "out1_b": (1, D_FFN),
    "out2_w": (OUTPUT_DIM, D_FFN), "out2_b": (1, OUTPUT_DIM),
}


# ---- host-side parameter fusing / packing ----------------------------------
def _block_diag_bias(B, s_q, s_k):
    """Additive attention bias: 0 within the same batch element, -1e30 elsewhere."""
    rb = jnp.repeat(jnp.arange(B), s_q)[:, None]
    cb = jnp.repeat(jnp.arange(B), s_k)[None, :]
    return jnp.where(rb == cb, 0.0, NEG_INF).astype(jnp.float32)


def _pack_params(params, B, Sq, Sk):
    """Fuse QKV / per-head weights, transpose to (in, out), pack into one (R,128) blob."""
    entries = {}          # name -> (row_start, n_rows, n_cols)   (static python ints)
    chunks = []
    row = 0

    def add(name, arr):
        nonlocal row
        arr = jnp.asarray(arr, jnp.float32)
        if arr.ndim == 1:
            arr = arr[None, :]
        r, c = arr.shape
        assert c <= 128, (name, arr.shape)
        r_pad = ((r + 7) // 8) * 8
        padded = jnp.zeros((r_pad, 128), jnp.float32).at[:r, :c].set(arr)
        entries[name] = (row, r, c)
        chunks.append(padded)
        row += r_pad

    add("inproj_w", params["inproj_w"].T)                       # (in, out) = (8, 32)
    add("inproj_b", params["inproj_b"].reshape(1, -1))

    for l in range(N_LAYERS):
        # --- self-attention: fused QKV weight (D, 3D), fused bias (1, 3D)
        wq = params["sa_q_w"][l].reshape(D_MODEL, D_MODEL).T
        wk = params["sa_k_w"][l].reshape(D_MODEL, D_MODEL).T
        wv = params["sa_v_w"][l].reshape(D_MODEL, D_MODEL).T
        add(f"sa_qkv_w_{l}", jnp.concatenate([wq, wk, wv], axis=1))
        add(f"sa_qkv_b_{l}", jnp.concatenate([params["sa_q_b"][l].reshape(-1),
                                              params["sa_k_b"][l].reshape(-1),
                                              params["sa_v_b"][l].reshape(-1)]))
        # out projection: (head-concat in, D out)
        add(f"sa_out_w_{l}",
            jnp.transpose(params["sa_out_w"][l], (0, 2, 1)).reshape(D_MODEL, D_MODEL))
        add(f"sa_out_b_{l}", params["sa_out_b"][l])

        # --- cross-attention: q weight (D, D), fused KV weight (D, 2D)
        add(f"ca_q_w_{l}", params["ca_q_w"][l].reshape(D_MODEL, D_MODEL).T)
        add(f"ca_q_b_{l}", params["ca_q_b"][l].reshape(-1))
        wck = params["ca_k_w"][l].reshape(D_MODEL, D_MODEL).T
        wcv = params["ca_v_w"][l].reshape(D_MODEL, D_MODEL).T
        add(f"ca_kv_w_{l}", jnp.concatenate([wck, wcv], axis=1))
        add(f"ca_kv_b_{l}", jnp.concatenate([params["ca_k_b"][l].reshape(-1),
                                             params["ca_v_b"][l].reshape(-1)]))
        add(f"ca_out_w_{l}",
            jnp.transpose(params["ca_out_w"][l], (0, 2, 1)).reshape(D_MODEL, D_MODEL))
        add(f"ca_out_b_{l}", params["ca_out_b"][l])

        # --- feed-forward + layer norms
        add(f"lin1_w_{l}", params["lin1_w"][l].T)
        add(f"lin1_b_{l}", params["lin1_b"][l])
        add(f"lin2_w_{l}", params["lin2_w"][l].T)
        add(f"lin2_b_{l}", params["lin2_b"][l])
        add(f"n1_w_{l}", params["n1_w"][l]); add(f"n1_b_{l}", params["n1_b"][l])
        add(f"n2_w_{l}", params["n2_w"][l]); add(f"n2_b_{l}", params["n2_b"][l])
        add(f"n3_w_{l}", params["n3_w"][l]); add(f"n3_b_{l}", params["n3_b"][l])

    add("out1_w", params["out1_w"].T)
    add("out1_b", params["out1_b"].reshape(1, -1))
    add("out2_w", params["out2_w"].T)
    add("out2_b", params["out2_b"].reshape(1, -1))

    # block-diagonal attention biases (folded-batch attention masks)
    add("sa_bias", _block_diag_bias(B, Sq, Sq))
    add("ca_bias", _block_diag_bias(B, Sq, Sk))

    blob = jnp.concatenate(chunks, axis=0)      # (rows, 128), rows multiple of 8
    return blob, entries


# ---- the Pallas kernel (single invocation, whole batch folded) --------------
def _make_kernel(entries):
    def get(ref, name):
        r0, nrows, ncols = entries[name]
        return ref[r0:r0 + nrows, 0:ncols]      # static row/lane window of the blob

    def layer_norm(x, w, b):
        mu = jnp.mean(x, axis=-1, keepdims=True)
        var = jnp.mean(jnp.square(x - mu), axis=-1, keepdims=True)
        return (x - mu) * jax.lax.rsqrt(var + EPS) * w + b

    def attn_core(q, k, v, wo, bo, bias):
        # q: (Rq, D), k/v: (Rk, D), bias: (Rq, Rk) block-diagonal additive mask
        scale = 1.0 / float(D_HEAD) ** 0.5
        heads = []
        for h in range(N_HEAD):                 # static loop; 2 small dots per head
            lo, hi = h * D_HEAD, (h + 1) * D_HEAD
            qh, kh, vh = q[:, lo:hi], k[:, lo:hi], v[:, lo:hi]
            s = jax.lax.dot_general(qh, kh, (((1,), (1,)), ((), ())),
                                    preferred_element_type=jnp.float32)
            s = s * scale + bias
            s = s - jnp.max(s, axis=-1, keepdims=True)
            e = jnp.exp(s)
            inv = pl.reciprocal(jnp.sum(e, axis=-1, keepdims=True), approx=True)
            a = e * inv
            heads.append(jnp.dot(a, vh, preferred_element_type=jnp.float32))
        ctx = jnp.concatenate(heads, axis=-1)   # (Rq, D)
        return jnp.dot(ctx, wo, preferred_element_type=jnp.float32) + bo

    def kernel(q_ref, kv_ref, p_ref, out_ref):
        # hoisted loads
        sa_bias = get(p_ref, "sa_bias")
        ca_bias = get(p_ref, "ca_bias")
        mem = kv_ref[...]                                                  # (B*Sk, D)

        # input projection
        x = (jnp.dot(q_ref[...], get(p_ref, "inproj_w"),
                     preferred_element_type=jnp.float32)
             + get(p_ref, "inproj_b"))                                     # (B*Sq, D)

        for l in range(N_LAYERS):
            # ---- self-attention (fused QKV) + post-norm
            qkv = (jnp.dot(x, get(p_ref, f"sa_qkv_w_{l}"),
                           preferred_element_type=jnp.float32)
                   + get(p_ref, f"sa_qkv_b_{l}"))                          # (B*Sq, 3D)
            sa = attn_core(qkv[:, :D_MODEL],
                           qkv[:, D_MODEL:2 * D_MODEL],
                           qkv[:, 2 * D_MODEL:],
                           get(p_ref, f"sa_out_w_{l}"),
                           get(p_ref, f"sa_out_b_{l}"), sa_bias)
            x = layer_norm(x + sa, get(p_ref, f"n1_w_{l}"), get(p_ref, f"n1_b_{l}"))

            # ---- cross-attention (fused KV) + post-norm
            qc = (jnp.dot(x, get(p_ref, f"ca_q_w_{l}"),
                          preferred_element_type=jnp.float32)
                  + get(p_ref, f"ca_q_b_{l}"))                             # (B*Sq, D)
            kvc = (jnp.dot(mem, get(p_ref, f"ca_kv_w_{l}"),
                           preferred_element_type=jnp.float32)
                   + get(p_ref, f"ca_kv_b_{l}"))                           # (B*Sk, 2D)
            ca = attn_core(qc, kvc[:, :D_MODEL], kvc[:, D_MODEL:],
                           get(p_ref, f"ca_out_w_{l}"),
                           get(p_ref, f"ca_out_b_{l}"), ca_bias)
            x = layer_norm(x + ca, get(p_ref, f"n2_w_{l}"), get(p_ref, f"n2_b_{l}"))

            # ---- feed-forward (ReLU, dropout == identity in eval) + post-norm
            h1 = jnp.maximum(jnp.dot(x, get(p_ref, f"lin1_w_{l}"),
                                     preferred_element_type=jnp.float32)
                             + get(p_ref, f"lin1_b_{l}"), 0.0)
            ff = (jnp.dot(h1, get(p_ref, f"lin2_w_{l}"),
                          preferred_element_type=jnp.float32)
                  + get(p_ref, f"lin2_b_{l}"))
            x = layer_norm(x + ff, get(p_ref, f"n3_w_{l}"), get(p_ref, f"n3_b_{l}"))

        # out_proj: Linear -> ReLU -> Linear
        h1 = jnp.maximum(jnp.dot(x, get(p_ref, "out1_w"),
                                 preferred_element_type=jnp.float32)
                         + get(p_ref, "out1_b"), 0.0)
        out_ref[...] = (jnp.dot(h1, get(p_ref, "out2_w"),
                                preferred_element_type=jnp.float32)
                        + get(p_ref, "out2_b"))

    return kernel


# ---- wrapper ----------------------------------------------------------------
def my_transformer_decoder(query, keyval, params):
    B, Sq, _ = query.shape
    Sk = keyval.shape[1]

    blob, entries = _pack_params(params, B, Sq, Sk)
    kernel = _make_kernel(entries)

    q_flat = query.reshape(B * Sq, INPUT_DIM).astype(jnp.float32)
    kv_flat = keyval.reshape(B * Sk, D_MODEL).astype(jnp.float32)

    out_flat = pl.pallas_call(
        kernel,
        out_shape=jax.ShapeDtypeStruct((B * Sq, OUTPUT_DIM), jnp.float32),
        grid=(1,),
        in_specs=[
            pl.BlockSpec((B * Sq, INPUT_DIM), lambda i: (0, 0)),
            pl.BlockSpec((B * Sk, D_MODEL), lambda i: (0, 0)),
            pl.BlockSpec(blob.shape, lambda i: (0, 0)),
        ],
        out_specs=pl.BlockSpec((B * Sq, OUTPUT_DIM), lambda i: (0, 0)),
        compiler_params=pltpu.CompilerParams(
            dimension_semantics=("arbitrary",)),
    )(q_flat, kv_flat, blob)

    return out_flat.reshape(B, Sq, OUTPUT_DIM)


# ---- pure-JAX reference (original per-head weight layout) -------------------
def reference_forward(query, keyval, params):
    def linear(x, w, b):
        return x @ w.T + b

    def ln(x, w, b):
        mu = x.mean(-1, keepdims=True)
        var = ((x - mu) ** 2).mean(-1, keepdims=True)
        return (x - mu) / jnp.sqrt(var + EPS) * w + b

    def mha(x_q, x_kv, pre, l):
        out = jnp.zeros((x_q.shape[0], D_MODEL), jnp.float32)
        for h in range(N_HEAD):
            qh = x_q @ params[pre + "_q_w"][l, h].T + params[pre + "_q_b"][l, h]
            kh = x_kv @ params[pre + "_k_w"][l, h].T + params[pre + "_k_b"][l, h]
            vh = x_kv @ params[pre + "_v_w"][l, h].T + params[pre + "_v_b"][l, h]
            a = jax.nn.softmax(qh @ kh.T / jnp.sqrt(float(D_HEAD)), axis=-1)
            out = out + (a @ vh) @ params[pre + "_out_w"][l, h].T
        return out + params[pre + "_out_b"][l]

    def single(q1, kv1):
        x = linear(q1, params["inproj_w"], params["inproj_b"][0])
        for l in range(N_LAYERS):
            x = ln(x + mha(x, x, "sa", l), params["n1_w"][l], params["n1_b"][l])
            x = ln(x + mha(x, kv1, "ca", l), params["n2_w"][l], params["n2_b"][l])
            h = jax.nn.relu(linear(x, params["lin1_w"][l], params["lin1_b"][l]))
            x = ln(x + linear(h, params["lin2_w"][l], params["lin2_b"][l]),
                   params["n3_w"][l], params["n3_b"][l])
        h = jax.nn.relu(linear(x, params["out1_w"], params["out1_b"][0]))
        return linear(h, params["out2_w"], params["out2_b"][0])

    return jax.vmap(single)(query, keyval)


# ---- deterministic synthetic parameter init ---------------------------------
def init_params(key):
    keys = jax.random.split(key, len(PARAM_ORDER))
    params = {}
    for k, name in zip(keys, PARAM_ORDER):
        shape = PARAM_SHAPES[name]
        if name in ("n1_w", "n2_w", "n3_w"):
            params[name] = (jnp.ones(shape, jnp.float32)
                            + 0.05 * jax.random.normal(k, shape, jnp.float32))
        elif name.endswith("_b"):
            params[name] = 0.02 * jax.random.normal(k, shape, jnp.float32)
        else:
            params[name] = 0.15 * jax.random.normal(k, shape, jnp.float32)
    return params


if __name__ == "__main__":
    B, SQ, SK = 2, 8, 8
    key = jax.random.PRNGKey(0)
    kq, kk, kp = jax.random.split(key, 3)
    query = jax.random.normal(kq, (B, SQ, INPUT_DIM), jnp.float32)
    keyval = jax.random.normal(kk, (B, SK, D_MODEL), jnp.float32)
    params = init_params(kp)

    out = my_transformer_decoder(query, keyval, params)
    out = jax.block_until_ready(out)

    ref = reference_forward(query, keyval, params)
    assert out.shape == (B, SQ, OUTPUT_DIM), out.shape
    max_err = float(jnp.max(jnp.abs(out - ref)))
    if not bool(jnp.allclose(out, ref, atol=3e-2, rtol=3e-2)):
        raise AssertionError(f"kernel/reference mismatch, max abs err = {max_err}")
    print("KERNEL_OK")
</pallas_src>

<mosaic_0001>
module attributes {stable_mosaic.version = 11 : i64} {
  func.func @kernel(%arg0: i32, %arg1: memref<16x8xf32, #tpu.memory_space<vmem>>, %arg2: memref<16x32xf32, #tpu.memory_space<vmem>>, %arg3: memref<880x128xf32, #tpu.memory_space<vmem>>, %arg4: memref<16x16xf32, #tpu.memory_space<vmem>>) attributes {dimension_semantics = [#tpu.dimension_semantics<arbitrary>], iteration_bounds = array<i64: 1>, scalar_prefetch = 0 : i64, scratch_operands = 0 : i64, tpu.core_type = #tpu.core_type<tc>, window_params = [{pipeline_mode = #tpu.pipeline_mode<synchronous>, transform_indices = @transform_0, window_bounds = array<i64: 16, 8>}, {pipeline_mode = #tpu.pipeline_mode<synchronous>, transform_indices = @transform_1, window_bounds = array<i64: 16, 32>}, {pipeline_mode = #tpu.pipeline_mode<synchronous>, transform_indices = @transform_2, window_bounds = array<i64: 880, 128>}, {pipeline_mode = #tpu.pipeline_mode<synchronous>, transform_indices = @transform_3, window_bounds = array<i64: 16, 16>}]} {
    %c848 = arith.constant 848 : index
    %c0 = arith.constant 0 : index
    %0 = vector.load %arg3[%c848, %c0] : memref<880x128xf32, #tpu.memory_space<vmem>>, vector<16x16xf32>
    %c864 = arith.constant 864 : index
    %c0_0 = arith.constant 0 : index
    %1 = vector.load %arg3[%c864, %c0_0] : memref<880x128xf32, #tpu.memory_space<vmem>>, vector<16x16xf32>
    %c0_1 = arith.constant 0 : index
    %c0_2 = arith.constant 0 : index
    %2 = vector.load %arg2[%c0_1, %c0_2] : memref<16x32xf32, #tpu.memory_space<vmem>>, vector<16x32xf32>
    %c0_3 = arith.constant 0 : index
    %c0_4 = arith.constant 0 : index
    %3 = vector.load %arg1[%c0_3, %c0_4] : memref<16x8xf32, #tpu.memory_space<vmem>>, vector<16x8xf32>
    %c0_5 = arith.constant 0 : index
    %c0_6 = arith.constant 0 : index
    %4 = vector.load %arg3[%c0_5, %c0_6] : memref<880x128xf32, #tpu.memory_space<vmem>>, vector<8x32xf32>
    %cst = arith.constant dense<0.000000e+00> : vector<16x32xf32>
    %5 = tpu.matmul %3, %4, %cst {dimension_numbers = #tpu.dot_dimension_numbers<[1], [0], [0], [1], [0, 0, 1, 1], [], []>} : vector<16x8xf32>, vector<8x32xf32>, vector<16x32xf32> -> vector<16x32xf32>
    %c8 = arith.constant 8 : index
    %c0_7 = arith.constant 0 : index
    %6 = vector.load %arg3[%c8, %c0_7] : memref<880x128xf32, #tpu.memory_space<vmem>>, vector<1x32xf32>
    %7 = vector.broadcast %6 : vector<1x32xf32> to vector<16x32xf32>
    %8 = arith.addf %5, %7 : vector<16x32xf32>
    %c16 = arith.constant 16 : index
    %c0_8 = arith.constant 0 : index
    %9 = vector.load %arg3[%c16, %c0_8] : memref<880x128xf32, #tpu.memory_space<vmem>>, vector<32x96xf32>
    %cst_9 = arith.constant dense<0.000000e+00> : vector<16x96xf32>
    %10 = tpu.matmul %8, %9, %cst_9 {dimension_numbers = #tpu.dot_dimension_numbers<[1], [0], [0], [1], [0, 0, 1, 1], [], []>} : vector<16x32xf32>, vector<32x96xf32>, vector<16x96xf32> -> vector<16x96xf32>
    %c48 = arith.constant 48 : index
    %c0_10 = arith.constant 0 : index
    %11 = vector.load %arg3[%c48, %c0_10] : memref<880x128xf32, #tpu.memory_space<vmem>>, vector<1x96xf32>
    %12 = vector.broadcast %11 : vector<1x96xf32> to vector<16x96xf32>
    %13 = arith.addf %10, %12 : vector<16x96xf32>
    %14 = vector.extract_strided_slice %13 {offsets = [0, 0], sizes = [16, 32], strides = [1, 1]} : vector<16x96xf32> to vector<16x32xf32>
    %15 = vector.extract_strided_slice %13 {offsets = [0, 32], sizes = [16, 32], strides = [1, 1]} : vector<16x96xf32> to vector<16x32xf32>
    %16 = vector.extract_strided_slice %13 {offsets = [0, 64], sizes = [16, 32], strides = [1, 1]} : vector<16x96xf32> to vector<16x32xf32>
    %c56 = arith.constant 56 : index
    %c0_11 = arith.constant 0 : index
    %17 = vector.load %arg3[%c56, %c0_11] : memref<880x128xf32, #tpu.memory_space<vmem>>, vector<32x32xf32>
    %c88 = arith.constant 88 : index
    %c0_12 = arith.constant 0 : index
    %18 = vector.load %arg3[%c88, %c0_12] : memref<880x128xf32, #tpu.memory_space<vmem>>, vector<1x32xf32>
    %19 = vector.extract_strided_slice %14 {offsets = [0, 0], sizes = [16, 8], strides = [1, 1]} : vector<16x32xf32> to vector<16x8xf32>
    %20 = vector.extract_strided_slice %15 {offsets = [0, 0], sizes = [16, 8], strides = [1, 1]} : vector<16x32xf32> to vector<16x8xf32>
    %21 = vector.extract_strided_slice %16 {offsets = [0, 0], sizes = [16, 8], strides = [1, 1]} : vector<16x32xf32> to vector<16x8xf32>
    %cst_13 = arith.constant dense<0.000000e+00> : vector<16x16xf32>
    %22 = tpu.matmul %19, %20, %cst_13 {dimension_numbers = #tpu.dot_dimension_numbers<[1], [1], [0], [0], [0, 0, 1, 0], [], []>} : vector<16x8xf32>, vector<16x8xf32>, vector<16x16xf32> -> vector<16x16xf32>
    %cst_14 = arith.constant 0.353553385 : f32
    %23 = vector.broadcast %cst_14 : f32 to vector<16x16xf32>
    %24 = arith.mulf %22, %23 : vector<16x16xf32>
    %25 = arith.addf %24, %0 : vector<16x16xf32>
    %cst_15 = arith.constant dense<0xFF800000> : vector<16xf32>
    %26 = vector.multi_reduction <maximumf>, %25, %cst_15 [1] : vector<16x16xf32> to vector<16xf32>
    %27 = vector.shape_cast %26 : vector<16xf32> to vector<16x1xf32>
    %28 = vector.broadcast %27 : vector<16x1xf32> to vector<16x16xf32>
    %29 = arith.subf %25, %28 : vector<16x16xf32>
    %30 = math.exp %29 : vector<16x16xf32>
    %cst_16 = arith.constant dense<0.000000e+00> : vector<16xf32>
    %31 = vector.multi_reduction <add>, %30, %cst_16 [1] : vector<16x16xf32> to vector<16xf32>
    %32 = vector.shape_cast %31 : vector<16xf32> to vector<16x1xf32>
    %33 = tpu.reciprocal %32 {approx = true} : vector<16x1xf32> -> vector<16x1xf32>
    %34 = vector.broadcast %33 : vector<16x1xf32> to vector<16x16xf32>
    %35 = arith.mulf %30, %34 : vector<16x16xf32>
    %cst_17 = arith.constant dense<0.000000e+00> : vector<16x8xf32>
    %36 = tpu.matmul %35, %21, %cst_17 {dimension_numbers = #tpu.dot_dimension_numbers<[1], [0], [0], [1], [0, 0, 1, 1], [], []>} : vector<16x16xf32>, vector<16x8xf32>, vector<16x8xf32> -> vector<16x8xf32>
    %37 = vector.extract_strided_slice %14 {offsets = [0, 8], sizes = [16, 8], strides = [1, 1]} : vector<16x32xf32> to vector<16x8xf32>
    %38 = vector.extract_strided_slice %15 {offsets = [0, 8], sizes = [16, 8], strides = [1, 1]} : vector<16x32xf32> to vector<16x8xf32>
    %39 = vector.extract_strided_slice %16 {offsets = [0, 8], sizes = [16, 8], strides = [1, 1]} : vector<16x32xf32> to vector<16x8xf32>
    %cst_18 = arith.constant dense<0.000000e+00> : vector<16x16xf32>
    %40 = tpu.matmul %37, %38, %cst_18 {dimension_numbers = #tpu.dot_dimension_numbers<[1], [1], [0], [0], [0, 0, 1, 0], [], []>} : vector<16x8xf32>, vector<16x8xf32>, vector<16x16xf32> -> vector<16x16xf32>
    %cst_19 = arith.constant 0.353553385 : f32
    %41 = vector.broadcast %cst_19 : f32 to vector<16x16xf32>
    %42 = arith.mulf %40, %41 : vector<16x16xf32>
    %43 = arith.addf %42, %0 : vector<16x16xf32>
    %cst_20 = arith.constant dense<0xFF800000> : vector<16xf32>
    %44 = vector.multi_reduction <maximumf>, %43, %cst_20 [1] : vector<16x16xf32> to vector<16xf32>
    %45 = vector.shape_cast %44 : vector<16xf32> to vector<16x1xf32>
    %46 = vector.broadcast %45 : vector<16x1xf32> to vector<16x16xf32>
    %47 = arith.subf %43, %46 : vector<16x16xf32>
    %48 = math.exp %47 : vector<16x16xf32>
    %cst_21 = arith.constant dense<0.000000e+00> : vector<16xf32>
    %49 = vector.multi_reduction <add>, %48, %cst_21 [1] : vector<16x16xf32> to vector<16xf32>
    %50 = vector.shape_cast %49 : vector<16xf32> to vector<16x1xf32>
    %51 = tpu.reciprocal %50 {approx = true} : vector<16x1xf32> -> vector<16x1xf32>
    %52 = vector.broadcast %51 : vector<16x1xf32> to vector<16x16xf32>
    %53 = arith.mulf %48, %52 : vector<16x16xf32>
    %cst_22 = arith.constant dense<0.000000e+00> : vector<16x8xf32>
    %54 = tpu.matmul %53, %39, %cst_22 {dimension_numbers = #tpu.dot_dimension_numbers<[1], [0], [0], [1], [0, 0, 1, 1], [], []>} : vector<16x16xf32>, vector<16x8xf32>, vector<16x8xf32> -> vector<16x8xf32>
    %55 = vector.extract_strided_slice %14 {offsets = [0, 16], sizes = [16, 8], strides = [1, 1]} : vector<16x32xf32> to vector<16x8xf32>
    %56 = vector.extract_strided_slice %15 {offsets = [0, 16], sizes = [16, 8], strides = [1, 1]} : vector<16x32xf32> to vector<16x8xf32>
    %57 = vector.extract_strided_slice %16 {offsets = [0, 16], sizes = [16, 8], strides = [1, 1]} : vector<16x32xf32> to vector<16x8xf32>
    %cst_23 = arith.constant dense<0.000000e+00> : vector<16x16xf32>
    %58 = tpu.matmul %55, %56, %cst_23 {dimension_numbers = #tpu.dot_dimension_numbers<[1], [1], [0], [0], [0, 0, 1, 0], [], []>} : vector<16x8xf32>, vector<16x8xf32>, vector<16x16xf32> -> vector<16x16xf32>
    %cst_24 = arith.constant 0.353553385 : f32
    %59 = vector.broadcast %cst_24 : f32 to vector<16x16xf32>
    %60 = arith.mulf %58, %59 : vector<16x16xf32>
    %61 = arith.addf %60, %0 : vector<16x16xf32>
    %cst_25 = arith.constant dense<0xFF800000> : vector<16xf32>
    %62 = vector.multi_reduction <maximumf>, %61, %cst_25 [1] : vector<16x16xf32> to vector<16xf32>
    %63 = vector.shape_cast %62 : vector<16xf32> to vector<16x1xf32>
    %64 = vector.broadcast %63 : vector<16x1xf32> to vector<16x16xf32>
    %65 = arith.subf %61, %64 : vector<16x16xf32>
    %66 = math.exp %65 : vector<16x16xf32>
    %cst_26 = arith.constant dense<0.000000e+00> : vector<16xf32>
    %67 = vector.multi_reduction <add>, %66, %cst_26 [1] : vector<16x16xf32> to vector<16xf32>
    %68 = vector.shape_cast %67 : vector<16xf32> to vector<16x1xf32>
    %69 = tpu.reciprocal %68 {approx = true} : vector<16x1xf32> -> vector<16x1xf32>
    %70 = vector.broadcast %69 : vector<16x1xf32> to vector<16x16xf32>
    %71 = arith.mulf %66, %70 : vector<16x16xf32>
    %cst_27 = arith.constant dense<0.000000e+00> : vector<16x8xf32>
    %72 = tpu.matmul %71, %57, %cst_27 {dimension_numbers = #tpu.dot_dimension_numbers<[1], [0], [0], [1], [0, 0, 1, 1], [], []>} : vector<16x16xf32>, vector<16x8xf32>, vector<16x8xf32> -> vector<16x8xf32>
    %73 = vector.extract_strided_slice %14 {offsets = [0, 24], sizes = [16, 8], strides = [1, 1]} : vector<16x32xf32> to vector<16x8xf32>
    %74 = vector.extract_strided_slice %15 {offsets = [0, 24], sizes = [16, 8], strides = [1, 1]} : vector<16x32xf32> to vector<16x8xf32>
    %75 = vector.extract_strided_slice %16 {offsets = [0, 24], sizes = [16, 8], strides = [1, 1]} : vector<16x32xf32> to vector<16x8xf32>
    %cst_28 = arith.constant dense<0.000000e+00> : vector<16x16xf32>
    %76 = tpu.matmul %73, %74, %cst_28 {dimension_numbers = #tpu.dot_dimension_numbers<[1], [1], [0], [0], [0, 0, 1, 0], [], []>} : vector<16x8xf32>, vector<16x8xf32>, vector<16x16xf32> -> vector<16x16xf32>
    %cst_29 = arith.constant 0.353553385 : f32
    %77 = vector.broadcast %cst_29 : f32 to vector<16x16xf32>
    %78 = arith.mulf %76, %77 : vector<16x16xf32>
    %79 = arith.addf %78, %0 : vector<16x16xf32>
    %cst_30 = arith.constant dense<0xFF800000> : vector<16xf32>
    %80 = vector.multi_reduction <maximumf>, %79, %cst_30 [1] : vector<16x16xf32> to vector<16xf32>
    %81 = vector.shape_cast %80 : vector<16xf32> to vector<16x1xf32>
    %82 = vector.broadcast %81 : vector<16x1xf32> to vector<16x16xf32>
    %83 = arith.subf %79, %82 : vector<16x16xf32>
    %84 = math.exp %83 : vector<16x16xf32>
    %cst_31 = arith.constant dense<0.000000e+00> : vector<16xf32>
    %85 = vector.multi_reduction <add>, %84, %cst_31 [1] : vector<16x16xf32> to vector<16xf32>
    %86 = vector.shape_cast %85 : vector<16xf32> to vector<16x1xf32>
    %87 = tpu.reciprocal %86 {approx = true} : vector<16x1xf32> -> vector<16x1xf32>
    %88 = vector.broadcast %87 : vector<16x1xf32> to vector<16x16xf32>
    %89 = arith.mulf %84, %88 : vector<16x16xf32>
    %cst_32 = arith.constant dense<0.000000e+00> : vector<16x8xf32>
    %90 = tpu.matmul %89, %75, %cst_32 {dimension_numbers = #tpu.dot_dimension_numbers<[1], [0], [0], [1], [0, 0, 1, 1], [], []>} : vector<16x16xf32>, vector<16x8xf32>, vector<16x8xf32> -> vector<16x8xf32>
    %91 = tpu.concatenate %36, %54, %72, %90 in 1 : vector<16x8xf32>, vector<16x8xf32>, vector<16x8xf32>, vector<16x8xf32> -> vector<16x32xf32>
    %cst_33 = arith.constant dense<0.000000e+00> : vector<16x32xf32>
    %92 = tpu.matmul %91, %17, %cst_33 {dimension_numbers = #tpu.dot_dimension_numbers<[1], [0], [0], [1], [0, 0, 1, 1], [], []>} : vector<16x32xf32>, vector<32x32xf32>, vector<16x32xf32> -> vector<16x32xf32>
    %93 = vector.broadcast %18 : vector<1x32xf32> to vector<16x32xf32>
    %94 = arith.addf %92, %93 : vector<16x32xf32>
    %95 = arith.addf %8, %94 : vector<16x32xf32>
    %c328 = arith.constant 328 : index
    %c0_34 = arith.constant 0 : index
    %96 = vector.load %arg3[%c328, %c0_34] : memref<880x128xf32, #tpu.memory_space<vmem>>, vector<1x32xf32>
    %c336 = arith.constant 336 : index
    %c0_35 = arith.constant 0 : index
    %97 = vector.load %arg3[%c336, %c0_35] : memref<880x128xf32, #tpu.memory_space<vmem>>, vector<1x32xf32>
    %cst_36 = arith.constant dense<0.000000e+00> : vector<16xf32>
    %98 = vector.multi_reduction <add>, %95, %cst_36 [1] : vector<16x32xf32> to vector<16xf32>
    %99 = vector.shape_cast %98 : vector<16xf32> to vector<16x1xf32>
    %cst_37 = arith.constant 3.200000e+01 : f32
    %100 = vector.broadcast %cst_37 : f32 to vector<16x1xf32>
    %101 = arith.divf %99, %100 : vector<16x1xf32>
    %102 = vector.broadcast %101 : vector<16x1xf32> to vector<16x32xf32>
    %103 = arith.subf %95, %102 : vector<16x32xf32>
    %104 = arith.mulf %103, %103 : vector<16x32xf32>
    %cst_38 = arith.constant dense<0.000000e+00> : vector<16xf32>
    %105 = vector.multi_reduction <add>, %104, %cst_38 [1] : vector<16x32xf32> to vector<16xf32>
    %106 = vector.shape_cast %105 : vector<16xf32> to vector<16x1xf32>
    %cst_39 = arith.constant 3.200000e+01 : f32
    %107 = vector.broadcast %cst_39 : f32 to vector<16x1xf32>
    %108 = arith.divf %106, %107 : vector<16x1xf32>
    %109 = vector.broadcast %101 : vector<16x1xf32> to vector<16x32xf32>
    %110 = arith.subf %95, %109 : vector<16x32xf32>
    %cst_40 = arith.constant 9.99999974E-6 : f32
    %111 = vector.broadcast %cst_40 : f32 to vector<16x1xf32>
    %112 = arith.addf %108, %111 : vector<16x1xf32>
    %113 = math.rsqrt %112 : vector<16x1xf32>
    %114 = vector.broadcast %113 : vector<16x1xf32> to vector<16x32xf32>
    %115 = arith.mulf %110, %114 : vector<16x32xf32>
    %116 = vector.broadcast %96 : vector<1x32xf32> to vector<16x32xf32>
    %117 = arith.mulf %115, %116 : vector<16x32xf32>
    %118 = vector.broadcast %97 : vector<1x32xf32> to vector<16x32xf32>
    %119 = arith.addf %117, %118 : vector<16x32xf32>
    %c96 = arith.constant 96 : index
    %c0_41 = arith.constant 0 : index
    %120 = vector.load %arg3[%c96, %c0_41] : memref<880x128xf32, #tpu.memory_space<vmem>>, vector<32x32xf32>
    %cst_42 = arith.constant dense<0.000000e+00> : vector<16x32xf32>
    %121 = tpu.matmul %119, %120, %cst_42 {dimension_numbers = #tpu.dot_dimension_numbers<[1], [0], [0], [1], [0, 0, 1, 1], [], []>} : vector<16x32xf32>, vector<32x32xf32>, vector<16x32xf32> -> vector<16x32xf32>
    %c128 = arith.constant 128 : index
    %c0_43 = arith.constant 0 : index
    %122 = vector.load %arg3[%c128, %c0_43] : memref<880x128xf32, #tpu.memory_space<vmem>>, vector<1x32xf32>
    %123 = vector.broadcast %122 : vector<1x32xf32> to vector<16x32xf32>
    %124 = arith.addf %121, %123 : vector<16x32xf32>
    %c136 = arith.constant 136 : index
    %c0_44 = arith.constant 0 : index
    %125 = vector.load %arg3[%c136, %c0_44] : memref<880x128xf32, #tpu.memory_space<vmem>>, vector<32x64xf32>
    %cst_45 = arith.constant dense<0.000000e+00> : vector<16x64xf32>
    %126 = tpu.matmul %2, %125, %cst_45 {dimension_numbers = #tpu.dot_dimension_numbers<[1], [0], [0], [1], [0, 0, 1, 1], [], []>} : vector<16x32xf32>, vector<32x64xf32>, vector<16x64xf32> -> vector<16x64xf32>
    %c168 = arith.constant 168 : index
    %c0_46 = arith.constant 0 : index
    %127 = vector.load %arg3[%c168, %c0_46] : memref<880x128xf32, #tpu.memory_space<vmem>>, vector<1x64xf32>
    %128 = vector.broadcast %127 : vector<1x64xf32> to vector<16x64xf32>
    %129 = arith.addf %126, %128 : vector<16x64xf32>
    %130 = vector.extract_strided_slice %129 {offsets = [0, 0], sizes = [16, 32], strides = [1, 1]} : vector<16x64xf32> to vector<16x32xf32>
    %131 = vector.extract_strided_slice %129 {offsets = [0, 32], sizes = [16, 32], strides = [1, 1]} : vector<16x64xf32> to vector<16x32xf32>
    %c176 = arith.constant 176 : index
    %c0_47 = arith.constant 0 : index
    %132 = vector.load %arg3[%c176, %c0_47] : memref<880x128xf32, #tpu.memory_space<vmem>>, vector<32x32xf32>
    %c208 = arith.constant 208 : index
    %c0_48 = arith.constant 0 : index
    %133 = vector.load %arg3[%c208, %c0_48] : memref<880x128xf32, #tpu.memory_space<vmem>>, vector<1x32xf32>
    %134 = vector.extract_strided_slice %124 {offsets = [0, 0], sizes = [16, 8], strides = [1, 1]} : vector<16x32xf32> to vector<16x8xf32>
    %135 = vector.extract_strided_slice %130 {offsets = [0, 0], sizes = [16, 8], strides = [1, 1]} : vector<16x32xf32> to vector<16x8xf32>
    %136 = vector.extract_strided_slice %131 {offsets = [0, 0], sizes = [16, 8], strides = [1, 1]} : vector<16x32xf32> to vector<16x8xf32>
    %cst_49 = arith.constant dense<0.000000e+00> : vector<16x16xf32>
    %137 = tpu.matmul %134, %135, %cst_49 {dimension_numbers = #tpu.dot_dimension_numbers<[1], [1], [0], [0], [0, 0, 1, 0], [], []>} : vector<16x8xf32>, vector<16x8xf32>, vector<16x16xf32> -> vector<16x16xf32>
    %cst_50 = arith.constant 0.353553385 : f32
    %138 = vector.broadcast %cst_50 : f32 to vector<16x16xf32>
    %139 = arith.mulf %137, %138 : vector<16x16xf32>
    %140 = arith.addf %139, %1 : vector<16x16xf32>
    %cst_51 = arith.constant dense<0xFF800000> : vector<16xf32>
    %141 = vector.multi_reduction <maximumf>, %140, %cst_51 [1] : vector<16x16xf32> to vector<16xf32>
    %142 = vector.shape_cast %141 : vector<16xf32> to vector<16x1xf32>
    %143 = vector.broadcast %142 : vector<16x1xf32> to vector<16x16xf32>
    %144 = arith.subf %140, %143 : vector<16x16xf32>
    %145 = math.exp %144 : vector<16x16xf32>
    %cst_52 = arith.constant dense<0.000000e+00> : vector<16xf32>
    %146 = vector.multi_reduction <add>, %145, %cst_52 [1] : vector<16x16xf32> to vector<16xf32>
    %147 = vector.shape_cast %146 : vector<16xf32> to vector<16x1xf32>
    %148 = tpu.reciprocal %147 {approx = true} : vector<16x1xf32> -> vector<16x1xf32>
    %149 = vector.broadcast %148 : vector<16x1xf32> to vector<16x16xf32>
    %150 = arith.mulf %145, %149 : vector<16x16xf32>
    %cst_53 = arith.constant dense<0.000000e+00> : vector<16x8xf32>
    %151 = tpu.matmul %150, %136, %cst_53 {dimension_numbers = #tpu.dot_dimension_numbers<[1], [0], [0], [1], [0, 0, 1, 1], [], []>} : vector<16x16xf32>, vector<16x8xf32>, vector<16x8xf32> -> vector<16x8xf32>
    %152 = vector.extract_strided_slice %124 {offsets = [0, 8], sizes = [16, 8], strides = [1, 1]} : vector<16x32xf32> to vector<16x8xf32>
    %153 = vector.extract_strided_slice %130 {offsets = [0, 8], sizes = [16, 8], strides = [1, 1]} : vector<16x32xf32> to vector<16x8xf32>
    %154 = vector.extract_strided_slice %131 {offsets = [0, 8], sizes = [16, 8], strides = [1, 1]} : vector<16x32xf32> to vector<16x8xf32>
    %cst_54 = arith.constant dense<0.000000e+00> : vector<16x16xf32>
    %155 = tpu.matmul %152, %153, %cst_54 {dimension_numbers = #tpu.dot_dimension_numbers<[1], [1], [0], [0], [0, 0, 1, 0], [], []>} : vector<16x8xf32>, vector<16x8xf32>, vector<16x16xf32> -> vector<16x16xf32>
    %cst_55 = arith.constant 0.353553385 : f32
    %156 = vector.broadcast %cst_55 : f32 to vector<16x16xf32>
    %157 = arith.mulf %155, %156 : vector<16x16xf32>
    %158 = arith.addf %157, %1 : vector<16x16xf32>
    %cst_56 = arith.constant dense<0xFF800000> : vector<16xf32>
    %159 = vector.multi_reduction <maximumf>, %158, %cst_56 [1] : vector<16x16xf32> to vector<16xf32>
    %160 = vector.shape_cast %159 : vector<16xf32> to vector<16x1xf32>
    %161 = vector.broadcast %160 : vector<16x1xf32> to vector<16x16xf32>
    %162 = arith.subf %158, %161 : vector<16x16xf32>
    %163 = math.exp %162 : vector<16x16xf32>
    %cst_57 = arith.constant dense<0.000000e+00> : vector<16xf32>
    %164 = vector.multi_reduction <add>, %163, %cst_57 [1] : vector<16x16xf32> to vector<16xf32>
    %165 = vector.shape_cast %164 : vector<16xf32> to vector<16x1xf32>
    %166 = tpu.reciprocal %165 {approx = true} : vector<16x1xf32> -> vector<16x1xf32>
    %167 = vector.broadcast %166 : vector<16x1xf32> to vector<16x16xf32>
    %168 = arith.mulf %163, %167 : vector<16x16xf32>
    %cst_58 = arith.constant dense<0.000000e+00> : vector<16x8xf32>
    %169 = tpu.matmul %168, %154, %cst_58 {dimension_numbers = #tpu.dot_dimension_numbers<[1], [0], [0], [1], [0, 0, 1, 1], [], []>} : vector<16x16xf32>, vector<16x8xf32>, vector<16x8xf32> -> vector<16x8xf32>
    %170 = vector.extract_strided_slice %124 {offsets = [0, 16], sizes = [16, 8], strides = [1, 1]} : vector<16x32xf32> to vector<16x8xf32>
    %171 = vector.extract_strided_slice %130 {offsets = [0, 16], sizes = [16, 8], strides = [1, 1]} : vector<16x32xf32> to vector<16x8xf32>
    %172 = vector.extract_strided_slice %131 {offsets = [0, 16], sizes = [16, 8], strides = [1, 1]} : vector<16x32xf32> to vector<16x8xf32>
    %cst_59 = arith.constant dense<0.000000e+00> : vector<16x16xf32>
    %173 = tpu.matmul %170, %171, %cst_59 {dimension_numbers = #tpu.dot_dimension_numbers<[1], [1], [0], [0], [0, 0, 1, 0], [], []>} : vector<16x8xf32>, vector<16x8xf32>, vector<16x16xf32> -> vector<16x16xf32>
    %cst_60 = arith.constant 0.353553385 : f32
    %174 = vector.broadcast %cst_60 : f32 to vector<16x16xf32>
    %175 = arith.mulf %173, %174 : vector<16x16xf32>
    %176 = arith.addf %175, %1 : vector<16x16xf32>
    %cst_61 = arith.constant dense<0xFF800000> : vector<16xf32>
    %177 = vector.multi_reduction <maximumf>, %176, %cst_61 [1] : vector<16x16xf32> to vector<16xf32>
    %178 = vector.shape_cast %177 : vector<16xf32> to vector<16x1xf32>
    %179 = vector.broadcast %178 : vector<16x1xf32> to vector<16x16xf32>
    %180 = arith.subf %176, %179 : vector<16x16xf32>
    %181 = math.exp %180 : vector<16x16xf32>
    %cst_62 = arith.constant dense<0.000000e+00> : vector<16xf32>
    %182 = vector.multi_reduction <add>, %181, %cst_62 [1] : vector<16x16xf32> to vector<16xf32>
    %183 = vector.shape_cast %182 : vector<16xf32> to vector<16x1xf32>
    %184 = tpu.reciprocal %183 {approx = true} : vector<16x1xf32> -> vector<16x1xf32>
    %185 = vector.broadcast %184 : vector<16x1xf32> to vector<16x16xf32>
    %186 = arith.mulf %181, %185 : vector<16x16xf32>
    %cst_63 = arith.constant dense<0.000000e+00> : vector<16x8xf32>
    %187 = tpu.matmul %186, %172, %cst_63 {dimension_numbers = #tpu.dot_dimension_numbers<[1], [0], [0], [1], [0, 0, 1, 1], [], []>} : vector<16x16xf32>, vector<16x8xf32>, vector<16x8xf32> -> vector<16x8xf32>
    %188 = vector.extract_strided_slice %124 {offsets = [0, 24], sizes = [16, 8], strides = [1, 1]} : vector<16x32xf32> to vector<16x8xf32>
    %189 = vector.extract_strided_slice %130 {offsets = [0, 24], sizes = [16, 8], strides = [1, 1]} : vector<16x32xf32> to vector<16x8xf32>
    %190 = vector.extract_strided_slice %131 {offsets = [0, 24], sizes = [16, 8], strides = [1, 1]} : vector<16x32xf32> to vector<16x8xf32>
    %cst_64 = arith.constant dense<0.000000e+00> : vector<16x16xf32>
    %191 = tpu.matmul %188, %189, %cst_64 {dimension_numbers = #tpu.dot_dimension_numbers<[1], [1], [0], [0], [0, 0, 1, 0], [], []>} : vector<16x8xf32>, vector<16x8xf32>, vector<16x16xf32> -> vector<16x16xf32>
    %cst_65 = arith.constant 0.353553385 : f32
    %192 = vector.broadcast %cst_65 : f32 to vector<16x16xf32>
    %193 = arith.mulf %191, %192 : vector<16x16xf32>
    %194 = arith.addf %193, %1 : vector<16x16xf32>
    %cst_66 = arith.constant dense<0xFF800000> : vector<16xf32>
    %195 = vector.multi_reduction <maximumf>, %194, %cst_66 [1] : vector<16x16xf32> to vector<16xf32>
    %196 = vector.shape_cast %195 : vector<16xf32> to vector<16x1xf32>
    %197 = vector.broadcast %196 : vector<16x1xf32> to vector<16x16xf32>
    %198 = arith.subf %194, %197 : vector<16x16xf32>
    %199 = math.exp %198 : vector<16x16xf32>
    %cst_67 = arith.constant dense<0.000000e+00> : vector<16xf32>
    %200 = vector.multi_reduction <add>, %199, %cst_67 [1] : vector<16x16xf32> to vector<16xf32>
    %201 = vector.shape_cast %200 : vector<16xf32> to vector<16x1xf32>
    %202 = tpu.reciprocal %201 {approx = true} : vector<16x1xf32> -> vector<16x1xf32>
    %203 = vector.broadcast %202 : vector<16x1xf32> to vector<16x16xf32>
    %204 = arith.mulf %199, %203 : vector<16x16xf32>
    %cst_68 = arith.constant dense<0.000000e+00> : vector<16x8xf32>
    %205 = tpu.matmul %204, %190, %cst_68 {dimension_numbers = #tpu.dot_dimension_numbers<[1], [0], [0], [1], [0, 0, 1, 1], [], []>} : vector<16x16xf32>, vector<16x8xf32>, vector<16x8xf32> -> vector<16x8xf32>
    %206 = tpu.concatenate %151, %169, %187, %205 in 1 : vector<16x8xf32>, vector<16x8xf32>, vector<16x8xf32>, vector<16x8xf32> -> vector<16x32xf32>
    %cst_69 = arith.constant dense<0.000000e+00> : vector<16x32xf32>
    %207 = tpu.matmul %206, %132, %cst_69 {dimension_numbers = #tpu.dot_dimension_numbers<[1], [0], [0], [1], [0, 0, 1, 1], [], []>} : vector<16x32xf32>, vector<32x32xf32>, vector<16x32xf32> -> vector<16x32xf32>
    %208 = vector.broadcast %133 : vector<1x32xf32> to vector<16x32xf32>
    %209 = arith.addf %207, %208 : vector<16x32xf32>
    %210 = arith.addf %119, %209 : vector<16x32xf32>
    %c344 = arith.constant 344 : index
    %c0_70 = arith.constant 0 : index
    %211 = vector.load %arg3[%c344, %c0_70] : memref<880x128xf32, #tpu.memory_space<vmem>>, vector<1x32xf32>
    %c352 = arith.constant 352 : index
    %c0_71 = arith.constant 0 : index
    %212 = vector.load %arg3[%c352, %c0_71] : memref<880x128xf32, #tpu.memory_space<vmem>>, vector<1x32xf32>
    %cst_72 = arith.constant dense<0.000000e+00> : vector<16xf32>
    %213 = vector.multi_reduction <add>, %210, %cst_72 [1] : vector<16x32xf32> to vector<16xf32>
    %214 = vector.shape_cast %213 : vector<16xf32> to vector<16x1xf32>
    %cst_73 = arith.constant 3.200000e+01 : f32
    %215 = vector.broadcast %cst_73 : f32 to vector<16x1xf32>
    %216 = arith.divf %214, %215 : vector<16x1xf32>
    %217 = vector.broadcast %216 : vector<16x1xf32> to vector<16x32xf32>
    %218 = arith.subf %210, %217 : vector<16x32xf32>
    %219 = arith.mulf %218, %218 : vector<16x32xf32>
    %cst_74 = arith.constant dense<0.000000e+00> : vector<16xf32>
    %220 = vector.multi_reduction <add>, %219, %cst_74 [1] : vector<16x32xf32> to vector<16xf32>
    %221 = vector.shape_cast %220 : vector<16xf32> to vector<16x1xf32>
    %cst_75 = arith.constant 3.200000e+01 : f32
    %222 = vector.broadcast %cst_75 : f32 to vector<16x1xf32>
    %223 = arith.divf %221, %222 : vector<16x1xf32>
    %224 = vector.broadcast %216 : vector<16x1xf32> to vector<16x32xf32>
    %225 = arith.subf %210, %224 : vector<16x32xf32>
    %cst_76 = arith.constant 9.99999974E-6 : f32
    %226 = vector.broadcast %cst_76 : f32 to vector<16x1xf32>
    %227 = arith.addf %223, %226 : vector<16x1xf32>
    %228 = math.rsqrt %227 : vector<16x1xf32>
    %229 = vector.broadcast %228 : vector<16x1xf32> to vector<16x32xf32>
    %230 = arith.mulf %225, %229 : vector<16x32xf32>
    %231 = vector.broadcast %211 : vector<1x32xf32> to vector<16x32xf32>
    %232 = arith.mulf %230, %231 : vector<16x32xf32>
    %233 = vector.broadcast %212 : vector<1x32xf32> to vector<16x32xf32>
    %234 = arith.addf %232, %233 : vector<16x32xf32>
    %c216 = arith.constant 216 : index
    %c0_77 = arith.constant 0 : index
    %235 = vector.load %arg3[%c216, %c0_77] : memref<880x128xf32, #tpu.memory_space<vmem>>, vector<32x64xf32>
    %cst_78 = arith.constant dense<0.000000e+00> : vector<16x64xf32>
    %236 = tpu.matmul %234, %235, %cst_78 {dimension_numbers = #tpu.dot_dimension_numbers<[1], [0], [0], [1], [0, 0, 1, 1], [], []>} : vector<16x32xf32>, vector<32x64xf32>, vector<16x64xf32> -> vector<16x64xf32>
    %c248 = arith.constant 248 : index
    %c0_79 = arith.constant 0 : index
    %237 = vector.load %arg3[%c248, %c0_79] : memref<880x128xf32, #tpu.memory_space<vmem>>, vector<1x64xf32>
    %238 = vector.broadcast %237 : vector<1x64xf32> to vector<16x64xf32>
    %239 = arith.addf %236, %238 : vector<16x64xf32>
    %cst_80 = arith.constant 0.000000e+00 : f32
    %240 = vector.broadcast %cst_80 : f32 to vector<16x64xf32>
    %241 = arith.maximumf %239, %240 : vector<16x64xf32>
    %c256 = arith.constant 256 : index
    %c0_81 = arith.constant 0 : index
    %242 = vector.load %arg3[%c256, %c0_81] : memref<880x128xf32, #tpu.memory_space<vmem>>, vector<64x32xf32>
    %cst_82 = arith.constant dense<0.000000e+00> : vector<16x32xf32>
    %243 = tpu.matmul %241, %242, %cst_82 {dimension_numbers = #tpu.dot_dimension_numbers<[1], [0], [0], [1], [0, 0, 1, 1], [], []>} : vector<16x64xf32>, vector<64x32xf32>, vector<16x32xf32> -> vector<16x32xf32>
    %c320 = arith.constant 320 : index
    %c0_83 = arith.constant 0 : index
    %244 = vector.load %arg3[%c320, %c0_83] : memref<880x128xf32, #tpu.memory_space<vmem>>, vector<1x32xf32>
    %245 = vector.broadcast %244 : vector<1x32xf32> to vector<16x32xf32>
    %246 = arith.addf %243, %245 : vector<16x32xf32>
    %247 = arith.addf %234, %246 : vector<16x32xf32>
    %c360 = arith.constant 360 : index
    %c0_84 = arith.constant 0 : index
    %248 = vector.load %arg3[%c360, %c0_84] : memref<880x128xf32, #tpu.memory_space<vmem>>, vector<1x32xf32>
    %c368 = arith.constant 368 : index
    %c0_85 = arith.constant 0 : index
    %249 = vector.load %arg3[%c368, %c0_85] : memref<880x128xf32, #tpu.memory_space<vmem>>, vector<1x32xf32>
    %cst_86 = arith.constant dense<0.000000e+00> : vector<16xf32>
    %250 = vector.multi_reduction <add>, %247, %cst_86 [1] : vector<16x32xf32> to vector<16xf32>
    %251 = vector.shape_cast %250 : vector<16xf32> to vector<16x1xf32>
    %cst_87 = arith.constant 3.200000e+01 : f32
    %252 = vector.broadcast %cst_87 : f32 to vector<16x1xf32>
    %253 = arith.divf %251, %252 : vector<16x1xf32>
    %254 = vector.broadcast %253 : vector<16x1xf32> to vector<16x32xf32>
    %255 = arith.subf %247, %254 : vector<16x32xf32>
    %256 = arith.mulf %255, %255 : vector<16x32xf32>
    %cst_88 = arith.constant dense<0.000000e+00> : vector<16xf32>
    %257 = vector.multi_reduction <add>, %256, %cst_88 [1] : vector<16x32xf32> to vector<16xf32>
    %258 = vector.shape_cast %257 : vector<16xf32> to vector<16x1xf32>
    %cst_89 = arith.constant 3.200000e+01 : f32
    %259 = vector.broadcast %cst_89 : f32 to vector<16x1xf32>
    %260 = arith.divf %258, %259 : vector<16x1xf32>
    %261 = vector.broadcast %253 : vector<16x1xf32> to vector<16x32xf32>
    %262 = arith.subf %247, %261 : vector<16x32xf32>
    %cst_90 = arith.constant 9.99999974E-6 : f32
    %263 = vector.broadcast %cst_90 : f32 to vector<16x1xf32>
    %264 = arith.addf %260, %263 : vector<16x1xf32>
    %265 = math.rsqrt %264 : vector<16x1xf32>
    %266 = vector.broadcast %265 : vector<16x1xf32> to vector<16x32xf32>
    %267 = arith.mulf %262, %266 : vector<16x32xf32>
    %268 = vector.broadcast %248 : vector<1x32xf32> to vector<16x32xf32>
    %269 = arith.mulf %267, %268 : vector<16x32xf32>
    %270 = vector.broadcast %249 : vector<1x32xf32> to vector<16x32xf32>
    %271 = arith.addf %269, %270 : vector<16x32xf32>
    %c376 = arith.constant 376 : index
    %c0_91 = arith.constant 0 : index
    %272 = vector.load %arg3[%c376, %c0_91] : memref<880x128xf32, #tpu.memory_space<vmem>>, vector<32x96xf32>
    %cst_92 = arith.constant dense<0.000000e+00> : vector<16x96xf32>
    %273 = tpu.matmul %271, %272, %cst_92 {dimension_numbers = #tpu.dot_dimension_numbers<[1], [0], [0], [1], [0, 0, 1, 1], [], []>} : vector<16x32xf32>, vector<32x96xf32>, vector<16x96xf32> -> vector<16x96xf32>
    %c408 = arith.constant 408 : index
    %c0_93 = arith.constant 0 : index
    %274 = vector.load %arg3[%c408, %c0_93] : memref<880x128xf32, #tpu.memory_space<vmem>>, vector<1x96xf32>
    %275 = vector.broadcast %274 : vector<1x96xf32> to vector<16x96xf32>
    %276 = arith.addf %273, %275 : vector<16x96xf32>
    %277 = vector.extract_strided_slice %276 {offsets = [0, 0], sizes = [16, 32], strides = [1, 1]} : vector<16x96xf32> to vector<16x32xf32>
    %278 = vector.extract_strided_slice %276 {offsets = [0, 32], sizes = [16, 32], strides = [1, 1]} : vector<16x96xf32> to vector<16x32xf32>
    %279 = vector.extract_strided_slice %276 {offsets = [0, 64], sizes = [16, 32], strides = [1, 1]} : vector<16x96xf32> to vector<16x32xf32>
    %c416 = arith.constant 416 : index
    %c0_94 = arith.constant 0 : index
    %280 = vector.load %arg3[%c416, %c0_94] : memref<880x128xf32, #tpu.memory_space<vmem>>, vector<32x32xf32>
    %c448 = arith.constant 448 : index
    %c0_95 = arith.constant 0 : index
    %281 = vector.load %arg3[%c448, %c0_95] : memref<880x128xf32, #tpu.memory_space<vmem>>, vector<1x32xf32>
    %282 = vector.extract_strided_slice %277 {offsets = [0, 0], sizes = [16, 8], strides = [1, 1]} : vector<16x32xf32> to vector<16x8xf32>
    %283 = vector.extract_strided_slice %278 {offsets = [0, 0], sizes = [16, 8], strides = [1, 1]} : vector<16x32xf32> to vector<16x8xf32>
    %284 = vector.extract_strided_slice %279 {offsets = [0, 0], sizes = [16, 8], strides = [1, 1]} : vector<16x32xf32> to vector<16x8xf32>
    %cst_96 = arith.constant dense<0.000000e+00> : vector<16x16xf32>
    %285 = tpu.matmul %282, %283, %cst_96 {dimension_numbers = #tpu.dot_dimension_numbers<[1], [1], [0], [0], [0, 0, 1, 0], [], []>} : vector<16x8xf32>, vector<16x8xf32>, vector<16x16xf32> -> vector<16x16xf32>
    %cst_97 = arith.constant 0.353553385 : f32
    %286 = vector.broadcast %cst_97 : f32 to vector<16x16xf32>
    %287 = arith.mulf %285, %286 : vector<16x16xf32>
    %288 = arith.addf %287, %0 : vector<16x16xf32>
    %cst_98 = arith.constant dense<0xFF800000> : vector<16xf32>
    %289 = vector.multi_reduction <maximumf>, %288, %cst_98 [1] : vector<16x16xf32> to vector<16xf32>
    %290 = vector.shape_cast %289 : vector<16xf32> to vector<16x1xf32>
    %291 = vector.broadcast %290 : vector<16x1xf32> to vector<16x16xf32>
    %292 = arith.subf %288, %291 : vector<16x16xf32>
    %293 = math.exp %292 : vector<16x16xf32>
    %cst_99 = arith.constant dense<0.000000e+00> : vector<16xf32>
    %294 = vector.multi_reduction <add>, %293, %cst_99 [1] : vector<16x16xf32> to vector<16xf32>
    %295 = vector.shape_cast %294 : vector<16xf32> to vector<16x1xf32>
    %296 = tpu.reciprocal %295 {approx = true} : vector<16x1xf32> -> vector<16x1xf32>
    %297 = vector.broadcast %296 : vector<16x1xf32> to vector<16x16xf32>
    %298 = arith.mulf %293, %297 : vector<16x16xf32>
    %cst_100 = arith.constant dense<0.000000e+00> : vector<16x8xf32>
    %299 = tpu.matmul %298, %284, %cst_100 {dimension_numbers = #tpu.dot_dimension_numbers<[1], [0], [0], [1], [0, 0, 1, 1], [], []>} : vector<16x16xf32>, vector<16x8xf32>, vector<16x8xf32> -> vector<16x8xf32>
    %300 = vector.extract_strided_slice %277 {offsets = [0, 8], sizes = [16, 8], strides = [1, 1]} : vector<16x32xf32> to vector<16x8xf32>
    %301 = vector.extract_strided_slice %278 {offsets = [0, 8], sizes = [16, 8], strides = [1, 1]} : vector<16x32xf32> to vector<16x8xf32>
    %302 = vector.extract_strided_slice %279 {offsets = [0, 8], sizes = [16, 8], strides = [1, 1]} : vector<16x32xf32> to vector<16x8xf32>
    %cst_101 = arith.constant dense<0.000000e+00> : vector<16x16xf32>
    %303 = tpu.matmul %300, %301, %cst_101 {dimension_numbers = #tpu.dot_dimension_numbers<[1], [1], [0], [0], [0, 0, 1, 0], [], []>} : vector<16x8xf32>, vector<16x8xf32>, vector<16x16xf32> -> vector<16x16xf32>
    %cst_102 = arith.constant 0.353553385 : f32
    %304 = vector.broadcast %cst_102 : f32 to vector<16x16xf32>
    %305 = arith.mulf %303, %304 : vector<16x16xf32>
    %306 = arith.addf %305, %0 : vector<16x16xf32>
    %cst_103 = arith.constant dense<0xFF800000> : vector<16xf32>
    %307 = vector.multi_reduction <maximumf>, %306, %cst_103 [1] : vector<16x16xf32> to vector<16xf32>
    %308 = vector.shape_cast %307 : vector<16xf32> to vector<16x1xf32>
    %309 = vector.broadcast %308 : vector<16x1xf32> to vector<16x16xf32>
    %310 = arith.subf %306, %309 : vector<16x16xf32>
    %311 = math.exp %310 : vector<16x16xf32>
    %cst_104 = arith.constant dense<0.000000e+00> : vector<16xf32>
    %312 = vector.multi_reduction <add>, %311, %cst_104 [1] : vector<16x16xf32> to vector<16xf32>
    %313 = vector.shape_cast %312 : vector<16xf32> to vector<16x1xf32>
    %314 = tpu.reciprocal %313 {approx = true} : vector<16x1xf32> -> vector<16x1xf32>
    %315 = vector.broadcast %314 : vector<16x1xf32> to vector<16x16xf32>
    %316 = arith.mulf %311, %315 : vector<16x16xf32>
    %cst_105 = arith.constant dense<0.000000e+00> : vector<16x8xf32>
    %317 = tpu.matmul %316, %302, %cst_105 {dimension_numbers = #tpu.dot_dimension_numbers<[1], [0], [0], [1], [0, 0, 1, 1], [], []>} : vector<16x16xf32>, vector<16x8xf32>, vector<16x8xf32> -> vector<16x8xf32>
    %318 = vector.extract_strided_slice %277 {offsets = [0, 16], sizes = [16, 8], strides = [1, 1]} : vector<16x32xf32> to vector<16x8xf32>
    %319 = vector.extract_strided_slice %278 {offsets = [0, 16], sizes = [16, 8], strides = [1, 1]} : vector<16x32xf32> to vector<16x8xf32>
    %320 = vector.extract_strided_slice %279 {offsets = [0, 16], sizes = [16, 8], strides = [1, 1]} : vector<16x32xf32> to vector<16x8xf32>
    %cst_106 = arith.constant dense<0.000000e+00> : vector<16x16xf32>
    %321 = tpu.matmul %318, %319, %cst_106 {dimension_numbers = #tpu.dot_dimension_numbers<[1], [1], [0], [0], [0, 0, 1, 0], [], []>} : vector<16x8xf32>, vector<16x8xf32>, vector<16x16xf32> -> vector<16x16xf32>
    %cst_107 = arith.constant 0.353553385 : f32
    %322 = vector.broadcast %cst_107 : f32 to vector<16x16xf32>
    %323 = arith.mulf %321, %322 : vector<16x16xf32>
    %324 = arith.addf %323, %0 : vector<16x16xf32>
    %cst_108 = arith.constant dense<0xFF800000> : vector<16xf32>
    %325 = vector.multi_reduction <maximumf>, %324, %cst_108 [1] : vector<16x16xf32> to vector<16xf32>
    %326 = vector.shape_cast %325 : vector<16xf32> to vector<16x1xf32>
    %327 = vector.broadcast %326 : vector<16x1xf32> to vector<16x16xf32>
    %328 = arith.subf %324, %327 : vector<16x16xf32>
    %329 = math.exp %328 : vector<16x16xf32>
    %cst_109 = arith.constant dense<0.000000e+00> : vector<16xf32>
    %330 = vector.multi_reduction <add>, %329, %cst_109 [1] : vector<16x16xf32> to vector<16xf32>
    %331 = vector.shape_cast %330 : vector<16xf32> to vector<16x1xf32>
    %332 = tpu.reciprocal %331 {approx = true} : vector<16x1xf32> -> vector<16x1xf32>
    %333 = vector.broadcast %332 : vector<16x1xf32> to vector<16x16xf32>
    %334 = arith.mulf %329, %333 : vector<16x16xf32>
    %cst_110 = arith.constant dense<0.000000e+00> : vector<16x8xf32>
    %335 = tpu.matmul %334, %320, %cst_110 {dimension_numbers = #tpu.dot_dimension_numbers<[1], [0], [0], [1], [0, 0, 1, 1], [], []>} : vector<16x16xf32>, vector<16x8xf32>, vector<16x8xf32> -> vector<16x8xf32>
    %336 = vector.extract_strided_slice %277 {offsets = [0, 24], sizes = [16, 8], strides = [1, 1]} : vector<16x32xf32> to vector<16x8xf32>
    %337 = vector.extract_strided_slice %278 {offsets = [0, 24], sizes = [16, 8], strides = [1, 1]} : vector<16x32xf32> to vector<16x8xf32>
    %338 = vector.extract_strided_slice %279 {offsets = [0, 24], sizes = [16, 8], strides = [1, 1]} : vector<16x32xf32> to vector<16x8xf32>
    %cst_111 = arith.constant dense<0.000000e+00> : vector<16x16xf32>
    %339 = tpu.matmul %336, %337, %cst_111 {dimension_numbers = #tpu.dot_dimension_numbers<[1], [1], [0], [0], [0, 0, 1, 0], [], []>} : vector<16x8xf32>, vector<16x8xf32>, vector<16x16xf32> -> vector<16x16xf32>
    %cst_112 = arith.constant 0.353553385 : f32
    %340 = vector.broadcast %cst_112 : f32 to vector<16x16xf32>
    %341 = arith.mulf %339, %340 : vector<16x16xf32>
    %342 = arith.addf %341, %0 : vector<16x16xf32>
    %cst_113 = arith.constant dense<0xFF800000> : vector<16xf32>
    %343 = vector.multi_reduction <maximumf>, %342, %cst_113 [1] : vector<16x16xf32> to vector<16xf32>
    %344 = vector.shape_cast %343 : vector<16xf32> to vector<16x1xf32>
    %345 = vector.broadcast %344 : vector<16x1xf32> to vector<16x16xf32>
    %346 = arith.subf %342, %345 : vector<16x16xf32>
    %347 = math.exp %346 : vector<16x16xf32>
    %cst_114 = arith.constant dense<0.000000e+00> : vector<16xf32>
    %348 = vector.multi_reduction <add>, %347, %cst_114 [1] : vector<16x16xf32> to vector<16xf32>
    %349 = vector.shape_cast %348 : vector<16xf32> to vector<16x1xf32>
    %350 = tpu.reciprocal %349 {approx = true} : vector<16x1xf32> -> vector<16x1xf32>
    %351 = vector.broadcast %350 : vector<16x1xf32> to vector<16x16xf32>
    %352 = arith.mulf %347, %351 : vector<16x16xf32>
    %cst_115 = arith.constant dense<0.000000e+00> : vector<16x8xf32>
    %353 = tpu.matmul %352, %338, %cst_115 {dimension_numbers = #tpu.dot_dimension_numbers<[1], [0], [0], [1], [0, 0, 1, 1], [], []>} : vector<16x16xf32>, vector<16x8xf32>, vector<16x8xf32> -> vector<16x8xf32>
    %354 = tpu.concatenate %299, %317, %335, %353 in 1 : vector<16x8xf32>, vector<16x8xf32>, vector<16x8xf32>, vector<16x8xf32> -> vector<16x32xf32>
    %cst_116 = arith.constant dense<0.000000e+00> : vector<16x32xf32>
    %355 = tpu.matmul %354, %280, %cst_116 {dimension_numbers = #tpu.dot_dimension_numbers<[1], [0], [0], [1], [0, 0, 1, 1], [], []>} : vector<16x32xf32>, vector<32x32xf32>, vector<16x32xf32> -> vector<16x32xf32>
    %356 = vector.broadcast %281 : vector<1x32xf32> to vector<16x32xf32>
    %357 = arith.addf %355, %356 : vector<16x32xf32>
    %358 = arith.addf %271, %357 : vector<16x32xf32>
    %c688 = arith.constant 688 : index
    %c0_117 = arith.constant 0 : index
    %359 = vector.load %arg3[%c688, %c0_117] : memref<880x128xf32, #tpu.memory_space<vmem>>, vector<1x32xf32>
    %c696 = arith.constant 696 : index
    %c0_118 = arith.constant 0 : index
    %360 = vector.load %arg3[%c696, %c0_118] : memref<880x128xf32, #tpu.memory_space<vmem>>, vector<1x32xf32>
    %cst_119 = arith.constant dense<0.000000e+00> : vector<16xf32>
    %361 = vector.multi_reduction <add>, %358, %cst_119 [1] : vector<16x32xf32> to vector<16xf32>
    %362 = vector.shape_cast %361 : vector<16xf32> to vector<16x1xf32>
    %cst_120 = arith.constant 3.200000e+01 : f32
    %363 = vector.broadcast %cst_120 : f32 to vector<16x1xf32>
    %364 = arith.divf %362, %363 : vector<16x1xf32>
    %365 = vector.broadcast %364 : vector<16x1xf32> to vector<16x32xf32>
    %366 = arith.subf %358, %365 : vector<16x32xf32>
    %367 = arith.mulf %366, %366 : vector<16x32xf32>
    %cst_121 = arith.constant dense<0.000000e+00> : vector<16xf32>
    %368 = vector.multi_reduction <add>, %367, %cst_121 [1] : vector<16x32xf32> to vector<16xf32>
    %369 = vector.shape_cast %368 : vector<16xf32> to vector<16x1xf32>
    %cst_122 = arith.constant 3.200000e+01 : f32
    %370 = vector.broadcast %cst_122 : f32 to vector<16x1xf32>
    %371 = arith.divf %369, %370 : vector<16x1xf32>
    %372 = vector.broadcast %364 : vector<16x1xf32> to vector<16x32xf32>
    %373 = arith.subf %358, %372 : vector<16x32xf32>
    %cst_123 = arith.constant 9.99999974E-6 : f32
    %374 = vector.broadcast %cst_123 : f32 to vector<16x1xf32>
    %375 = arith.addf %371, %374 : vector<16x1xf32>
    %376 = math.rsqrt %375 : vector<16x1xf32>
    %377 = vector.broadcast %376 : vector<16x1xf32> to vector<16x32xf32>
    %378 = arith.mulf %373, %377 : vector<16x32xf32>
    %379 = vector.broadcast %359 : vector<1x32xf32> to vector<16x32xf32>
    %380 = arith.mulf %378, %379 : vector<16x32xf32>
    %381 = vector.broadcast %360 : vector<1x32xf32> to vector<16x32xf32>
    %382 = arith.addf %380, %381 : vector<16x32xf32>
    %c456 = arith.constant 456 : index
    %c0_124 = arith.constant 0 : index
    %383 = vector.load %arg3[%c456, %c0_124] : memref<880x128xf32, #tpu.memory_space<vmem>>, vector<32x32xf32>
    %cst_125 = arith.constant dense<0.000000e+00> : vector<16x32xf32>
    %384 = tpu.matmul %382, %383, %cst_125 {dimension_numbers = #tpu.dot_dimension_numbers<[1], [0], [0], [1], [0, 0, 1, 1], [], []>} : vector<16x32xf32>, vector<32x32xf32>, vector<16x32xf32> -> vector<16x32xf32>
    %c488 = arith.constant 488 : index
    %c0_126 = arith.constant 0 : index
    %385 = vector.load %arg3[%c488, %c0_126] : memref<880x128xf32, #tpu.memory_space<vmem>>, vector<1x32xf32>
    %386 = vector.broadcast %385 : vector<1x32xf32> to vector<16x32xf32>
    %387 = arith.addf %384, %386 : vector<16x32xf32>
    %c496 = arith.constant 496 : index
    %c0_127 = arith.constant 0 : index
    %388 = vector.load %arg3[%c496, %c0_127] : memref<880x128xf32, #tpu.memory_space<vmem>>, vector<32x64xf32>
    %cst_128 = arith.constant dense<0.000000e+00> : vector<16x64xf32>
    %389 = tpu.matmul %2, %388, %cst_128 {dimension_numbers = #tpu.dot_dimension_numbers<[1], [0], [0], [1], [0, 0, 1, 1], [], []>} : vector<16x32xf32>, vector<32x64xf32>, vector<16x64xf32> -> vector<16x64xf32>
    %c528 = arith.constant 528 : index
    %c0_129 = arith.constant 0 : index
    %390 = vector.load %arg3[%c528, %c0_129] : memref<880x128xf32, #tpu.memory_space<vmem>>, vector<1x64xf32>
    %391 = vector.broadcast %390 : vector<1x64xf32> to vector<16x64xf32>
    %392 = arith.addf %389, %391 : vector<16x64xf32>
    %393 = vector.extract_strided_slice %392 {offsets = [0, 0], sizes = [16, 32], strides = [1, 1]} : vector<16x64xf32> to vector<16x32xf32>
    %394 = vector.extract_strided_slice %392 {offsets = [0, 32], sizes = [16, 32], strides = [1, 1]} : vector<16x64xf32> to vector<16x32xf32>
    %c536 = arith.constant 536 : index
    %c0_130 = arith.constant 0 : index
    %395 = vector.load %arg3[%c536, %c0_130] : memref<880x128xf32, #tpu.memory_space<vmem>>, vector<32x32xf32>
    %c568 = arith.constant 568 : index
    %c0_131 = arith.constant 0 : index
    %396 = vector.load %arg3[%c568, %c0_131] : memref<880x128xf32, #tpu.memory_space<vmem>>, vector<1x32xf32>
    %397 = vector.extract_strided_slice %387 {offsets = [0, 0], sizes = [16, 8], strides = [1, 1]} : vector<16x32xf32> to vector<16x8xf32>
    %398 = vector.extract_strided_slice %393 {offsets = [0, 0], sizes = [16, 8], strides = [1, 1]} : vector<16x32xf32> to vector<16x8xf32>
    %399 = vector.extract_strided_slice %394 {offsets = [0, 0], sizes = [16, 8], strides = [1, 1]} : vector<16x32xf32> to vector<16x8xf32>
    %cst_132 = arith.constant dense<0.000000e+00> : vector<16x16xf32>
    %400 = tpu.matmul %397, %398, %cst_132 {dimension_numbers = #tpu.dot_dimension_numbers<[1], [1], [0], [0], [0, 0, 1, 0], [], []>} : vector<16x8xf32>, vector<16x8xf32>, vector<16x16xf32> -> vector<16x16xf32>
    %cst_133 = arith.constant 0.353553385 : f32
    %401 = vector.broadcast %cst_133 : f32 to vector<16x16xf32>
    %402 = arith.mulf %400, %401 : vector<16x16xf32>
    %403 = arith.addf %402, %1 : vector<16x16xf32>
    %cst_134 = arith.constant dense<0xFF800000> : vector<16xf32>
    %404 = vector.multi_reduction <maximumf>, %403, %cst_134 [1] : vector<16x16xf32> to vector<16xf32>
    %405 = vector.shape_cast %404 : vector<16xf32> to vector<16x1xf32>
    %406 = vector.broadcast %405 : vector<16x1xf32> to vector<16x16xf32>
    %407 = arith.subf %403, %406 : vector<16x16xf32>
    %408 = math.exp %407 : vector<16x16xf32>
    %cst_135 = arith.constant dense<0.000000e+00> : vector<16xf32>
    %409 = vector.multi_reduction <add>, %408, %cst_135 [1] : vector<16x16xf32> to vector<16xf32>
    %410 = vector.shape_cast %409 : vector<16xf32> to vector<16x1xf32>
    %411 = tpu.reciprocal %410 {approx = true} : vector<16x1xf32> -> vector<16x1xf32>
    %412 = vector.broadcast %411 : vector<16x1xf32> to vector<16x16xf32>
    %413 = arith.mulf %408, %412 : vector<16x16xf32>
    %cst_136 = arith.constant dense<0.000000e+00> : vector<16x8xf32>
    %414 = tpu.matmul %413, %399, %cst_136 {dimension_numbers = #tpu.dot_dimension_numbers<[1], [0], [0], [1], [0, 0, 1, 1], [], []>} : vector<16x16xf32>, vector<16x8xf32>, vector<16x8xf32> -> vector<16x8xf32>
    %415 = vector.extract_strided_slice %387 {offsets = [0, 8], sizes = [16, 8], strides = [1, 1]} : vector<16x32xf32> to vector<16x8xf32>
    %416 = vector.extract_strided_slice %393 {offsets = [0, 8], sizes = [16, 8], strides = [1, 1]} : vector<16x32xf32> to vector<16x8xf32>
    %417 = vector.extract_strided_slice %394 {offsets = [0, 8], sizes = [16, 8], strides = [1, 1]} : vector<16x32xf32> to vector<16x8xf32>
    %cst_137 = arith.constant dense<0.000000e+00> : vector<16x16xf32>
    %418 = tpu.matmul %415, %416, %cst_137 {dimension_numbers = #tpu.dot_dimension_numbers<[1], [1], [0], [0], [0, 0, 1, 0], [], []>} : vector<16x8xf32>, vector<16x8xf32>, vector<16x16xf32> -> vector<16x16xf32>
    %cst_138 = arith.constant 0.353553385 : f32
    %419 = vector.broadcast %cst_138 : f32 to vector<16x16xf32>
    %420 = arith.mulf %418, %419 : vector<16x16xf32>
    %421 = arith.addf %420, %1 : vector<16x16xf32>
    %cst_139 = arith.constant dense<0xFF800000> : vector<16xf32>
    %422 = vector.multi_reduction <maximumf>, %421, %cst_139 [1] : vector<16x16xf32> to vector<16xf32>
    %423 = vector.shape_cast %422 : vector<16xf32> to vector<16x1xf32>
    %424 = vector.broadcast %423 : vector<16x1xf32> to vector<16x16xf32>
    %425 = arith.subf %421, %424 : vector<16x16xf32>
    %426 = math.exp %425 : vector<16x16xf32>
    %cst_140 = arith.constant dense<0.000000e+00> : vector<16xf32>
    %427 = vector.multi_reduction <add>, %426, %cst_140 [1] : vector<16x16xf32> to vector<16xf32>
    %428 = vector.shape_cast %427 : vector<16xf32> to vector<16x1xf32>
    %429 = tpu.reciprocal %428 {approx = true} : vector<16x1xf32> -> vector<16x1xf32>
    %430 = vector.broadcast %429 : vector<16x1xf32> to vector<16x16xf32>
    %431 = arith.mulf %426, %430 : vector<16x16xf32>
    %cst_141 = arith.constant dense<0.000000e+00> : vector<16x8xf32>
    %432 = tpu.matmul %431, %417, %cst_141 {dimension_numbers = #tpu.dot_dimension_numbers<[1], [0], [0], [1], [0, 0, 1, 1], [], []>} : vector<16x16xf32>, vector<16x8xf32>, vector<16x8xf32> -> vector<16x8xf32>
    %433 = vector.extract_strided_slice %387 {offsets = [0, 16], sizes = [16, 8], strides = [1, 1]} : vector<16x32xf32> to vector<16x8xf32>
    %434 = vector.extract_strided_slice %393 {offsets = [0, 16], sizes = [16, 8], strides = [1, 1]} : vector<16x32xf32> to vector<16x8xf32>
    %435 = vector.extract_strided_slice %394 {offsets = [0, 16], sizes = [16, 8], strides = [1, 1]} : vector<16x32xf32> to vector<16x8xf32>
    %cst_142 = arith.constant dense<0.000000e+00> : vector<16x16xf32>
    %436 = tpu.matmul %433, %434, %cst_142 {dimension_numbers = #tpu.dot_dimension_numbers<[1], [1], [0], [0], [0, 0, 1, 0], [], []>} : vector<16x8xf32>, vector<16x8xf32>, vector<16x16xf32> -> vector<16x16xf32>
    %cst_143 = arith.constant 0.353553385 : f32
    %437 = vector.broadcast %cst_143 : f32 to vector<16x16xf32>
    %438 = arith.mulf %436, %437 : vector<16x16xf32>
    %439 = arith.addf %438, %1 : vector<16x16xf32>
    %cst_144 = arith.constant dense<0xFF800000> : vector<16xf32>
    %440 = vector.multi_reduction <maximumf>, %439, %cst_144 [1] : vector<16x16xf32> to vector<16xf32>
    %441 = vector.shape_cast %440 : vector<16xf32> to vector<16x1xf32>
    %442 = vector.broadcast %441 : vector<16x1xf32> to vector<16x16xf32>
    %443 = arith.subf %439, %442 : vector<16x16xf32>
    %444 = math.exp %443 : vector<16x16xf32>
    %cst_145 = arith.constant dense<0.000000e+00> : vector<16xf32>
    %445 = vector.multi_reduction <add>, %444, %cst_145 [1] : vector<16x16xf32> to vector<16xf32>
    %446 = vector.shape_cast %445 : vector<16xf32> to vector<16x1xf32>
    %447 = tpu.reciprocal %446 {approx = true} : vector<16x1xf32> -> vector<16x1xf32>
    %448 = vector.broadcast %447 : vector<16x1xf32> to vector<16x16xf32>
    %449 = arith.mulf %444, %448 : vector<16x16xf32>
    %cst_146 = arith.constant dense<0.000000e+00> : vector<16x8xf32>
    %450 = tpu.matmul %449, %435, %cst_146 {dimension_numbers = #tpu.dot_dimension_numbers<[1], [0], [0], [1], [0, 0, 1, 1], [], []>} : vector<16x16xf32>, vector<16x8xf32>, vector<16x8xf32> -> vector<16x8xf32>
    %451 = vector.extract_strided_slice %387 {offsets = [0, 24], sizes = [16, 8], strides = [1, 1]} : vector<16x32xf32> to vector<16x8xf32>
    %452 = vector.extract_strided_slice %393 {offsets = [0, 24], sizes = [16, 8], strides = [1, 1]} : vector<16x32xf32> to vector<16x8xf32>
    %453 = vector.extract_strided_slice %394 {offsets = [0, 24], sizes = [16, 8], strides = [1, 1]} : vector<16x32xf32> to vector<16x8xf32>
    %cst_147 = arith.constant dense<0.000000e+00> : vector<16x16xf32>
    %454 = tpu.matmul %451, %452, %cst_147 {dimension_numbers = #tpu.dot_dimension_numbers<[1], [1], [0], [0], [0, 0, 1, 0], [], []>} : vector<16x8xf32>, vector<16x8xf32>, vector<16x16xf32> -> vector<16x16xf32>
    %cst_148 = arith.constant 0.353553385 : f32
    %455 = vector.broadcast %cst_148 : f32 to vector<16x16xf32>
    %456 = arith.mulf %454, %455 : vector<16x16xf32>
    %457 = arith.addf %456, %1 : vector<16x16xf32>
    %cst_149 = arith.constant dense<0xFF800000> : vector<16xf32>
    %458 = vector.multi_reduction <maximumf>, %457, %cst_149 [1] : vector<16x16xf32> to vector<16xf32>
    %459 = vector.shape_cast %458 : vector<16xf32> to vector<16x1xf32>
    %460 = vector.broadcast %459 : vector<16x1xf32> to vector<16x16xf32>
    %461 = arith.subf %457, %460 : vector<16x16xf32>
    %462 = math.exp %461 : vector<16x16xf32>
    %cst_150 = arith.constant dense<0.000000e+00> : vector<16xf32>
    %463 = vector.multi_reduction <add>, %462, %cst_150 [1] : vector<16x16xf32> to vector<16xf32>
    %464 = vector.shape_cast %463 : vector<16xf32> to vector<16x1xf32>
    %465 = tpu.reciprocal %464 {approx = true} : vector<16x1xf32> -> vector<16x1xf32>
    %466 = vector.broadcast %465 : vector<16x1xf32> to vector<16x16xf32>
    %467 = arith.mulf %462, %466 : vector<16x16xf32>
    %cst_151 = arith.constant dense<0.000000e+00> : vector<16x8xf32>
    %468 = tpu.matmul %467, %453, %cst_151 {dimension_numbers = #tpu.dot_dimension_numbers<[1], [0], [0], [1], [0, 0, 1, 1], [], []>} : vector<16x16xf32>, vector<16x8xf32>, vector<16x8xf32> -> vector<16x8xf32>
    %469 = tpu.concatenate %414, %432, %450, %468 in 1 : vector<16x8xf32>, vector<16x8xf32>, vector<16x8xf32>, vector<16x8xf32> -> vector<16x32xf32>
    %cst_152 = arith.constant dense<0.000000e+00> : vector<16x32xf32>
    %470 = tpu.matmul %469, %395, %cst_152 {dimension_numbers = #tpu.dot_dimension_numbers<[1], [0], [0], [1], [0, 0, 1, 1], [], []>} : vector<16x32xf32>, vector<32x32xf32>, vector<16x32xf32> -> vector<16x32xf32>
    %471 = vector.broadcast %396 : vector<1x32xf32> to vector<16x32xf32>
    %472 = arith.addf %470, %471 : vector<16x32xf32>
    %473 = arith.addf %382, %472 : vector<16x32xf32>
    %c704 = arith.constant 704 : index
    %c0_153 = arith.constant 0 : index
    %474 = vector.load %arg3[%c704, %c0_153] : memref<880x128xf32, #tpu.memory_space<vmem>>, vector<1x32xf32>
    %c712 = arith.constant 712 : index
    %c0_154 = arith.constant 0 : index
    %475 = vector.load %arg3[%c712, %c0_154] : memref<880x128xf32, #tpu.memory_space<vmem>>, vector<1x32xf32>
    %cst_155 = arith.constant dense<0.000000e+00> : vector<16xf32>
    %476 = vector.multi_reduction <add>, %473, %cst_155 [1] : vector<16x32xf32> to vector<16xf32>
    %477 = vector.shape_cast %476 : vector<16xf32> to vector<16x1xf32>
    %cst_156 = arith.constant 3.200000e+01 : f32
    %478 = vector.broadcast %cst_156 : f32 to vector<16x1xf32>
    %479 = arith.divf %477, %478 : vector<16x1xf32>
    %480 = vector.broadcast %479 : vector<16x1xf32> to vector<16x32xf32>
    %481 = arith.subf %473, %480 : vector<16x32xf32>
    %482 = arith.mulf %481, %481 : vector<16x32xf32>
    %cst_157 = arith.constant dense<0.000000e+00> : vector<16xf32>
    %483 = vector.multi_reduction <add>, %482, %cst_157 [1] : vector<16x32xf32> to vector<16xf32>
    %484 = vector.shape_cast %483 : vector<16xf32> to vector<16x1xf32>
    %cst_158 = arith.constant 3.200000e+01 : f32
    %485 = vector.broadcast %cst_158 : f32 to vector<16x1xf32>
    %486 = arith.divf %484, %485 : vector<16x1xf32>
    %487 = vector.broadcast %479 : vector<16x1xf32> to vector<16x32xf32>
    %488 = arith.subf %473, %487 : vector<16x32xf32>
    %cst_159 = arith.constant 9.99999974E-6 : f32
    %489 = vector.broadcast %cst_159 : f32 to vector<16x1xf32>
    %490 = arith.addf %486, %489 : vector<16x1xf32>
    %491 = math.rsqrt %490 : vector<16x1xf32>
    %492 = vector.broadcast %491 : vector<16x1xf32> to vector<16x32xf32>
    %493 = arith.mulf %488, %492 : vector<16x32xf32>
    %494 = vector.broadcast %474 : vector<1x32xf32> to vector<16x32xf32>
    %495 = arith.mulf %493, %494 : vector<16x32xf32>
    %496 = vector.broadcast %475 : vector<1x32xf32> to vector<16x32xf32>
    %497 = arith.addf %495, %496 : vector<16x32xf32>
    %c576 = arith.constant 576 : index
    %c0_160 = arith.constant 0 : index
    %498 = vector.load %arg3[%c576, %c0_160] : memref<880x128xf32, #tpu.memory_space<vmem>>, vector<32x64xf32>
    %cst_161 = arith.constant dense<0.000000e+00> : vector<16x64xf32>
    %499 = tpu.matmul %497, %498, %cst_161 {dimension_numbers = #tpu.dot_dimension_numbers<[1], [0], [0], [1], [0, 0, 1, 1], [], []>} : vector<16x32xf32>, vector<32x64xf32>, vector<16x64xf32> -> vector<16x64xf32>
    %c608 = arith.constant 608 : index
    %c0_162 = arith.constant 0 : index
    %500 = vector.load %arg3[%c608, %c0_162] : memref<880x128xf32, #tpu.memory_space<vmem>>, vector<1x64xf32>
    %501 = vector.broadcast %500 : vector<1x64xf32> to vector<16x64xf32>
    %502 = arith.addf %499, %501 : vector<16x64xf32>
    %cst_163 = arith.constant 0.000000e+00 : f32
    %503 = vector.broadcast %cst_163 : f32 to vector<16x64xf32>
    %504 = arith.maximumf %502, %503 : vector<16x64xf32>
    %c616 = arith.constant 616 : index
    %c0_164 = arith.constant 0 : index
    %505 = vector.load %arg3[%c616, %c0_164] : memref<880x128xf32, #tpu.memory_space<vmem>>, vector<64x32xf32>
    %cst_165 = arith.constant dense<0.000000e+00> : vector<16x32xf32>
    %506 = tpu.matmul %504, %505, %cst_165 {dimension_numbers = #tpu.dot_dimension_numbers<[1], [0], [0], [1], [0, 0, 1, 1], [], []>} : vector<16x64xf32>, vector<64x32xf32>, vector<16x32xf32> -> vector<16x32xf32>
    %c680 = arith.constant 680 : index
    %c0_166 = arith.constant 0 : index
    %507 = vector.load %arg3[%c680, %c0_166] : memref<880x128xf32, #tpu.memory_space<vmem>>, vector<1x32xf32>
    %508 = vector.broadcast %507 : vector<1x32xf32> to vector<16x32xf32>
    %509 = arith.addf %506, %508 : vector<16x32xf32>
    %510 = arith.addf %497, %509 : vector<16x32xf32>
    %c720 = arith.constant 720 : index
    %c0_167 = arith.constant 0 : index
    %511 = vector.load %arg3[%c720, %c0_167] : memref<880x128xf32, #tpu.memory_space<vmem>>, vector<1x32xf32>
    %c728 = arith.constant 728 : index
    %c0_168 = arith.constant 0 : index
    %512 = vector.load %arg3[%c728, %c0_168] : memref<880x128xf32, #tpu.memory_space<vmem>>, vector<1x32xf32>
    %cst_169 = arith.constant dense<0.000000e+00> : vector<16xf32>
    %513 = vector.multi_reduction <add>, %510, %cst_169 [1] : vector<16x32xf32> to vector<16xf32>
    %514 = vector.shape_cast %513 : vector<16xf32> to vector<16x1xf32>
    %cst_170 = arith.constant 3.200000e+01 : f32
    %515 = vector.broadcast %cst_170 : f32 to vector<16x1xf32>
    %516 = arith.divf %514, %515 : vector<16x1xf32>
    %517 = vector.broadcast %516 : vector<16x1xf32> to vector<16x32xf32>
    %518 = arith.subf %510, %517 : vector<16x32xf32>
    %519 = arith.mulf %518, %518 : vector<16x32xf32>
    %cst_171 = arith.constant dense<0.000000e+00> : vector<16xf32>
    %520 = vector.multi_reduction <add>, %519, %cst_171 [1] : vector<16x32xf32> to vector<16xf32>
    %521 = vector.shape_cast %520 : vector<16xf32> to vector<16x1xf32>
    %cst_172 = arith.constant 3.200000e+01 : f32
    %522 = vector.broadcast %cst_172 : f32 to vector<16x1xf32>
    %523 = arith.divf %521, %522 : vector<16x1xf32>
    %524 = vector.broadcast %516 : vector<16x1xf32> to vector<16x32xf32>
    %525 = arith.subf %510, %524 : vector<16x32xf32>
    %cst_173 = arith.constant 9.99999974E-6 : f32
    %526 = vector.broadcast %cst_173 : f32 to vector<16x1xf32>
    %527 = arith.addf %523, %526 : vector<16x1xf32>
    %528 = math.rsqrt %527 : vector<16x1xf32>
    %529 = vector.broadcast %528 : vector<16x1xf32> to vector<16x32xf32>
    %530 = arith.mulf %525, %529 : vector<16x32xf32>
    %531 = vector.broadcast %511 : vector<1x32xf32> to vector<16x32xf32>
    %532 = arith.mulf %530, %531 : vector<16x32xf32>
    %533 = vector.broadcast %512 : vector<1x32xf32> to vector<16x32xf32>
    %534 = arith.addf %532, %533 : vector<16x32xf32>
    %c736 = arith.constant 736 : index
    %c0_174 = arith.constant 0 : index
    %535 = vector.load %arg3[%c736, %c0_174] : memref<880x128xf32, #tpu.memory_space<vmem>>, vector<32x64xf32>
    %cst_175 = arith.constant dense<0.000000e+00> : vector<16x64xf32>
    %536 = tpu.matmul %534, %535, %cst_175 {dimension_numbers = #tpu.dot_dimension_numbers<[1], [0], [0], [1], [0, 0, 1, 1], [], []>} : vector<16x32xf32>, vector<32x64xf32>, vector<16x64xf32> -> vector<16x64xf32>
    %c768 = arith.constant 768 : index
    %c0_176 = arith.constant 0 : index
    %537 = vector.load %arg3[%c768, %c0_176] : memref<880x128xf32, #tpu.memory_space<vmem>>, vector<1x64xf32>
    %538 = vector.broadcast %537 : vector<1x64xf32> to vector<16x64xf32>
    %539 = arith.addf %536, %538 : vector<16x64xf32>
    %cst_177 = arith.constant 0.000000e+00 : f32
    %540 = vector.broadcast %cst_177 : f32 to vector<16x64xf32>
    %541 = arith.maximumf %539, %540 : vector<16x64xf32>
    %c776 = arith.constant 776 : index
    %c0_178 = arith.constant 0 : index
    %542 = vector.load %arg3[%c776, %c0_178] : memref<880x128xf32, #tpu.memory_space<vmem>>, vector<64x16xf32>
    %cst_179 = arith.constant dense<0.000000e+00> : vector<16x16xf32>
    %543 = tpu.matmul %541, %542, %cst_179 {dimension_numbers = #tpu.dot_dimension_numbers<[1], [0], [0], [1], [0, 0, 1, 1], [], []>} : vector<16x64xf32>, vector<64x16xf32>, vector<16x16xf32> -> vector<16x16xf32>
    %c840 = arith.constant 840 : index
    %c0_180 = arith.constant 0 : index
    %544 = vector.load %arg3[%c840, %c0_180] : memref<880x128xf32, #tpu.memory_space<vmem>>, vector<1x16xf32>
    %545 = vector.broadcast %544 : vector<1x16xf32> to vector<16x16xf32>
    %546 = arith.addf %543, %545 : vector<16x16xf32>
    %c0_181 = arith.constant 0 : index
    %c0_182 = arith.constant 0 : index
    %547 = vector.load %arg4[%c0_181, %c0_182] : memref<16x16xf32, #tpu.memory_space<vmem>>, vector<16x16xf32>
    tpu.vector_store %arg4[%c0_181, %c0_182], %546 {strides = array<i32>} : memref<16x16xf32, #tpu.memory_space<vmem>>, vector<16x16xf32>,
    return
  }
  func.func @transform_0(%arg0: i32) -> (i32, i32) {
    %c0_i32 = arith.constant 0 : i32
    %c0_i32_0 = arith.constant 0 : i32
    %c0_i32_1 = arith.constant 0 : i32
    return %c0_i32, %c0_i32_0 : i32, i32
  }
  func.func @transform_1(%arg0: i32) -> (i32, i32) {
    %c0_i32 = arith.constant 0 : i32
    %c0_i32_0 = arith.constant 0 : i32
    %c0_i32_1 = arith.constant 0 : i32
    return %c0_i32, %c0_i32_0 : i32, i32
  }
  func.func @transform_2(%arg0: i32) -> (i32, i32) {
    %c0_i32 = arith.constant 0 : i32
    %c0_i32_0 = arith.constant 0 : i32
    %c0_i32_1 = arith.constant 0 : i32
    return %c0_i32, %c0_i32_0 : i32, i32
  }
  func.func @transform_3(%arg0: i32) -> (i32, i32) {
    %c0_i32 = arith.constant 0 : i32
    %c0_i32_0 = arith.constant 0 : i32
    %c0_i32_1 = arith.constant 0 : i32
    return %c0_i32, %c0_i32_0 : i32, i32
  }
}

</mosaic_0001>

<llo_original>
// kernel: tpu_custom_call.1
$region0: #{tpu_custom_call.1}
  #allocation0 [shape = 'u32[]', space=smem, size = 0x4, offset = 0x4, fixed_abs, tag = 'smem constant byte address 0x4 - core index']
  #allocation1 [shape = 'u32[144,128]{1,0:T(1,128)}', space=vmem, size = 0x12000, scoped, tag = 'internal scratch']
  %s0 = inlined_call_operand.vmem [shape: f32[16,8], index: 0, kind: input, shape index: {}]
  %s1 = inlined_call_operand.vmem [shape: f32[16,32], index: 1, kind: input, shape index: {}]
  %s2 = inlined_call_operand.hbm [shape: f32[880,128], index: 2, kind: input, shape index: {}]
  %s3 = inlined_call_operand.hbm [shape: f32[16,16], index: 3, kind: output, shape index: {}]
  %s4 = sld [smem:[#allocation0]]
  $region26: #{tpu_custom_call.1} parent=0
    _
  %s6 = ssub.s32 1, %s4
  %s7 = scalar_select 0, %s6, %s4
  $region1: #{tpu_custom_call.1} parent=0
    #allocation2 [shape = 'u8[450560]{0}', space=vmem, size = 0x6e000, scoped, tag = 'input window, operand 2, single buffered']
    #allocation3 [shape = 's32[1]{0}', space=sflag, size = 0x4, scoped, tag = 'scoped memory for tpu_custom_call.1']
    #allocation4 [shape = 's32[1]{0}', space=sflag, size = 0x4, scoped, tag = 'scoped memory for tpu_custom_call.1']
    #allocation5 [shape = 'u8[8192]{0}', space=vmem, size = 0x2000, scoped, tag = 'output window, operand 0, single buffered']
    %8 = vsyncpa [#allocation3], 0
    %9 = vsyncpa [#allocation4], 0
    // Predicated region
    $region2: #{tpu_custom_call.1} parent=1 // pred_check
      _
    $region3: #{tpu_custom_call.1} parent=1 // pred_check_branch
      %11 = sbr.rel (0) target = $region5
    $region4: #{tpu_custom_call.1} parent=1 // pred_region
      _
    $region5: #{tpu_custom_call.1} parent=1 // pred_fallthru
      _
    // Predicated region
    $region6: #{tpu_custom_call.1} parent=1 // pred_check
      _
    $region7: #{tpu_custom_call.1} parent=1 // pred_check_branch
      %13 = sbr.rel (0) target = $region9
    $region8: #{tpu_custom_call.1} parent=1 // pred_region
      _
    $region9: #{tpu_custom_call.1} parent=1 // pred_fallthru
      _
    // Predicated region
    $region10: #{tpu_custom_call.1} parent=1 // pred_check
      _
    $region11: #{tpu_custom_call.1} parent=1 // pred_check_branch
      %15 = sbr.rel (0) target = $region13
    $region12: #{tpu_custom_call.1} parent=1 // pred_region
      %s17 = ssub.s32 14080, 14080
      %18 = vsyncadd [#allocation3], %s17
      %s19 = sshll.u32 [#allocation2], 4
      %s20 = int_to_ptr.vmem [resolvable:$true] %s19
      %25 = dma.hbm_to_vmem [thread:$0]  %s2, 14080, %s20, [#allocation3], 128, 128, 8
    $region13: #{tpu_custom_call.1} parent=1 // pred_fallthru
      _
    // Predicated region
    $region14: #{tpu_custom_call.1} parent=1 // pred_check
      _
    $region15: #{tpu_custom_call.1} parent=1 // pred_check_branch
      %27 = sbr.rel (0) target = $region17
    $region16: #{tpu_custom_call.1} parent=1 // pred_region
      %28 = dma.done [#allocation3], 14080
    $region17: #{tpu_custom_call.1} parent=1 // pred_fallthru
      _
    %v29 = vld [vmem:[#allocation2 + $0x350] sm:$0xff]
    %v30 = vld [vmem:[#allocation2 + $0x358] sm:$0xff]
    %v31 = vld [vmem:[#allocation2 + $0x360] sm:$0xff]
    %v32 = vld [vmem:[#allocation2 + $0x368] sm:$0xff]
    %v33 = vld [vmem:[%s1] sm:$0xff]
    %v34 = vld [vmem:[%s1 + $0x8] sm:$0xff]
    %v35 = vld [vmem:[%s0] sm:$0xff]
    %v36 = vld [vmem:[%s0 + $0x8] sm:$0xff]
    %v37 = vld [vmem:[#allocation2] sm:$0xff]
    %v38 = vld [vmem:[#allocation2 + $0x8] sm:$0x1]
    %v39 = vlaneseq
    %v40 = vshrl.u32 %v39, 7
    %v41 = vsub.s32 0, %v40
    %v42 = vrot.slane %v38, %v41
    %vm43 = vcmask 64512
    %v45 = vsel %vm43, %v35, 0
    %v48 = vsel %vm43, %v36, 0
    %50 = vmatprep.subr.mxu0 0.0
    %51 = vmatpush1.msra.mxu0 %v37
    %52 = vmatprep.subr.mxu0 0.0
    %53 = vmatpush1.msra.mxu0 0.0
    %54 = vmatprep.subr.mxu0 0.0
    %55 = vmatpush1.msra.mxu0 0.0
    %56 = vmatprep.subr.mxu0 0.0
    %57 = vmatpush1.msra.mxu0 0.0
    %58 = vmatprep.subr.mxu0 0.0
    %59 = vmatpush1.msra.mxu0 0.0
    %60 = vmatprep.subr.mxu0 0.0
    %61 = vmatpush1.msra.mxu0 0.0
    %62 = vmatprep.subr.mxu0 0.0
    %63 = vmatpush1.msra.mxu0 0.0
    %64 = vmatprep.subr.mxu0 0.0
    %65 = vmatpush1.msra.mxu0 0.0
    %66 = vmatprep.subr.mxu0 0.0
    %67 = vmatpush1.msra.mxu0 0.0
    %68 = vmatprep.subr.mxu0 0.0
    %69 = vmatpush1.msra.mxu0 0.0
    %70 = vmatprep.subr.mxu0 0.0
    %71 = vmatpush1.msra.mxu0 0.0
    %72 = vmatprep.subr.mxu0 0.0
    %73 = vmatpush1.msra.mxu0 0.0
    %74 = vmatprep.subr.mxu0 0.0
    %75 = vmatpush1.msra.mxu0 0.0
    %76 = vmatprep.subr.mxu0 0.0
    %77 = vmatpush1.msra.mxu0 0.0
    %78 = vmatprep.subr.mxu0 0.0
    %79 = vmatpush1.msra.mxu0 0.0
    %80 = vmatprep.subr.mxu0 0.0
    %81 = vmatpush1.msra.mxu0 0.0
    %82 = vmatprep.subr.mxu0 0.0
    %83 = vmatpush1.msra.mxu0 0.0
    %84 = vmatprep.subr.mxu0 0.0
    %85 = vmatpush1.msra.mxu0 0.0
    %86 = vmatprep.subr.mxu0 0.0
    %87 = vmatpush1.msra.mxu0 0.0
    %88 = vmatprep.subr.mxu0 0.0
    %89 = vmatpush1.msra.mxu0 0.0
    %90 = vmatprep.subr.mxu0 0.0
    %91 = vmatpush1.msra.mxu0 0.0
    %92 = vmatprep.subr.mxu0 0.0
    %93 = vmatpush1.msra.mxu0 0.0
    %94 = vmatprep.subr.mxu0 0.0
    %95 = vmatpush1.msra.mxu0 0.0
    %96 = vmatprep.subr.mxu0 0.0
    %97 = vmatpush1.msra.mxu0 0.0
    %98 = vmatprep.subr.mxu0 0.0
    %99 = vmatpush1.msra.mxu0 0.0
    %100 = vmatprep.subr.mxu0 0.0
    %101 = vmatpush1.msra.mxu0 0.0
    %102 = vmatprep.subr.mxu0 0.0
    %103 = vmatpush1.msra.mxu0 0.0
    %104 = vmatprep.subr.mxu0 0.0
    %105 = vmatpush1.msra.mxu0 0.0
    %106 = vmatprep.subr.mxu0 0.0
    %107 = vmatpush1.msra.mxu0 0.0
    %108 = vmatprep.subr.mxu0 0.0
    %109 = vmatpush1.msra.mxu0 0.0
    %110 = vmatprep.subr.mxu0 0.0
    %111 = vmatpush1.msra.mxu0 0.0
    %112 = vmatprep.subr.mxu0 0.0
    %113 = vmatpush1.msra.mxu0 0.0
    %114 = vmatprep.mubr.f32.mxu0 0.0
    %115 = vmatmul.mubr.f32.gmra.mrb[0].mxu0 %v45
    %v116 = vpop.f32.mrb[0].mxu0
    %v117 = vadd.f32 %v42, %v116
    %v118 = vpop.f32.mrb[0].mxu0
    %119 = vmatprep.mubr.f32.mxu0 0.0
    %120 = vmatmul.mubr.f32.gmra.mrb[0].mxu0 %v48
    %v121 = vpop.f32.mrb[0].mxu0
    %v122 = vadd.f32 %v42, %v121
    %v123 = vpop.f32.mrb[0].mxu0
    %124 = vdwg.mxu0
    %v125 = vld [vmem:[#allocation2 + $0x10] sm:$0xff]
    %v126 = vld [vmem:[#allocation2 + $0x18] sm:$0xff]
    %v127 = vld [vmem:[#allocation2 + $0x20] sm:$0xff]
    %v128 = vld [vmem:[#allocation2 + $0x28] sm:$0xff]
    %v129 = vld [vmem:[#allocation2 + $0x30] sm:$0x1]
    %v130 = vlaneseq
    %v131 = vshrl.u32 %v130, 7
    %v132 = vsub.s32 0, %v131
    %v133 = vrot.slane %v129, %v132
    %vm134 = vcmask 261120
    %v136 = vsel %vm134, %v117, 0
    %v139 = vsel %vm134, %v122, 0
    %141 = vmatprep.subr.mxu0 0.0
    %142 = vmatpush1.msra.mxu0 %v125
    %143 = vmatprep.subr.mxu0 0.0
    %144 = vmatpush1.msra.mxu0 %v126
    %145 = vmatprep.subr.mxu0 0.0
    %146 = vmatpush1.msra.mxu0 %v127
    %147 = vmatprep.subr.mxu0 0.0
    %148 = vmatpush1.msra.mxu0 %v128
    %149 = vmatprep.subr.mxu0 0.0
    %150 = vmatpush1.msra.mxu0 0.0
    %151 = vmatprep.subr.mxu0 0.0
    %152 = vmatpush1.msra.mxu0 0.0
    %153 = vmatprep.subr.mxu0 0.0
    %154 = vmatpush1.msra.mxu0 0.0
    %155 = vmatprep.subr.mxu0 0.0
    %156 = vmatpush1.msra.mxu0 0.0
    %157 = vmatprep.subr.mxu0 0.0
    %158 = vmatpush1.msra.mxu0 0.0
    %159 = vmatprep.subr.mxu0 0.0
    %160 = vmatpush1.msra.mxu0 0.0
    %161 = vmatprep.subr.mxu0 0.0
    %162 = vmatpush1.msra.mxu0 0.0
    %163 = vmatprep.subr.mxu0 0.0
    %164 = vmatpush1.msra.mxu0 0.0
    %165 = vmatprep.subr.mxu0 0.0
    %166 = vmatpush1.msra.mxu0 0.0
    %167 = vmatprep.subr.mxu0 0.0
    %168 = vmatpush1.msra.mxu0 0.0
    %169 = vmatprep.subr.mxu0 0.0
    %170 = vmatpush1.msra.mxu0 0.0
    %171 = vmatprep.subr.mxu0 0.0
    %172 = vmatpush1.msra.mxu0 0.0
    %173 = vmatprep.subr.mxu0 0.0
    %174 = vmatpush1.msra.mxu0 0.0
    %175 = vmatprep.subr.mxu0 0.0
    %176 = vmatpush1.msra.mxu0 0.0
    %177 = vmatprep.subr.mxu0 0.0
    %178 = vmatpush1.msra.mxu0 0.0
    %179 = vmatprep.subr.mxu0 0.0
    %180 = vmatpush1.msra.mxu0 0.0
    %181 = vmatprep.subr.mxu0 0.0
    %182 = vmatpush1.msra.mxu0 0.0
    %183 = vmatprep.subr.mxu0 0.0
    %184 = vmatpush1.msra.mxu0 0.0
    %185 = vmatprep.subr.mxu0 0.0
    %186 = vmatpush1.msra.mxu0 0.0
    %187 = vmatprep.subr.mxu0 0.0
    %188 = vmatpush1.msra.mxu0 0.0
    %189 = vmatprep.subr.mxu0 0.0
    %190 = vmatpush1.msra.mxu0 0.0
    %191 = vmatprep.subr.mxu0 0.0
    %192 = vmatpush1.msra.mxu0 0.0
    %193 = vmatprep.subr.mxu0 0.0
    %194 = vmatpush1.msra.mxu0 0.0
    %195 = vmatprep.subr.mxu0 0.0
    %196 = vmatpush1.msra.mxu0 0.0
    %197 = vmatprep.subr.mxu0 0.0
    %198 = vmatpush1.msra.mxu0 0.0
    %199 = vmatprep.subr.mxu0 0.0
    %200 = vmatpush1.msra.mxu0 0.0
    %201 = vmatprep.subr.mxu0 0.0
    %202 = vmatpush1.msra.mxu0 0.0
    %203 = vmatprep.subr.mxu0 0.0
    %204 = vmatpush1.msra.mxu0 0.0
    %205 = vmatprep.mubr.f32.mxu0 0.0
    %206 = vmatmul.mubr.f32.gmra.mrb[0].mxu0 %v136
    %v207 = vpop.f32.mrb[0].mxu0
    %v208 = vadd.f32 %v133, %v207
    %v209 = vpop.f32.mrb[0].mxu0
    %210 = vmatprep.mubr.f32.mxu0 0.0
    %211 = vmatmul.mubr.f32.gmra.mrb[0].mxu0 %v139
    %v212 = vpop.f32.mrb[0].mxu0
    %v213 = vadd.f32 %v133, %v212
    %v214 = vpop.f32.mrb[0].mxu0
    %215 = vdwg.mxu0
    %v216 = vld [vmem:[#allocation2 + $0x38] sm:$0xff]
    %v217 = vld [vmem:[#allocation2 + $0x40] sm:$0xff]
    %v218 = vld [vmem:[#allocation2 + $0x48] sm:$0xff]
    %v219 = vld [vmem:[#allocation2 + $0x50] sm:$0xff]
    %v220 = vld [vmem:[#allocation2 + $0x58] sm:$0x1]
    %223 = vrot.lane.b32.xlu0 %v208, 96
    %v224 = vpop.permute.xlu0 %223
    %225 = vrot.lane.b32.xlu0 %v213, 96
    %v226 = vpop.permute.xlu0 %225
    %v227 = vsel %vm43, %v208, 0
    %v229 = vsel %vm43, %v213, 0
    %v231 = vsel %vm43, %v224, 0
    %v233 = vsel %vm43, %v226, 0
    %235 = vmatprep.subr.mxu0 0.0
    %236 = vmatpush1.xpose.msra.mxu0 %v231
    %237 = vmatprep.subr.mxu0 0.0
    %238 = vmatpush1.xpose.msra.mxu0 %v233
    %239 = vmatprep.subr.mxu0 0.0
    %240 = vmatpush1.xpose.msra.mxu0 0.0
    %241 = vmatprep.subr.mxu0 0.0
    %242 = vmatpush1.xpose.msra.mxu0 0.0
    %243 = vmatprep.subr.mxu0 0.0
    %244 = vmatpush1.xpose.msra.mxu0 0.0
    %245 = vmatprep.subr.mxu0 0.0
    %246 = vmatpush1.xpose.msra.mxu0 0.0
    %247 = vmatprep.subr.mxu0 0.0
    %248 = vmatpush1.xpose.msra.mxu0 0.0
    %249 = vmatprep.subr.mxu0 0.0
    %250 = vmatpush1.xpose.msra.mxu0 0.0
    %251 = vmatprep.subr.mxu0 0.0
    %252 = vmatpush1.xpose.msra.mxu0 0.0
    %253 = vmatprep.subr.mxu0 0.0
    %254 = vmatpush1.xpose.msra.mxu0 0.0
    %255 = vmatprep.subr.mxu0 0.0
    %256 = vmatpush1.xpose.msra.mxu0 0.0
    %257 = vmatprep.subr.mxu0 0.0
    %258 = vmatpush1.xpose.msra.mxu0 0.0
    %259 = vmatprep.subr.mxu0 0.0
    %260 = vmatpush1.xpose.msra.mxu0 0.0
    %261 = vmatprep.subr.mxu0 0.0
    %262 = vmatpush1.xpose.msra.mxu0 0.0
    %263 = vmatprep.subr.mxu0 0.0
    %264 = vmatpush1.xpose.msra.mxu0 0.0
    %265 = vmatprep.subr.mxu0 0.0
    %266 = vmatpush1.xpose.msra.mxu0 0.0
    %267 = vmatprep.subr.mxu0 0.0
    %268 = vmatpush1.xpose.msra.mxu0 0.0
    %269 = vmatprep.subr.mxu0 0.0
    %270 = vmatpush1.xpose.msra.mxu0 0.0
    %271 = vmatprep.subr.mxu0 0.0
    %272 = vmatpush1.xpose.msra.mxu0 0.0
    %273 = vmatprep.subr.mxu0 0.0
    %274 = vmatpush1.xpose.msra.mxu0 0.0
    %275 = vmatprep.subr.mxu0 0.0
    %276 = vmatpush1.xpose.msra.mxu0 0.0
    %277 = vmatprep.subr.mxu0 0.0
    %278 = vmatpush1.xpose.msra.mxu0 0.0
    %279 = vmatprep.subr.mxu0 0.0
    %280 = vmatpush1.xpose.msra.mxu0 0.0
    %281 = vmatprep.subr.mxu0 0.0
    %282 = vmatpush1.xpose.msra.mxu0 0.0
    %283 = vmatprep.subr.mxu0 0.0
    %284 = vmatpush1.xpose.msra.mxu0 0.0
    %285 = vmatprep.subr.mxu0 0.0
    %286 = vmatpush1.xpose.msra.mxu0 0.0
    %287 = vmatprep.subr.mxu0 0.0
    %288 = vmatpush1.xpose.msra.mxu0 0.0
    %289 = vmatprep.subr.mxu0 0.0
    %290 = vmatpush1.xpose.msra.mxu0 0.0
    %291 = vmatprep.subr.mxu0 0.0
    %292 = vmatpush1.xpose.msra.mxu0 0.0
    %293 = vmatprep.subr.mxu0 0.0
    %294 = vmatpush1.xpose.msra.mxu0 0.0
    %295 = vmatprep.subr.mxu0 0.0
    %296 = vmatpush1.xpose.msra.mxu0 0.0
    %297 = vmatprep.subr.mxu0 0.0
    %298 = vmatpush1.xpose.msra.mxu0 0.0
    %299 = vmatprep.mubr.f32.mxu0 0.0
    %300 = vmatmul.mubr.f32.gmra.mrb[0].mxu0 %v227
    %v301 = vpop.f32.mrb[0].mxu0
    %v302 = vadd.f32 0.0, %v301
    %v303 = vpop.f32.mrb[0].mxu0
    %304 = vmatprep.mubr.f32.mxu0 0.0
    %305 = vmatmul.mubr.f32.gmra.mrb[0].mxu0 %v229
    %v306 = vpop.f32.mrb[0].mxu0
    %v307 = vadd.f32 0.0, %v306
    %v308 = vpop.f32.mrb[0].mxu0
    %309 = vdwg.mxu0
    %v310 = vmul.f32 %v302, 0.35355338
    %v311 = vmul.f32 %v307, 0.35355338
    %v312 = vadd.f32 %v310, %v29
    %v313 = vadd.f32 %v311, %v30
    %vm314 = vcmask 130048
    %v315 = vsel %vm314, %v312, -inf
    %316 = vmax.xlane.f32.xlu0 %v315
    %v317 = vpop.xlane.xlu0 %316
    %v318 = vsel %vm314, %v313, -inf
    %319 = vmax.xlane.f32.xlu0 %v318
    %v320 = vpop.xlane.xlu0 %319
    %v321 = vsub.f32 %v312, %v317
    %v322 = vsub.f32 %v313, %v320
    %v323 = vmul.f32 %v321, 1.442695
    %v324 = vpow.pop %v323
    %v325 = vmul.f32 %v322, 1.442695
    %v326 = vpow.pop %v325
    %v327 = vsel %vm314, %v324, 0.0
    %328 = vadd.xlane.f32.xlu0 %v327
    %v329 = vpop.xlane.xlu0 %328
    %v330 = vsel %vm314, %v326, 0.0
    %331 = vadd.xlane.f32.xlu0 %v330
    %v332 = vpop.xlane.xlu0 %331
    %v333 = vrcp.pop %v329
    %v334 = vrcp.pop %v332
    %v335 = vmul.f32 %v324, %v333
    %v336 = vmul.f32 %v326, %v334
    %337 = vrot.lane.b32.xlu0 %v208, 64
    %v338 = vpop.permute.xlu0 %337
    %339 = vrot.lane.b32.xlu0 %v213, 64
    %v340 = vpop.permute.xlu0 %339
    %v344 = vsel %vm314, %v335, 0
    %v347 = vsel %vm314, %v336, 0
    %349 = vmatprep.subr.mxu0 0.0
    %350 = vmatpush1.msra.mxu0 %v338
    %351 = vmatprep.subr.mxu0 0.0
    %352 = vmatpush1.msra.mxu0 %v340
    %353 = vmatprep.subr.mxu0 0.0
    %354 = vmatpush1.msra.mxu0 0.0
    %355 = vmatprep.subr.mxu0 0.0
    %356 = vmatpush1.msra.mxu0 0.0
    %357 = vmatprep.subr.mxu0 0.0
    %358 = vmatpush1.msra.mxu0 0.0
    %359 = vmatprep.subr.mxu0 0.0
    %360 = vmatpush1.msra.mxu0 0.0
    %361 = vmatprep.subr.mxu0 0.0
    %362 = vmatpush1.msra.mxu0 0.0
    %363 = vmatprep.subr.mxu0 0.0
    %364 = vmatpush1.msra.mxu0 0.0
    %365 = vmatprep.subr.mxu0 0.0
    %366 = vmatpush1.msra.mxu0 0.0
    %367 = vmatprep.subr.mxu0 0.0
    %368 = vmatpush1.msra.mxu0 0.0
    %369 = vmatprep.subr.mxu0 0.0
    %370 = vmatpush1.msra.mxu0 0.0
    %371 = vmatprep.subr.mxu0 0.0
    %372 = vmatpush1.msra.mxu0 0.0
    %373 = vmatprep.subr.mxu0 0.0
    %374 = vmatpush1.msra.mxu0 0.0
    %375 = vmatprep.subr.mxu0 0.0
    %376 = vmatpush1.msra.mxu0 0.0
    %377 = vmatprep.subr.mxu0 0.0
    %378 = vmatpush1.msra.mxu0 0.0
    %379 = vmatprep.subr.mxu0 0.0
    %380 = vmatpush1.msra.mxu0 0.0
    %381 = vmatprep.subr.mxu0 0.0
    %382 = vmatpush1.msra.mxu0 0.0
    %383 = vmatprep.subr.mxu0 0.0
    %384 = vmatpush1.msra.mxu0 0.0
    %385 = vmatprep.subr.mxu0 0.0
    %386 = vmatpush1.msra.mxu0 0.0
    %387 = vmatprep.subr.mxu0 0.0
    %388 = vmatpush1.msra.mxu0 0.0
    %389 = vmatprep.subr.mxu0 0.0
    %390 = vmatpush1.msra.mxu0 0.0
    %391 = vmatprep.subr.mxu0 0.0
    %392 = vmatpush1.msra.mxu0 0.0
    %393 = vmatprep.subr.mxu0 0.0
    %394 = vmatpush1.msra.mxu0 0.0
    %395 = vmatprep.subr.mxu0 0.0
    %396 = vmatpush1.msra.mxu0 0.0
    %397 = vmatprep.subr.mxu0 0.0
    %398 = vmatpush1.msra.mxu0 0.0
    %399 = vmatprep.subr.mxu0 0.0
    %400 = vmatpush1.msra.mxu0 0.0
    %401 = vmatprep.subr.mxu0 0.0
    %402 = vmatpush1.msra.mxu0 0.0
    %403 = vmatprep.subr.mxu0 0.0
    %404 = vmatpush1.msra.mxu0 0.0
    %405 = vmatprep.subr.mxu0 0.0
    %406 = vmatpush1.msra.mxu0 0.0
    %407 = vmatprep.subr.mxu0 0.0
    %408 = vmatpush1.msra.mxu0 0.0
    %409 = vmatprep.subr.mxu0 0.0
    %410 = vmatpush1.msra.mxu0 0.0
    %411 = vmatprep.subr.mxu0 0.0
    %412 = vmatpush1.msra.mxu0 0.0
    %413 = vmatprep.mubr.f32.mxu0 0.0
    %414 = vmatmul.mubr.f32.gmra.mrb[0].mxu0 %v344
    %v415 = vpop.f32.mrb[0].mxu0
    %v416 = vadd.f32 0.0, %v415
    %v417 = vpop.f32.mrb[0].mxu0
    %418 = vmatprep.mubr.f32.mxu0 0.0
    %419 = vmatmul.mubr.f32.gmra.mrb[0].mxu0 %v347
    %v420 = vpop.f32.mrb[0].mxu0
    %v421 = vadd.f32 0.0, %v420
    %v422 = vpop.f32.mrb[0].mxu0
    %423 = vdwg.mxu0
    %424 = vrot.lane.b32.xlu0 %v208, 120
    %v425 = vpop.permute.xlu0 %424
    %426 = vrot.lane.b32.xlu0 %v213, 120
    %v427 = vpop.permute.xlu0 %426
    %428 = vrot.lane.b32.xlu0 %v208, 88
    %v429 = vpop.permute.xlu0 %428
    %430 = vrot.lane.b32.xlu0 %v213, 88
    %v431 = vpop.permute.xlu0 %430
    %v432 = vsel %vm43, %v425, 0
    %v434 = vsel %vm43, %v427, 0
    %v436 = vsel %vm43, %v429, 0
    %v438 = vsel %vm43, %v431, 0
    %440 = vmatprep.subr.mxu0 0.0
    %441 = vmatpush1.xpose.msra.mxu0 %v436
    %442 = vmatprep.subr.mxu0 0.0
    %443 = vmatpush1.xpose.msra.mxu0 %v438
    %444 = vmatprep.subr.mxu0 0.0
    %445 = vmatpush1.xpose.msra.mxu0 0.0
    %446 = vmatprep.subr.mxu0 0.0
    %447 = vmatpush1.xpose.msra.mxu0 0.0
    %448 = vmatprep.subr.mxu0 0.0
    %449 = vmatpush1.xpose.msra.mxu0 0.0
    %450 = vmatprep.subr.mxu0 0.0
    %451 = vmatpush1.xpose.msra.mxu0 0.0
    %452 = vmatprep.subr.mxu0 0.0
    %453 = vmatpush1.xpose.msra.mxu0 0.0
    %454 = vmatprep.subr.mxu0 0.0
    %455 = vmatpush1.xpose.msra.mxu0 0.0
    %456 = vmatprep.subr.mxu0 0.0
    %457 = vmatpush1.xpose.msra.mxu0 0.0
    %458 = vmatprep.subr.mxu0 0.0
    %459 = vmatpush1.xpose.msra.mxu0 0.0
    %460 = vmatprep.subr.mxu0 0.0
    %461 = vmatpush1.xpose.msra.mxu0 0.0
    %462 = vmatprep.subr.mxu0 0.0
    %463 = vmatpush1.xpose.msra.mxu0 0.0
    %464 = vmatprep.subr.mxu0 0.0
    %465 = vmatpush1.xpose.msra.mxu0 0.0
    %466 = vmatprep.subr.mxu0 0.0
    %467 = vmatpush1.xpose.msra.mxu0 0.0
    %468 = vmatprep.subr.mxu0 0.0
    %469 = vmatpush1.xpose.msra.mxu0 0.0
    %470 = vmatprep.subr.mxu0 0.0
    %471 = vmatpush1.xpose.msra.mxu0 0.0
    %472 = vmatprep.subr.mxu0 0.0
    %473 = vmatpush1.xpose.msra.mxu0 0.0
    %474 = vmatprep.subr.mxu0 0.0
    %475 = vmatpush1.xpose.msra.mxu0 0.0
    %476 = vmatprep.subr.mxu0 0.0
    %477 = vmatpush1.xpose.msra.mxu0 0.0
    %478 = vmatprep.subr.mxu0 0.0
    %479 = vmatpush1.xpose.msra.mxu0 0.0
    %480 = vmatprep.subr.mxu0 0.0
    %481 = vmatpush1.xpose.msra.mxu0 0.0
    %482 = vmatprep.subr.mxu0 0.0
    %483 = vmatpush1.xpose.msra.mxu0 0.0
    %484 = vmatprep.subr.mxu0 0.0
    %485 = vmatpush1.xpose.msra.mxu0 0.0
    %486 = vmatprep.subr.mxu0 0.0
    %487 = vmatpush1.xpose.msra.mxu0 0.0
    %488 = vmatprep.subr.mxu0 0.0
    %489 = vmatpush1.xpose.msra.mxu0 0.0
    %490 = vmatprep.subr.mxu0 0.0
    %491 = vmatpush1.xpose.msra.mxu0 0.0
    %492 = vmatprep.subr.mxu0 0.0
    %493 = vmatpush1.xpose.msra.mxu0 0.0
    %494 = vmatprep.subr.mxu0 0.0
    %495 = vmatpush1.xpose.msra.mxu0 0.0
    %496 = vmatprep.subr.mxu0 0.0
    %497 = vmatpush1.xpose.msra.mxu0 0.0
    %498 = vmatprep.subr.mxu0 0.0
    %499 = vmatpush1.xpose.msra.mxu0 0.0
    %500 = vmatprep.subr.mxu0 0.0
    %501 = vmatpush1.xpose.msra.mxu0 0.0
    %502 = vmatprep.subr.mxu0 0.0
    %503 = vmatpush1.xpose.msra.mxu0 0.0
    %504 = vmatprep.mubr.f32.mxu0 0.0
    %505 = vmatmul.mubr.f32.gmra.mrb[0].mxu0 %v432
    %v506 = vpop.f32.mrb[0].mxu0
    %v507 = vadd.f32 0.0, %v506
    %v508 = vpop.f32.mrb[0].mxu0
    %509 = vmatprep.mubr.f32.mxu0 0.0
    %510 = vmatmul.mubr.f32.gmra.mrb[0].mxu0 %v434
    %v511 = vpop.f32.mrb[0].mxu0
    %v512 = vadd.f32 0.0, %v511
    %v513 = vpop.f32.mrb[0].mxu0
    %514 = vdwg.mxu0
    %v515 = vmul.f32 %v507, 0.35355338
    %v516 = vmul.f32 %v512, 0.35355338
    %v517 = vadd.f32 %v515, %v29
    %v518 = vadd.f32 %v516, %v30
    %v519 = vsel %vm314, %v517, -inf
    %520 = vmax.xlane.f32.xlu0 %v519
    %v521 = vpop.xlane.xlu0 %520
    %v522 = vsel %vm314, %v518, -inf
    %523 = vmax.xlane.f32.xlu0 %v522
    %v524 = vpop.xlane.xlu0 %523
    %v525 = vsub.f32 %v517, %v521
    %v526 = vsub.f32 %v518, %v524
    %v527 = vmul.f32 %v525, 1.442695
    %v528 = vpow.pop %v527
    %v529 = vmul.f32 %v526, 1.442695
    %v530 = vpow.pop %v529
    %v531 = vsel %vm314, %v528, 0.0
    %532 = vadd.xlane.f32.xlu0 %v531
    %v533 = vpop.xlane.xlu0 %532
    %v534 = vsel %vm314, %v530, 0.0
    %535 = vadd.xlane.f32.xlu0 %v534
    %v536 = vpop.xlane.xlu0 %535
    %v537 = vrcp.pop %v533
    %v538 = vrcp.pop %v536
    %v539 = vmul.f32 %v528, %v537
    %v540 = vmul.f32 %v530, %v538
    %541 = vrot.lane.b32.xlu0 %v208, 56
    %v542 = vpop.permute.xlu0 %541
    %543 = vrot.lane.b32.xlu0 %v213, 56
    %v544 = vpop.permute.xlu0 %543
    %v548 = vsel %vm314, %v539, 0
    %v551 = vsel %vm314, %v540, 0
    %553 = vmatprep.subr.mxu0 0.0
    %554 = vmatpush1.msra.mxu0 %v542
    %555 = vmatprep.subr.mxu0 0.0
    %556 = vmatpush1.msra.mxu0 %v544
    %557 = vmatprep.subr.mxu0 0.0
    %558 = vmatpush1.msra.mxu0 0.0
    %559 = vmatprep.subr.mxu0 0.0
    %560 = vmatpush1.msra.mxu0 0.0
    %561 = vmatprep.subr.mxu0 0.0
    %562 = vmatpush1.msra.mxu0 0.0
    %563 = vmatprep.subr.mxu0 0.0
    %564 = vmatpush1.msra.mxu0 0.0
    %565 = vmatprep.subr.mxu0 0.0
    %566 = vmatpush1.msra.mxu0 0.0
    %567 = vmatprep.subr.mxu0 0.0
    %568 = vmatpush1.msra.mxu0 0.0
    %569 = vmatprep.subr.mxu0 0.0
    %570 = vmatpush1.msra.mxu0 0.0
    %571 = vmatprep.subr.mxu0 0.0
    %572 = vmatpush1.msra.mxu0 0.0
    %573 = vmatprep.subr.mxu0 0.0
    %574 = vmatpush1.msra.mxu0 0.0
    %575 = vmatprep.subr.mxu0 0.0
    %576 = vmatpush1.msra.mxu0 0.0
    %577 = vmatprep.subr.mxu0 0.0
    %578 = vmatpush1.msra.mxu0 0.0
    %579 = vmatprep.subr.mxu0 0.0
    %580 = vmatpush1.msra.mxu0 0.0
    %581 = vmatprep.subr.mxu0 0.0
    %582 = vmatpush1.msra.mxu0 0.0
    %583 = vmatprep.subr.mxu0 0.0
    %584 = vmatpush1.msra.mxu0 0.0
    %585 = vmatprep.subr.mxu0 0.0
    %586 = vmatpush1.msra.mxu0 0.0
    %587 = vmatprep.subr.mxu0 0.0
    %588 = vmatpush1.msra.mxu0 0.0
    %589 = vmatprep.subr.mxu0 0.0
    %590 = vmatpush1.msra.mxu0 0.0
    %591 = vmatprep.subr.mxu0 0.0
    %592 = vmatpush1.msra.mxu0 0.0
    %593 = vmatprep.subr.mxu0 0.0
    %594 = vmatpush1.msra.mxu0 0.0
    %595 = vmatprep.subr.mxu0 0.0
    %596 = vmatpush1.msra.mxu0 0.0
    %597 = vmatprep.subr.mxu0 0.0
    %598 = vmatpush1.msra.mxu0 0.0
    %599 = vmatprep.subr.mxu0 0.0
    %600 = vmatpush1.msra.mxu0 0.0
    %601 = vmatprep.subr.mxu0 0.0
    %602 = vmatpush1.msra.mxu0 0.0
    %603 = vmatprep.subr.mxu0 0.0
    %604 = vmatpush1.msra.mxu0 0.0
    %605 = vmatprep.subr.mxu0 0.0
    %606 = vmatpush1.msra.mxu0 0.0
    %607 = vmatprep.subr.mxu0 0.0
    %608 = vmatpush1.msra.mxu0 0.0
    %609 = vmatprep.subr.mxu0 0.0
    %610 = vmatpush1.msra.mxu0 0.0
    %611 = vmatprep.subr.mxu0 0.0
    %612 = vmatpush1.msra.mxu0 0.0
    %613 = vmatprep.subr.mxu0 0.0
    %614 = vmatpush1.msra.mxu0 0.0
    %615 = vmatprep.subr.mxu0 0.0
    %616 = vmatpush1.msra.mxu0 0.0
    %617 = vmatprep.mubr.f32.mxu0 0.0
    %618 = vmatmul.mubr.f32.gmra.mrb[0].mxu0 %v548
    %v619 = vpop.f32.mrb[0].mxu0
    %v620 = vadd.f32 0.0, %v619
    %v621 = vpop.f32.mrb[0].mxu0
    %622 = vmatprep.mubr.f32.mxu0 0.0
    %623 = vmatmul.mubr.f32.gmra.mrb[0].mxu0 %v551
    %v624 = vpop.f32.mrb[0].mxu0
    %v625 = vadd.f32 0.0, %v624
    %v626 = vpop.f32.mrb[0].mxu0
    %627 = vdwg.mxu0
    %628 = vrot.lane.b32.xlu0 %v208, 112
    %v629 = vpop.permute.xlu0 %628
    %630 = vrot.lane.b32.xlu0 %v213, 112
    %v631 = vpop.permute.xlu0 %630
    %632 = vrot.lane.b32.xlu0 %v208, 80
    %v633 = vpop.permute.xlu0 %632
    %634 = vrot.lane.b32.xlu0 %v213, 80
    %v635 = vpop.permute.xlu0 %634
    %v636 = vsel %vm43, %v629, 0
    %v638 = vsel %vm43, %v631, 0
    %v640 = vsel %vm43, %v633, 0
    %v642 = vsel %vm43, %v635, 0
    %644 = vmatprep.subr.mxu0 0.0
    %645 = vmatpush1.xpose.msra.mxu0 %v640
    %646 = vmatprep.subr.mxu0 0.0
    %647 = vmatpush1.xpose.msra.mxu0 %v642
    %648 = vmatprep.subr.mxu0 0.0
    %649 = vmatpush1.xpose.msra.mxu0 0.0
    %650 = vmatprep.subr.mxu0 0.0
    %651 = vmatpush1.xpose.msra.mxu0 0.0
    %652 = vmatprep.subr.mxu0 0.0
    %653 = vmatpush1.xpose.msra.mxu0 0.0
    %654 = vmatprep.subr.mxu0 0.0
    %655 = vmatpush1.xpose.msra.mxu0 0.0
    %656 = vmatprep.subr.mxu0 0.0
    %657 = vmatpush1.xpose.msra.mxu0 0.0
    %658 = vmatprep.subr.mxu0 0.0
    %659 = vmatpush1.xpose.msra.mxu0 0.0
    %660 = vmatprep.subr.mxu0 0.0
    %661 = vmatpush1.xpose.msra.mxu0 0.0
    %662 = vmatprep.subr.mxu0 0.0
    %663 = vmatpush1.xpose.msra.mxu0 0.0
    %664 = vmatprep.subr.mxu0 0.0
    %665 = vmatpush1.xpose.msra.mxu0 0.0
    %666 = vmatprep.subr.mxu0 0.0
    %667 = vmatpush1.xpose.msra.mxu0 0.0
    %668 = vmatprep.subr.mxu0 0.0
    %669 = vmatpush1.xpose.msra.mxu0 0.0
    %670 = vmatprep.subr.mxu0 0.0
    %671 = vmatpush1.xpose.msra.mxu0 0.0
    %672 = vmatprep.subr.mxu0 0.0
    %673 = vmatpush1.xpose.msra.mxu0 0.0
    %674 = vmatprep.subr.mxu0 0.0
    %675 = vmatpush1.xpose.msra.mxu0 0.0
    %676 = vmatprep.subr.mxu0 0.0
    %677 = vmatpush1.xpose.msra.mxu0 0.0
    %678 = vmatprep.subr.mxu0 0.0
    %679 = vmatpush1.xpose.msra.mxu0 0.0
    %680 = vmatprep.subr.mxu0 0.0
    %681 = vmatpush1.xpose.msra.mxu0 0.0
    %682 = vmatprep.subr.mxu0 0.0
    %683 = vmatpush1.xpose.msra.mxu0 0.0
    %684 = vmatprep.subr.mxu0 0.0
    %685 = vmatpush1.xpose.msra.mxu0 0.0
    %686 = vmatprep.subr.mxu0 0.0
    %687 = vmatpush1.xpose.msra.mxu0 0.0
    %688 = vmatprep.subr.mxu0 0.0
    %689 = vmatpush1.xpose.msra.mxu0 0.0
    %690 = vmatprep.subr.mxu0 0.0
    %691 = vmatpush1.xpose.msra.mxu0 0.0
    %692 = vmatprep.subr.mxu0 0.0
    %693 = vmatpush1.xpose.msra.mxu0 0.0
    %694 = vmatprep.subr.mxu0 0.0
    %695 = vmatpush1.xpose.msra.mxu0 0.0
    %696 = vmatprep.subr.mxu0 0.0
    %697 = vmatpush1.xpose.msra.mxu0 0.0
    %698 = vmatprep.subr.mxu0 0.0
    %699 = vmatpush1.xpose.msra.mxu0 0.0
    %700 = vmatprep.subr.mxu0 0.0
    %701 = vmatpush1.xpose.msra.mxu0 0.0
    %702 = vmatprep.subr.mxu0 0.0
    %703 = vmatpush1.xpose.msra.mxu0 0.0
    %704 = vmatprep.subr.mxu0 0.0
    %705 = vmatpush1.xpose.msra.mxu0 0.0
    %706 = vmatprep.subr.mxu0 0.0
    %707 = vmatpush1.xpose.msra.mxu0 0.0
    %708 = vmatprep.mubr.f32.mxu0 0.0
    %709 = vmatmul.mubr.f32.gmra.mrb[0].mxu0 %v636
    %v710 = vpop.f32.mrb[0].mxu0
    %v711 = vadd.f32 0.0, %v710
    %v712 = vpop.f32.mrb[0].mxu0
    %713 = vmatprep.mubr.f32.mxu0 0.0
    %714 = vmatmul.mubr.f32.gmra.mrb[0].mxu0 %v638
    %v715 = vpop.f32.mrb[0].mxu0
    %v716 = vadd.f32 0.0, %v715
    %v717 = vpop.f32.mrb[0].mxu0
    %718 = vdwg.mxu0
    %v719 = vmul.f32 %v711, 0.35355338
    %v720 = vmul.f32 %v716, 0.35355338
    %v721 = vadd.f32 %v719, %v29
    %v722 = vadd.f32 %v720, %v30
    %v723 = vsel %vm314, %v721, -inf
    %724 = vmax.xlane.f32.xlu0 %v723
    %v725 = vpop.xlane.xlu0 %724
    %v726 = vsel %vm314, %v722, -inf
    %727 = vmax.xlane.f32.xlu0 %v726
    %v728 = vpop.xlane.xlu0 %727
    %v729 = vsub.f32 %v721, %v725
    %v730 = vsub.f32 %v722, %v728
    %v731 = vmul.f32 %v729, 1.442695
    %v732 = vpow.pop %v731
    %v733 = vmul.f32 %v730, 1.442695
    %v734 = vpow.pop %v733
    %v735 = vsel %vm314, %v732, 0.0
    %736 = vadd.xlane.f32.xlu0 %v735
    %v737 = vpop.xlane.xlu0 %736
    %v738 = vsel %vm314, %v734, 0.0
    %739 = vadd.xlane.f32.xlu0 %v738
    %v740 = vpop.xlane.xlu0 %739
    %v741 = vrcp.pop %v737
    %v742 = vrcp.pop %v740
    %v743 = vmul.f32 %v732, %v741
    %v744 = vmul.f32 %v734, %v742
    %745 = vrot.lane.b32.xlu0 %v208, 48
    %v746 = vpop.permute.xlu0 %745
    %747 = vrot.lane.b32.xlu0 %v213, 48
    %v748 = vpop.permute.xlu0 %747
    %v752 = vsel %vm314, %v743, 0
    %v755 = vsel %vm314, %v744, 0
    %757 = vmatprep.subr.mxu0 0.0
    %758 = vmatpush1.msra.mxu0 %v746
    %759 = vmatprep.subr.mxu0 0.0
    %760 = vmatpush1.msra.mxu0 %v748
    %761 = vmatprep.subr.mxu0 0.0
    %762 = vmatpush1.msra.mxu0 0.0
    %763 = vmatprep.subr.mxu0 0.0
    %764 = vmatpush1.msra.mxu0 0.0
    %765 = vmatprep.subr.mxu0 0.0
    %766 = vmatpush1.msra.mxu0 0.0
    %767 = vmatprep.subr.mxu0 0.0
    %768 = vmatpush1.msra.mxu0 0.0
    %769 = vmatprep.subr.mxu0 0.0
    %770 = vmatpush1.msra.mxu0 0.0
    %771 = vmatprep.subr.mxu0 0.0
    %772 = vmatpush1.msra.mxu0 0.0
    %773 = vmatprep.subr.mxu0 0.0
    %774 = vmatpush1.msra.mxu0 0.0
    %775 = vmatprep.subr.mxu0 0.0
    %776 = vmatpush1.msra.mxu0 0.0
    %777 = vmatprep.subr.mxu0 0.0
    %778 = vmatpush1.msra.mxu0 0.0
    %779 = vmatprep.subr.mxu0 0.0
    %780 = vmatpush1.msra.mxu0 0.0
    %781 = vmatprep.subr.mxu0 0.0
    %782 = vmatpush1.msra.mxu0 0.0
    %783 = vmatprep.subr.mxu0 0.0
    %784 = vmatpush1.msra.mxu0 0.0
    %785 = vmatprep.subr.mxu0 0.0
    %786 = vmatpush1.msra.mxu0 0.0
    %787 = vmatprep.subr.mxu0 0.0
    %788 = vmatpush1.msra.mxu0 0.0
    %789 = vmatprep.subr.mxu0 0.0
    %790 = vmatpush1.msra.mxu0 0.0
    %791 = vmatprep.subr.mxu0 0.0
    %792 = vmatpush1.msra.mxu0 0.0
    %793 = vmatprep.subr.mxu0 0.0
    %794 = vmatpush1.msra.mxu0 0.0
    %795 = vmatprep.subr.mxu0 0.0
    %796 = vmatpush1.msra.mxu0 0.0
    %797 = vmatprep.subr.mxu0 0.0
    %798 = vmatpush1.msra.mxu0 0.0
    %799 = vmatprep.subr.mxu0 0.0
    %800 = vmatpush1.msra.mxu0 0.0
    %801 = vmatprep.subr.mxu0 0.0
    %802 = vmatpush1.msra.mxu0 0.0
    %803 = vmatprep.subr.mxu0 0.0
    %804 = vmatpush1.msra.mxu0 0.0
    %805 = vmatprep.subr.mxu0 0.0
    %806 = vmatpush1.msra.mxu0 0.0
    %807 = vmatprep.subr.mxu0 0.0
    %808 = vmatpush1.msra.mxu0 0.0
    %809 = vmatprep.subr.mxu0 0.0
    %810 = vmatpush1.msra.mxu0 0.0
    %811 = vmatprep.subr.mxu0 0.0
    %812 = vmatpush1.msra.mxu0 0.0
    %813 = vmatprep.subr.mxu0 0.0
    %814 = vmatpush1.msra.mxu0 0.0
    %815 = vmatprep.subr.mxu0 0.0
    %816 = vmatpush1.msra.mxu0 0.0
    %817 = vmatprep.subr.mxu0 0.0
    %818 = vmatpush1.msra.mxu0 0.0
    %819 = vmatprep.subr.mxu0 0.0
    %820 = vmatpush1.msra.mxu0 0.0
    %821 = vmatprep.mubr.f32.mxu0 0.0
    %822 = vmatmul.mubr.f32.gmra.mrb[0].mxu0 %v752
    %v823 = vpop.f32.mrb[0].mxu0
    %v824 = vadd.f32 0.0, %v823
    %v825 = vpop.f32.mrb[0].mxu0
    %826 = vmatprep.mubr.f32.mxu0 0.0
    %827 = vmatmul.mubr.f32.gmra.mrb[0].mxu0 %v755
    %v828 = vpop.f32.mrb[0].mxu0
    %v829 = vadd.f32 0.0, %v828
    %v830 = vpop.f32.mrb[0].mxu0
    %831 = vdwg.mxu0
    %832 = vrot.lane.b32.xlu0 %v208, 104
    %v833 = vpop.permute.xlu0 %832
    %834 = vrot.lane.b32.xlu0 %v213, 104
    %v835 = vpop.permute.xlu0 %834
    %836 = vrot.lane.b32.xlu0 %v208, 72
    %v837 = vpop.permute.xlu0 %836
    %838 = vrot.lane.b32.xlu0 %v213, 72
    %v839 = vpop.permute.xlu0 %838
    %v840 = vsel %vm43, %v833, 0
    %v842 = vsel %vm43, %v835, 0
    %v844 = vsel %vm43, %v837, 0
    %v846 = vsel %vm43, %v839, 0
    %848 = vmatprep.subr.mxu0 0.0
    %849 = vmatpush1.xpose.msra.mxu0 %v844
    %850 = vmatprep.subr.mxu0 0.0
    %851 = vmatpush1.xpose.msra.mxu0 %v846
    %852 = vmatprep.subr.mxu0 0.0
    %853 = vmatpush1.xpose.msra.mxu0 0.0
    %854 = vmatprep.subr.mxu0 0.0
    %855 = vmatpush1.xpose.msra.mxu0 0.0
    %856 = vmatprep.subr.mxu0 0.0
    %857 = vmatpush1.xpose.msra.mxu0 0.0
    %858 = vmatprep.subr.mxu0 0.0
    %859 = vmatpush1.xpose.msra.mxu0 0.0
    %860 = vmatprep.subr.mxu0 0.0
    %861 = vmatpush1.xpose.msra.mxu0 0.0
    %862 = vmatprep.subr.mxu0 0.0
    %863 = vmatpush1.xpose.msra.mxu0 0.0
    %864 = vmatprep.subr.mxu0 0.0
    %865 = vmatpush1.xpose.msra.mxu0 0.0
    %866 = vmatprep.subr.mxu0 0.0
    %867 = vmatpush1.xpose.msra.mxu0 0.0
    %868 = vmatprep.subr.mxu0 0.0
    %869 = vmatpush1.xpose.msra.mxu0 0.0
    %870 = vmatprep.subr.mxu0 0.0
    %871 = vmatpush1.xpose.msra.mxu0 0.0
    %872 = vmatprep.subr.mxu0 0.0
    %873 = vmatpush1.xpose.msra.mxu0 0.0
    %874 = vmatprep.subr.mxu0 0.0
    %875 = vmatpush1.xpose.msra.mxu0 0.0
    %876 = vmatprep.subr.mxu0 0.0
    %877 = vmatpush1.xpose.msra.mxu0 0.0
    %878 = vmatprep.subr.mxu0 0.0
    %879 = vmatpush1.xpose.msra.mxu0 0.0
    %880 = vmatprep.subr.mxu0 0.0
    %881 = vmatpush1.xpose.msra.mxu0 0.0
    %882 = vmatprep.subr.mxu0 0.0
    %883 = vmatpush1.xpose.msra.mxu0 0.0
    %884 = vmatprep.subr.mxu0 0.0
    %885 = vmatpush1.xpose.msra.mxu0 0.0
    %886 = vmatprep.subr.mxu0 0.0
    %887 = vmatpush1.xpose.msra.mxu0 0.0
    %888 = vmatprep.subr.mxu0 0.0
    %889 = vmatpush1.xpose.msra.mxu0 0.0
    %890 = vmatprep.subr.mxu0 0.0
    %891 = vmatpush1.xpose.msra.mxu0 0.0
    %892 = vmatprep.subr.mxu0 0.0
    %893 = vmatpush1.xpose.msra.mxu0 0.0
    %894 = vmatprep.subr.mxu0 0.0
    %895 = vmatpush1.xpose.msra.mxu0 0.0
    %896 = vmatprep.subr.mxu0 0.0
    %897 = vmatpush1.xpose.msra.mxu0 0.0
    %898 = vmatprep.subr.mxu0 0.0
    %899 = vmatpush1.xpose.msra.mxu0 0.0
    %900 = vmatprep.subr.mxu0 0.0
    %901 = vmatpush1.xpose.msra.mxu0 0.0
    %902 = vmatprep.subr.mxu0 0.0
    %903 = vmatpush1.xpose.msra.mxu0 0.0
    %904 = vmatprep.subr.mxu0 0.0
    %905 = vmatpush1.xpose.msra.mxu0 0.0
    %906 = vmatprep.subr.mxu0 0.0
    %907 = vmatpush1.xpose.msra.mxu0 0.0
    %908 = vmatprep.subr.mxu0 0.0
    %909 = vmatpush1.xpose.msra.mxu0 0.0
    %910 = vmatprep.subr.mxu0 0.0
    %911 = vmatpush1.xpose.msra.mxu0 0.0
    %912 = vmatprep.mubr.f32.mxu0 0.0
    %913 = vmatmul.mubr.f32.gmra.mrb[0].mxu0 %v840
    %v914 = vpop.f32.mrb[0].mxu0
    %v915 = vadd.f32 0.0, %v914
    %v916 = vpop.f32.mrb[0].mxu0
    %917 = vmatprep.mubr.f32.mxu0 0.0
    %918 = vmatmul.mubr.f32.gmra.mrb[0].mxu0 %v842
    %v919 = vpop.f32.mrb[0].mxu0
    %v920 = vadd.f32 0.0, %v919
    %v921 = vpop.f32.mrb[0].mxu0
    %922 = vdwg.mxu0
    %v923 = vmul.f32 %v915, 0.35355338
    %v924 = vmul.f32 %v920, 0.35355338
    %v925 = vadd.f32 %v923, %v29
    %v926 = vadd.f32 %v924, %v30
    %v927 = vsel %vm314, %v925, -inf
    %928 = vmax.xlane.f32.xlu0 %v927
    %v929 = vpop.xlane.xlu0 %928
    %v930 = vsel %vm314, %v926, -inf
    %931 = vmax.xlane.f32.xlu0 %v930
    %v932 = vpop.xlane.xlu0 %931
    %v933 = vsub.f32 %v925, %v929
    %v934 = vsub.f32 %v926, %v932
    %v935 = vmul.f32 %v933, 1.442695
    %v936 = vpow.pop %v935
    %v937 = vmul.f32 %v934, 1.442695
    %v938 = vpow.pop %v937
    %v939 = vsel %vm314, %v936, 0.0
    %940 = vadd.xlane.f32.xlu0 %v939
    %v941 = vpop.xlane.xlu0 %940
    %v942 = vsel %vm314, %v938, 0.0
    %943 = vadd.xlane.f32.xlu0 %v942
    %v944 = vpop.xlane.xlu0 %943
    %v945 = vrcp.pop %v941
    %v946 = vrcp.pop %v944
    %v947 = vmul.f32 %v936, %v945
    %v948 = vmul.f32 %v938, %v946
    %949 = vrot.lane.b32.xlu0 %v208, 40
    %v950 = vpop.permute.xlu0 %949
    %951 = vrot.lane.b32.xlu0 %v213, 40
    %v952 = vpop.permute.xlu0 %951
    %v956 = vsel %vm314, %v947, 0
    %v959 = vsel %vm314, %v948, 0
    %961 = vmatprep.subr.mxu0 0.0
    %962 = vmatpush1.msra.mxu0 %v950
    %963 = vmatprep.subr.mxu0 0.0
    %964 = vmatpush1.msra.mxu0 %v952
    %965 = vmatprep.subr.mxu0 0.0
    %966 = vmatpush1.msra.mxu0 0.0
    %967 = vmatprep.subr.mxu0 0.0
    %968 = vmatpush1.msra.mxu0 0.0
    %969 = vmatprep.subr.mxu0 0.0
    %970 = vmatpush1.msra.mxu0 0.0
    %971 = vmatprep.subr.mxu0 0.0
    %972 = vmatpush1.msra.mxu0 0.0
    %973 = vmatprep.subr.mxu0 0.0
    %974 = vmatpush1.msra.mxu0 0.0
    %975 = vmatprep.subr.mxu0 0.0
    %976 = vmatpush1.msra.mxu0 0.0
    %977 = vmatprep.subr.mxu0 0.0
    %978 = vmatpush1.msra.mxu0 0.0
    %979 = vmatprep.subr.mxu0 0.0
    %980 = vmatpush1.msra.mxu0 0.0
    %981 = vmatprep.subr.mxu0 0.0
    %982 = vmatpush1.msra.mxu0 0.0
    %983 = vmatprep.subr.mxu0 0.0
    %984 = vmatpush1.msra.mxu0 0.0
    %985 = vmatprep.subr.mxu0 0.0
    %986 = vmatpush1.msra.mxu0 0.0
    %987 = vmatprep.subr.mxu0 0.0
    %988 = vmatpush1.msra.mxu0 0.0
    %989 = vmatprep.subr.mxu0 0.0
    %990 = vmatpush1.msra.mxu0 0.0
    %991 = vmatprep.subr.mxu0 0.0
    %992 = vmatpush1.msra.mxu0 0.0
    %993 = vmatprep.subr.mxu0 0.0
    %994 = vmatpush1.msra.mxu0 0.0
    %995 = vmatprep.subr.mxu0 0.0
    %996 = vmatpush1.msra.mxu0 0.0
    %997 = vmatprep.subr.mxu0 0.0
    %998 = vmatpush1.msra.mxu0 0.0
    %999 = vmatprep.subr.mxu0 0.0
    %1000 = vmatpush1.msra.mxu0 0.0
    %1001 = vmatprep.subr.mxu0 0.0
    %1002 = vmatpush1.msra.mxu0 0.0
    %1003 = vmatprep.subr.mxu0 0.0
    %1004 = vmatpush1.msra.mxu0 0.0
    %1005 = vmatprep.subr.mxu0 0.0
    %1006 = vmatpush1.msra.mxu0 0.0
    %1007 = vmatprep.subr.mxu0 0.0
    %1008 = vmatpush1.msra.mxu0 0.0
    %1009 = vmatprep.subr.mxu0 0.0
    %1010 = vmatpush1.msra.mxu0 0.0
    %1011 = vmatprep.subr.mxu0 0.0
    %1012 = vmatpush1.msra.mxu0 0.0
    %1013 = vmatprep.subr.mxu0 0.0
    %1014 = vmatpush1.msra.mxu0 0.0
    %1015 = vmatprep.subr.mxu0 0.0
    %1016 = vmatpush1.msra.mxu0 0.0
    %1017 = vmatprep.subr.mxu0 0.0
    %1018 = vmatpush1.msra.mxu0 0.0
    %1019 = vmatprep.subr.mxu0 0.0
    %1020 = vmatpush1.msra.mxu0 0.0
    %1021 = vmatprep.subr.mxu0 0.0
    %1022 = vmatpush1.msra.mxu0 0.0
    %1023 = vmatprep.subr.mxu0 0.0
    %1024 = vmatpush1.msra.mxu0 0.0
    %1025 = vmatprep.mubr.f32.mxu0 0.0
    %1026 = vmatmul.mubr.f32.gmra.mrb[0].mxu0 %v956
    %v1027 = vpop.f32.mrb[0].mxu0
    %v1028 = vadd.f32 0.0, %v1027
    %v1029 = vpop.f32.mrb[0].mxu0
    %1030 = vmatprep.mubr.f32.mxu0 0.0
    %1031 = vmatmul.mubr.f32.gmra.mrb[0].mxu0 %v959
    %v1032 = vpop.f32.mrb[0].mxu0
    %v1033 = vadd.f32 0.0, %v1032
    %v1034 = vpop.f32.mrb[0].mxu0
    %1035 = vdwg.mxu0
    %1038 = vrot.lane.b32.xlu0 %v620, 8
    %v1039 = vpop.permute.xlu0 %1038
    %1040 = vrot.lane.b32.xlu0 %v625, 8
    %v1041 = vpop.permute.xlu0 %1040
    %1046 = vrot.lane.b32.xlu0 %v824, 16
    %v1047 = vpop.permute.xlu0 %1046
    %1048 = vrot.lane.b32.xlu0 %v829, 16
    %v1049 = vpop.permute.xlu0 %1048
    %1054 = vrot.lane.b32.xlu0 %v1028, 24
    %v1055 = vpop.permute.xlu0 %1054
    %1056 = vrot.lane.b32.xlu0 %v1033, 24
    %v1057 = vpop.permute.xlu0 %1056
    %v1060 = vsel %vm43, %v416, %v1039
    %v1061 = vsel %vm43, %v421, %v1041
    %v1062 = vsel %vm314, %v1060, %v1047
    %v1063 = vsel %vm314, %v1061, %v1049
    %vm1064 = vcmask 195584
    %v1065 = vsel %vm1064, %v1062, %v1055
    %v1066 = vsel %vm1064, %v1063, %v1057
    %v1067 = vlaneseq
    %v1068 = vshrl.u32 %v1067, 7
    %v1069 = vsub.s32 0, %v1068
    %v1070 = vrot.slane %v220, %v1069
    %v1072 = vsel %vm134, %v1065, 0
    %v1075 = vsel %vm134, %v1066, 0
    %1077 = vmatprep.subr.mxu0 0.0
    %1078 = vmatpush1.msra.mxu0 %v216
    %1079 = vmatprep.subr.mxu0 0.0
    %1080 = vmatpush1.msra.mxu0 %v217
    %1081 = vmatprep.subr.mxu0 0.0
    %1082 = vmatpush1.msra.mxu0 %v218
    %1083 = vmatprep.subr.mxu0 0.0
    %1084 = vmatpush1.msra.mxu0 %v219
    %1085 = vmatprep.subr.mxu0 0.0
    %1086 = vmatpush1.msra.mxu0 0.0
    %1087 = vmatprep.subr.mxu0 0.0
    %1088 = vmatpush1.msra.mxu0 0.0
    %1089 = vmatprep.subr.mxu0 0.0
    %1090 = vmatpush1.msra.mxu0 0.0
    %1091 = vmatprep.subr.mxu0 0.0
    %1092 = vmatpush1.msra.mxu0 0.0
    %1093 = vmatprep.subr.mxu0 0.0
    %1094 = vmatpush1.msra.mxu0 0.0
    %1095 = vmatprep.subr.mxu0 0.0
    %1096 = vmatpush1.msra.mxu0 0.0
    %1097 = vmatprep.subr.mxu0 0.0
    %1098 = vmatpush1.msra.mxu0 0.0
    %1099 = vmatprep.subr.mxu0 0.0
    %1100 = vmatpush1.msra.mxu0 0.0
    %1101 = vmatprep.subr.mxu0 0.0
    %1102 = vmatpush1.msra.mxu0 0.0
    %1103 = vmatprep.subr.mxu0 0.0
    %1104 = vmatpush1.msra.mxu0 0.0
    %1105 = vmatprep.subr.mxu0 0.0
    %1106 = vmatpush1.msra.mxu0 0.0
    %1107 = vmatprep.subr.mxu0 0.0
    %1108 = vmatpush1.msra.mxu0 0.0
    %1109 = vmatprep.subr.mxu0 0.0
    %1110 = vmatpush1.msra.mxu0 0.0
    %1111 = vmatprep.subr.mxu0 0.0
    %1112 = vmatpush1.msra.mxu0 0.0
    %1113 = vmatprep.subr.mxu0 0.0
    %1114 = vmatpush1.msra.mxu0 0.0
    %1115 = vmatprep.subr.mxu0 0.0
    %1116 = vmatpush1.msra.mxu0 0.0
    %1117 = vmatprep.subr.mxu0 0.0
    %1118 = vmatpush1.msra.mxu0 0.0
    %1119 = vmatprep.subr.mxu0 0.0
    %1120 = vmatpush1.msra.mxu0 0.0
    %1121 = vmatprep.subr.mxu0 0.0
    %1122 = vmatpush1.msra.mxu0 0.0
    %1123 = vmatprep.subr.mxu0 0.0
    %1124 = vmatpush1.msra.mxu0 0.0
    %1125 = vmatprep.subr.mxu0 0.0
    %1126 = vmatpush1.msra.mxu0 0.0
    %1127 = vmatprep.subr.mxu0 0.0
    %1128 = vmatpush1.msra.mxu0 0.0
    %1129 = vmatprep.subr.mxu0 0.0
    %1130 = vmatpush1.msra.mxu0 0.0
    %1131 = vmatprep.subr.mxu0 0.0
    %1132 = vmatpush1.msra.mxu0 0.0
    %1133 = vmatprep.subr.mxu0 0.0
    %1134 = vmatpush1.msra.mxu0 0.0
    %1135 = vmatprep.subr.mxu0 0.0
    %1136 = vmatpush1.msra.mxu0 0.0
    %1137 = vmatprep.subr.mxu0 0.0
    %1138 = vmatpush1.msra.mxu0 0.0
    %1139 = vmatprep.subr.mxu0 0.0
    %1140 = vmatpush1.msra.mxu0 0.0
    %1141 = vmatprep.mubr.f32.mxu0 0.0
    %1142 = vmatmul.mubr.f32.gmra.mrb[0].mxu0 %v1072
    %v1143 = vpop.f32.mrb[0].mxu0
    %v1144 = vadd.f32 %v1070, %v1143
    %v1145 = vpop.f32.mrb[0].mxu0
    %1146 = vmatprep.mubr.f32.mxu0 0.0
    %1147 = vmatmul.mubr.f32.gmra.mrb[0].mxu0 %v1075
    %v1148 = vpop.f32.mrb[0].mxu0
    %v1149 = vadd.f32 %v1070, %v1148
    %v1150 = vpop.f32.mrb[0].mxu0
    %1151 = vdwg.mxu0
    %v1152 = vadd.f32 %v117, %v1144
    %v1153 = vadd.f32 %v122, %v1149
    %v1154 = vld [vmem:[#allocation2 + $0x148] sm:$0x1]
    %v1155 = vld [vmem:[#allocation2 + $0x150] sm:$0x1]
    %v1156 = vsel %vm134, %v1152, 0.0
    %1157 = vadd.xlane.f32.xlu0 %v1156
    %v1158 = vpop.xlane.xlu0 %1157
    %v1159 = vsel %vm134, %v1153, 0.0
    %1160 = vadd.xlane.f32.xlu0 %v1159
    %v1161 = vpop.xlane.xlu0 %1160
    %v1162 = vrcp.pop 32.0
    %v1163 = vmul.f32 %v1158, %v1162
    %v1164 = vmul.f32 %v1161, %v1162
    %v1165 = vsub.f32 %v1152, %v1163
    %v1166 = vsub.f32 %v1153, %v1164
    %v1167 = vmul.f32 %v1165, %v1165
    %v1168 = vmul.f32 %v1166, %v1166
    %v1169 = vsel %vm134, %v1167, 0.0
    %1170 = vadd.xlane.f32.xlu0 %v1169
    %v1171 = vpop.xlane.xlu0 %1170
    %v1172 = vsel %vm134, %v1168, 0.0
    %1173 = vadd.xlane.f32.xlu0 %v1172
    %v1174 = vpop.xlane.xlu0 %1173
    %v1175 = vmul.f32 %v1171, %v1162
    %v1176 = vmul.f32 %v1174, %v1162
    %v1177 = vadd.f32 %v1175, 1e-05
    %v1178 = vadd.f32 %v1176, 1e-05
    %v1179 = vrsqrt.pop %v1177
    %v1180 = vrsqrt.pop %v1178
    %v1181 = vmul.f32 %v1165, %v1179
    %v1182 = vmul.f32 %v1166, %v1180
    %v1183 = vlaneseq
    %v1184 = vshrl.u32 %v1183, 7
    %v1185 = vsub.s32 0, %v1184
    %v1186 = vrot.slane %v1154, %v1185
    %v1187 = vmul.f32 %v1181, %v1186
    %v1188 = vmul.f32 %v1182, %v1186
    %v1189 = vlaneseq
    %v1190 = vshrl.u32 %v1189, 7
    %v1191 = vsub.s32 0, %v1190
    %v1192 = vrot.slane %v1155, %v1191
    %v1193 = vadd.f32 %v1187, %v1192
    %v1194 = vadd.f32 %v1188, %v1192
    %v1195 = vld [vmem:[#allocation2 + $0x60] sm:$0xff]
    %v1196 = vld [vmem:[#allocation2 + $0x68] sm:$0xff]
    %v1197 = vld [vmem:[#allocation2 + $0x70] sm:$0xff]
    %v1198 = vld [vmem:[#allocation2 + $0x78] sm:$0xff]
    %v1199 = vld [vmem:[#allocation2 + $0x80] sm:$0x1]
    %v1200 = vlaneseq
    %v1201 = vshrl.u32 %v1200, 7
    %v1202 = vsub.s32 0, %v1201
    %v1203 = vrot.slane %v1199, %v1202
    %v1205 = vsel %vm134, %v1193, 0
    %v1208 = vsel %vm134, %v1194, 0
    %1210 = vmatprep.subr.mxu0 0.0
    %1211 = vmatpush1.msra.mxu0 %v1195
    %1212 = vmatprep.subr.mxu0 0.0
    %1213 = vmatpush1.msra.mxu0 %v1196
    %1214 = vmatprep.subr.mxu0 0.0
    %1215 = vmatpush1.msra.mxu0 %v1197
    %1216 = vmatprep.subr.mxu0 0.0
    %1217 = vmatpush1.msra.mxu0 %v1198
    %1218 = vmatprep.subr.mxu0 0.0
    %1219 = vmatpush1.msra.mxu0 0.0
    %1220 = vmatprep.subr.mxu0 0.0
    %1221 = vmatpush1.msra.mxu0 0.0
    %1222 = vmatprep.subr.mxu0 0.0
    %1223 = vmatpush1.msra.mxu0 0.0
    %1224 = vmatprep.subr.mxu0 0.0
    %1225 = vmatpush1.msra.mxu0 0.0
    %1226 = vmatprep.subr.mxu0 0.0
    %1227 = vmatpush1.msra.mxu0 0.0
    %1228 = vmatprep.subr.mxu0 0.0
    %1229 = vmatpush1.msra.mxu0 0.0
    %1230 = vmatprep.subr.mxu0 0.0
    %1231 = vmatpush1.msra.mxu0 0.0
    %1232 = vmatprep.subr.mxu0 0.0
    %1233 = vmatpush1.msra.mxu0 0.0
    %1234 = vmatprep.subr.mxu0 0.0
    %1235 = vmatpush1.msra.mxu0 0.0
    %1236 = vmatprep.subr.mxu0 0.0
    %1237 = vmatpush1.msra.mxu0 0.0
    %1238 = vmatprep.subr.mxu0 0.0
    %1239 = vmatpush1.msra.mxu0 0.0
    %1240 = vmatprep.subr.mxu0 0.0
    %1241 = vmatpush1.msra.mxu0 0.0
    %1242 = vmatprep.subr.mxu0 0.0
    %1243 = vmatpush1.msra.mxu0 0.0
    %1244 = vmatprep.subr.mxu0 0.0
    %1245 = vmatpush1.msra.mxu0 0.0
    %1246 = vmatprep.subr.mxu0 0.0
    %1247 = vmatpush1.msra.mxu0 0.0
    %1248 = vmatprep.subr.mxu0 0.0
    %1249 = vmatpush1.msra.mxu0 0.0
    %1250 = vmatprep.subr.mxu0 0.0
    %1251 = vmatpush1.msra.mxu0 0.0
    %1252 = vmatprep.subr.mxu0 0.0
    %1253 = vmatpush1.msra.mxu0 0.0
    %1254 = vmatprep.subr.mxu0 0.0
    %1255 = vmatpush1.msra.mxu0 0.0
    %1256 = vmatprep.subr.mxu0 0.0
    %1257 = vmatpush1.msra.mxu0 0.0
    %1258 = vmatprep.subr.mxu0 0.0
    %1259 = vmatpush1.msra.mxu0 0.0
    %1260 = vmatprep.subr.mxu0 0.0
    %1261 = vmatpush1.msra.mxu0 0.0
    %1262 = vmatprep.subr.mxu0 0.0
    %1263 = vmatpush1.msra.mxu0 0.0
    %1264 = vmatprep.subr.mxu0 0.0
    %1265 = vmatpush1.msra.mxu0 0.0
    %1266 = vmatprep.subr.mxu0 0.0
    %1267 = vmatpush1.msra.mxu0 0.0
    %1268 = vmatprep.subr.mxu0 0.0
    %1269 = vmatpush1.msra.mxu0 0.0
    %1270 = vmatprep.subr.mxu0 0.0
    %1271 = vmatpush1.msra.mxu0 0.0
    %1272 = vmatprep.subr.mxu0 0.0
    %1273 = vmatpush1.msra.mxu0 0.0
    %1274 = vmatprep.mubr.f32.mxu0 0.0
    %1275 = vmatmul.mubr.f32.gmra.mrb[0].mxu0 %v1205
    %v1276 = vpop.f32.mrb[0].mxu0
    %v1277 = vadd.f32 %v1203, %v1276
    %v1278 = vpop.f32.mrb[0].mxu0
    %1279 = vmatprep.mubr.f32.mxu0 0.0
    %1280 = vmatmul.mubr.f32.gmra.mrb[0].mxu0 %v1208
    %v1281 = vpop.f32.mrb[0].mxu0
    %v1282 = vadd.f32 %v1203, %v1281
    %v1283 = vpop.f32.mrb[0].mxu0
    %1284 = vdwg.mxu0
    %v1285 = vld [vmem:[#allocation2 + $0x88] sm:$0xff]
    %v1286 = vld [vmem:[#allocation2 + $0x90] sm:$0xff]
    %v1287 = vld [vmem:[#allocation2 + $0x98] sm:$0xff]
    %v1288 = vld [vmem:[#allocation2 + $0xa0] sm:$0xff]
    %v1289 = vld [vmem:[#allocation2 + $0xa8] sm:$0x1]
    %v1290 = vlaneseq
    %v1291 = vshrl.u32 %v1290, 7
    %v1292 = vsub.s32 0, %v1291
    %v1293 = vrot.slane %v1289, %v1292
    %v1295 = vsel %vm134, %v33, 0
    %v1298 = vsel %vm134, %v34, 0
    %1300 = vmatprep.subr.mxu0 0.0
    %1301 = vmatpush1.msra.mxu0 %v1285
    %1302 = vmatprep.subr.mxu0 0.0
    %1303 = vmatpush1.msra.mxu0 %v1286
    %1304 = vmatprep.subr.mxu0 0.0
    %1305 = vmatpush1.msra.mxu0 %v1287
    %1306 = vmatprep.subr.mxu0 0.0
    %1307 = vmatpush1.msra.mxu0 %v1288
    %1308 = vmatprep.subr.mxu0 0.0
    %1309 = vmatpush1.msra.mxu0 0.0
    %1310 = vmatprep.subr.mxu0 0.0
    %1311 = vmatpush1.msra.mxu0 0.0
    %1312 = vmatprep.subr.mxu0 0.0
    %1313 = vmatpush1.msra.mxu0 0.0
    %1314 = vmatprep.subr.mxu0 0.0
    %1315 = vmatpush1.msra.mxu0 0.0
    %1316 = vmatprep.subr.mxu0 0.0
    %1317 = vmatpush1.msra.mxu0 0.0
    %1318 = vmatprep.subr.mxu0 0.0
    %1319 = vmatpush1.msra.mxu0 0.0
    %1320 = vmatprep.subr.mxu0 0.0
    %1321 = vmatpush1.msra.mxu0 0.0
    %1322 = vmatprep.subr.mxu0 0.0
    %1323 = vmatpush1.msra.mxu0 0.0
    %1324 = vmatprep.subr.mxu0 0.0
    %1325 = vmatpush1.msra.mxu0 0.0
    %1326 = vmatprep.subr.mxu0 0.0
    %1327 = vmatpush1.msra.mxu0 0.0
    %1328 = vmatprep.subr.mxu0 0.0
    %1329 = vmatpush1.msra.mxu0 0.0
    %1330 = vmatprep.subr.mxu0 0.0
    %1331 = vmatpush1.msra.mxu0 0.0
    %1332 = vmatprep.subr.mxu0 0.0
    %1333 = vmatpush1.msra.mxu0 0.0
    %1334 = vmatprep.subr.mxu0 0.0
    %1335 = vmatpush1.msra.mxu0 0.0
    %1336 = vmatprep.subr.mxu0 0.0
    %1337 = vmatpush1.msra.mxu0 0.0
    %1338 = vmatprep.subr.mxu0 0.0
    %1339 = vmatpush1.msra.mxu0 0.0
    %1340 = vmatprep.subr.mxu0 0.0
    %1341 = vmatpush1.msra.mxu0 0.0
    %1342 = vmatprep.subr.mxu0 0.0
    %1343 = vmatpush1.msra.mxu0 0.0
    %1344 = vmatprep.subr.mxu0 0.0
    %1345 = vmatpush1.msra.mxu0 0.0
    %1346 = vmatprep.subr.mxu0 0.0
    %1347 = vmatpush1.msra.mxu0 0.0
    %1348 = vmatprep.subr.mxu0 0.0
    %1349 = vmatpush1.msra.mxu0 0.0
    %1350 = vmatprep.subr.mxu0 0.0
    %1351 = vmatpush1.msra.mxu0 0.0
    %1352 = vmatprep.subr.mxu0 0.0
    %1353 = vmatpush1.msra.mxu0 0.0
    %1354 = vmatprep.subr.mxu0 0.0
    %1355 = vmatpush1.msra.mxu0 0.0
    %1356 = vmatprep.subr.mxu0 0.0
    %1357 = vmatpush1.msra.mxu0 0.0
    %1358 = vmatprep.subr.mxu0 0.0
    %1359 = vmatpush1.msra.mxu0 0.0
    %1360 = vmatprep.subr.mxu0 0.0
    %1361 = vmatpush1.msra.mxu0 0.0
    %1362 = vmatprep.subr.mxu0 0.0
    %1363 = vmatpush1.msra.mxu0 0.0
    %1364 = vmatprep.mubr.f32.mxu0 0.0
    %1365 = vmatmul.mubr.f32.gmra.mrb[0].mxu0 %v1295
    %v1366 = vpop.f32.mrb[0].mxu0
    %v1367 = vadd.f32 %v1293, %v1366
    %v1368 = vpop.f32.mrb[0].mxu0
    %1369 = vmatprep.mubr.f32.mxu0 0.0
    %1370 = vmatmul.mubr.f32.gmra.mrb[0].mxu0 %v1298
    %v1371 = vpop.f32.mrb[0].mxu0
    %v1372 = vadd.f32 %v1293, %v1371
    %v1373 = vpop.f32.mrb[0].mxu0
    %1374 = vdwg.mxu0
    %v1375 = vld [vmem:[#allocation2 + $0xb0] sm:$0xff]
    %v1376 = vld [vmem:[#allocation2 + $0xb8] sm:$0xff]
    %v1377 = vld [vmem:[#allocation2 + $0xc0] sm:$0xff]
    %v1378 = vld [vmem:[#allocation2 + $0xc8] sm:$0xff]
    %v1379 = vld [vmem:[#allocation2 + $0xd0] sm:$0x1]
    %v1381 = vsel %vm43, %v1277, 0
    %v1384 = vsel %vm43, %v1282, 0
    %v1387 = vsel %vm43, %v1367, 0
    %v1390 = vsel %vm43, %v1372, 0
    %1392 = vmatprep.subr.mxu0 0.0
    %1393 = vmatpush1.xpose.msra.mxu0 %v1387
    %1394 = vmatprep.subr.mxu0 0.0
    %1395 = vmatpush1.xpose.msra.mxu0 %v1390
    %1396 = vmatprep.subr.mxu0 0.0
    %1397 = vmatpush1.xpose.msra.mxu0 0.0
    %1398 = vmatprep.subr.mxu0 0.0
    %1399 = vmatpush1.xpose.msra.mxu0 0.0
    %1400 = vmatprep.subr.mxu0 0.0
    %1401 = vmatpush1.xpose.msra.mxu0 0.0
    %1402 = vmatprep.subr.mxu0 0.0
    %1403 = vmatpush1.xpose.msra.mxu0 0.0
    %1404 = vmatprep.subr.mxu0 0.0
    %1405 = vmatpush1.xpose.msra.mxu0 0.0
    %1406 = vmatprep.subr.mxu0 0.0
    %1407 = vmatpush1.xpose.msra.mxu0 0.0
    %1408 = vmatprep.subr.mxu0 0.0
    %1409 = vmatpush1.xpose.msra.mxu0 0.0
    %1410 = vmatprep.subr.mxu0 0.0
    %1411 = vmatpush1.xpose.msra.mxu0 0.0
    %1412 = vmatprep.subr.mxu0 0.0
    %1413 = vmatpush1.xpose.msra.mxu0 0.0
    %1414 = vmatprep.subr.mxu0 0.0
    %1415 = vmatpush1.xpose.msra.mxu0 0.0
    %1416 = vmatprep.subr.mxu0 0.0
    %1417 = vmatpush1.xpose.msra.mxu0 0.0
    %1418 = vmatprep.subr.mxu0 0.0
    %1419 = vmatpush1.xpose.msra.mxu0 0.0
    %1420 = vmatprep.subr.mxu0 0.0
    %1421 = vmatpush1.xpose.msra.mxu0 0.0
    %1422 = vmatprep.subr.mxu0 0.0
    %1423 = vmatpush1.xpose.msra.mxu0 0.0
    %1424 = vmatprep.subr.mxu0 0.0
    %1425 = vmatpush1.xpose.msra.mxu0 0.0
    %1426 = vmatprep.subr.mxu0 0.0
    %1427 = vmatpush1.xpose.msra.mxu0 0.0
    %1428 = vmatprep.subr.mxu0 0.0
    %1429 = vmatpush1.xpose.msra.mxu0 0.0
    %1430 = vmatprep.subr.mxu0 0.0
    %1431 = vmatpush1.xpose.msra.mxu0 0.0
    %1432 = vmatprep.subr.mxu0 0.0
    %1433 = vmatpush1.xpose.msra.mxu0 0.0
    %1434 = vmatprep.subr.mxu0 0.0
    %1435 = vmatpush1.xpose.msra.mxu0 0.0
    %1436 = vmatprep.subr.mxu0 0.0
    %1437 = vmatpush1.xpose.msra.mxu0 0.0
    %1438 = vmatprep.subr.mxu0 0.0
    %1439 = vmatpush1.xpose.msra.mxu0 0.0
    %1440 = vmatprep.subr.mxu0 0.0
    %1441 = vmatpush1.xpose.msra.mxu0 0.0
    %1442 = vmatprep.subr.mxu0 0.0
    %1443 = vmatpush1.xpose.msra.mxu0 0.0
    %1444 = vmatprep.subr.mxu0 0.0
    %1445 = vmatpush1.xpose.msra.mxu0 0.0
    %1446 = vmatprep.subr.mxu0 0.0
    %1447 = vmatpush1.xpose.msra.mxu0 0.0
    %1448 = vmatprep.subr.mxu0 0.0
    %1449 = vmatpush1.xpose.msra.mxu0 0.0
    %1450 = vmatprep.subr.mxu0 0.0
    %1451 = vmatpush1.xpose.msra.mxu0 0.0
    %1452 = vmatprep.subr.mxu0 0.0
    %1453 = vmatpush1.xpose.msra.mxu0 0.0
    %1454 = vmatprep.subr.mxu0 0.0
    %1455 = vmatpush1.xpose.msra.mxu0 0.0
    %1456 = vmatprep.mubr.f32.mxu0 0.0
    %1457 = vmatmul.mubr.f32.gmra.mrb[0].mxu0 %v1381
    %v1458 = vpop.f32.mrb[0].mxu0
    %v1459 = vadd.f32 0.0, %v1458
    %v1460 = vpop.f32.mrb[0].mxu0
    %1461 = vmatprep.mubr.f32.mxu0 0.0
    %1462 = vmatmul.mubr.f32.gmra.mrb[0].mxu0 %v1384
    %v1463 = vpop.f32.mrb[0].mxu0
    %v1464 = vadd.f32 0.0, %v1463
    %v1465 = vpop.f32.mrb[0].mxu0
    %1466 = vdwg.mxu0
    %v1467 = vmul.f32 %v1459, 0.35355338
    %v1468 = vmul.f32 %v1464, 0.35355338
    %v1469 = vadd.f32 %v1467, %v31
    %v1470 = vadd.f32 %v1468, %v32
    %v1471 = vsel %vm314, %v1469, -inf
    %1472 = vmax.xlane.f32.xlu0 %v1471
    %v1473 = vpop.xlane.xlu0 %1472
    %v1474 = vsel %vm314, %v1470, -inf
    %1475 = vmax.xlane.f32.xlu0 %v1474
    %v1476 = vpop.xlane.xlu0 %1475
    %v1477 = vsub.f32 %v1469, %v1473
    %v1478 = vsub.f32 %v1470, %v1476
    %v1479 = vmul.f32 %v1477, 1.442695
    %v1480 = vpow.pop %v1479
    %v1481 = vmul.f32 %v1478, 1.442695
    %v1482 = vpow.pop %v1481
    %v1483 = vsel %vm314, %v1480, 0.0
    %1484 = vadd.xlane.f32.xlu0 %v1483
    %v1485 = vpop.xlane.xlu0 %1484
    %v1486 = vsel %vm314, %v1482, 0.0
    %1487 = vadd.xlane.f32.xlu0 %v1486
    %v1488 = vpop.xlane.xlu0 %1487
    %v1489 = vrcp.pop %v1485
    %v1490 = vrcp.pop %v1488
    %v1491 = vmul.f32 %v1480, %v1489
    %v1492 = vmul.f32 %v1482, %v1490
    %1493 = vrot.lane.b32.xlu0 %v1367, 96
    %v1494 = vpop.permute.xlu0 %1493
    %1495 = vrot.lane.b32.xlu0 %v1372, 96
    %v1496 = vpop.permute.xlu0 %1495
    %v1500 = vsel %vm314, %v1491, 0
    %v1503 = vsel %vm314, %v1492, 0
    %1505 = vmatprep.subr.mxu0 0.0
    %1506 = vmatpush1.msra.mxu0 %v1494
    %1507 = vmatprep.subr.mxu0 0.0
    %1508 = vmatpush1.msra.mxu0 %v1496
    %1509 = vmatprep.subr.mxu0 0.0
    %1510 = vmatpush1.msra.mxu0 0.0
    %1511 = vmatprep.subr.mxu0 0.0
    %1512 = vmatpush1.msra.mxu0 0.0
    %1513 = vmatprep.subr.mxu0 0.0
    %1514 = vmatpush1.msra.mxu0 0.0
    %1515 = vmatprep.subr.mxu0 0.0
    %1516 = vmatpush1.msra.mxu0 0.0
    %1517 = vmatprep.subr.mxu0 0.0
    %1518 = vmatpush1.msra.mxu0 0.0
    %1519 = vmatprep.subr.mxu0 0.0
    %1520 = vmatpush1.msra.mxu0 0.0
    %1521 = vmatprep.subr.mxu0 0.0
    %1522 = vmatpush1.msra.mxu0 0.0
    %1523 = vmatprep.subr.mxu0 0.0
    %1524 = vmatpush1.msra.mxu0 0.0
    %1525 = vmatprep.subr.mxu0 0.0
    %1526 = vmatpush1.msra.mxu0 0.0
    %1527 = vmatprep.subr.mxu0 0.0
    %1528 = vmatpush1.msra.mxu0 0.0
    %1529 = vmatprep.subr.mxu0 0.0
    %1530 = vmatpush1.msra.mxu0 0.0
    %1531 = vmatprep.subr.mxu0 0.0
    %1532 = vmatpush1.msra.mxu0 0.0
    %1533 = vmatprep.subr.mxu0 0.0
    %1534 = vmatpush1.msra.mxu0 0.0
    %1535 = vmatprep.subr.mxu0 0.0
    %1536 = vmatpush1.msra.mxu0 0.0
    %1537 = vmatprep.subr.mxu0 0.0
    %1538 = vmatpush1.msra.mxu0 0.0
    %1539 = vmatprep.subr.mxu0 0.0
    %1540 = vmatpush1.msra.mxu0 0.0
    %1541 = vmatprep.subr.mxu0 0.0
    %1542 = vmatpush1.msra.mxu0 0.0
    %1543 = vmatprep.subr.mxu0 0.0
    %1544 = vmatpush1.msra.mxu0 0.0
    %1545 = vmatprep.subr.mxu0 0.0
    %1546 = vmatpush1.msra.mxu0 0.0
    %1547 = vmatprep.subr.mxu0 0.0
    %1548 = vmatpush1.msra.mxu0 0.0
    %1549 = vmatprep.subr.mxu0 0.0
    %1550 = vmatpush1.msra.mxu0 0.0
    %1551 = vmatprep.subr.mxu0 0.0
    %1552 = vmatpush1.msra.mxu0 0.0
    %1553 = vmatprep.subr.mxu0 0.0
    %1554 = vmatpush1.msra.mxu0 0.0
    %1555 = vmatprep.subr.mxu0 0.0
    %1556 = vmatpush1.msra.mxu0 0.0
    %1557 = vmatprep.subr.mxu0 0.0
    %1558 = vmatpush1.msra.mxu0 0.0
    %1559 = vmatprep.subr.mxu0 0.0
    %1560 = vmatpush1.msra.mxu0 0.0
    %1561 = vmatprep.subr.mxu0 0.0
    %1562 = vmatpush1.msra.mxu0 0.0
    %1563 = vmatprep.subr.mxu0 0.0
    %1564 = vmatpush1.msra.mxu0 0.0
    %1565 = vmatprep.subr.mxu0 0.0
    %1566 = vmatpush1.msra.mxu0 0.0
    %1567 = vmatprep.subr.mxu0 0.0
    %1568 = vmatpush1.msra.mxu0 0.0
    %1569 = vmatprep.mubr.f32.mxu0 0.0
    %1570 = vmatmul.mubr.f32.gmra.mrb[0].mxu0 %v1500
    %v1571 = vpop.f32.mrb[0].mxu0
    %v1572 = vadd.f32 0.0, %v1571
    %v1573 = vpop.f32.mrb[0].mxu0
    %1574 = vmatprep.mubr.f32.mxu0 0.0
    %1575 = vmatmul.mubr.f32.gmra.mrb[0].mxu0 %v1503
    %v1576 = vpop.f32.mrb[0].mxu0
    %v1577 = vadd.f32 0.0, %v1576
    %v1578 = vpop.f32.mrb[0].mxu0
    %1579 = vdwg.mxu0
    %1580 = vrot.lane.b32.xlu0 %v1277, 120
    %v1581 = vpop.permute.xlu0 %1580
    %1582 = vrot.lane.b32.xlu0 %v1282, 120
    %v1583 = vpop.permute.xlu0 %1582
    %1584 = vrot.lane.b32.xlu0 %v1367, 120
    %v1585 = vpop.permute.xlu0 %1584
    %1586 = vrot.lane.b32.xlu0 %v1372, 120
    %v1587 = vpop.permute.xlu0 %1586
    %v1588 = vsel %vm43, %v1581, 0
    %v1590 = vsel %vm43, %v1583, 0
    %v1592 = vsel %vm43, %v1585, 0
    %v1594 = vsel %vm43, %v1587, 0
    %1596 = vmatprep.subr.mxu0 0.0
    %1597 = vmatpush1.xpose.msra.mxu0 %v1592
    %1598 = vmatprep.subr.mxu0 0.0
    %1599 = vmatpush1.xpose.msra.mxu0 %v1594
    %1600 = vmatprep.subr.mxu0 0.0
    %1601 = vmatpush1.xpose.msra.mxu0 0.0
    %1602 = vmatprep.subr.mxu0 0.0
    %1603 = vmatpush1.xpose.msra.mxu0 0.0
    %1604 = vmatprep.subr.mxu0 0.0
    %1605 = vmatpush1.xpose.msra.mxu0 0.0
    %1606 = vmatprep.subr.mxu0 0.0
    %1607 = vmatpush1.xpose.msra.mxu0 0.0
    %1608 = vmatprep.subr.mxu0 0.0
    %1609 = vmatpush1.xpose.msra.mxu0 0.0
    %1610 = vmatprep.subr.mxu0 0.0
    %1611 = vmatpush1.xpose.msra.mxu0 0.0
    %1612 = vmatprep.subr.mxu0 0.0
    %1613 = vmatpush1.xpose.msra.mxu0 0.0
    %1614 = vmatprep.subr.mxu0 0.0
    %1615 = vmatpush1.xpose.msra.mxu0 0.0
    %1616 = vmatprep.subr.mxu0 0.0
    %1617 = vmatpush1.xpose.msra.mxu0 0.0
    %1618 = vmatprep.subr.mxu0 0.0
    %1619 = vmatpush1.xpose.msra.mxu0 0.0
    %1620 = vmatprep.subr.mxu0 0.0
    %1621 = vmatpush1.xpose.msra.mxu0 0.0
    %1622 = vmatprep.subr.mxu0 0.0
    %1623 = vmatpush1.xpose.msra.mxu0 0.0
    %1624 = vmatprep.subr.mxu0 0.0
    %1625 = vmatpush1.xpose.msra.mxu0 0.0
    %1626 = vmatprep.subr.mxu0 0.0
    %1627 = vmatpush1.xpose.msra.mxu0 0.0
    %1628 = vmatprep.subr.mxu0 0.0
    %1629 = vmatpush1.xpose.msra.mxu0 0.0
    %1630 = vmatprep.subr.mxu0 0.0
    %1631 = vmatpush1.xpose.msra.mxu0 0.0
    %1632 = vmatprep.subr.mxu0 0.0
    %1633 = vmatpush1.xpose.msra.mxu0 0.0
    %1634 = vmatprep.subr.mxu0 0.0
    %1635 = vmatpush1.xpose.msra.mxu0 0.0
    %1636 = vmatprep.subr.mxu0 0.0
    %1637 = vmatpush1.xpose.msra.mxu0 0.0
    %1638 = vmatprep.subr.mxu0 0.0
    %1639 = vmatpush1.xpose.msra.mxu0 0.0
    %1640 = vmatprep.subr.mxu0 0.0
    %1641 = vmatpush1.xpose.msra.mxu0 0.0
    %1642 = vmatprep.subr.mxu0 0.0
    %1643 = vmatpush1.xpose.msra.mxu0 0.0
    %1644 = vmatprep.subr.mxu0 0.0
    %1645 = vmatpush1.xpose.msra.mxu0 0.0
    %1646 = vmatprep.subr.mxu0 0.0
    %1647 = vmatpush1.xpose.msra.mxu0 0.0
    %1648 = vmatprep.subr.mxu0 0.0
    %1649 = vmatpush1.xpose.msra.mxu0 0.0
    %1650 = vmatprep.subr.mxu0 0.0
    %1651 = vmatpush1.xpose.msra.mxu0 0.0
    %1652 = vmatprep.subr.mxu0 0.0
    %1653 = vmatpush1.xpose.msra.mxu0 0.0
    %1654 = vmatprep.subr.mxu0 0.0
    %1655 = vmatpush1.xpose.msra.mxu0 0.0
    %1656 = vmatprep.subr.mxu0 0.0
    %1657 = vmatpush1.xpose.msra.mxu0 0.0
    %1658 = vmatprep.subr.mxu0 0.0
    %1659 = vmatpush1.xpose.msra.mxu0 0.0
    %1660 = vmatprep.mubr.f32.mxu0 0.0
    %1661 = vmatmul.mubr.f32.gmra.mrb[0].mxu0 %v1588
    %v1662 = vpop.f32.mrb[0].mxu0
    %v1663 = vadd.f32 0.0, %v1662
    %v1664 = vpop.f32.mrb[0].mxu0
    %1665 = vmatprep.mubr.f32.mxu0 0.0
    %1666 = vmatmul.mubr.f32.gmra.mrb[0].mxu0 %v1590
    %v1667 = vpop.f32.mrb[0].mxu0
    %v1668 = vadd.f32 0.0, %v1667
    %v1669 = vpop.f32.mrb[0].mxu0
    %1670 = vdwg.mxu0
    %v1671 = vmul.f32 %v1663, 0.35355338
    %v1672 = vmul.f32 %v1668, 0.35355338
    %v1673 = vadd.f32 %v1671, %v31
    %v1674 = vadd.f32 %v1672, %v32
    %v1675 = vsel %vm314, %v1673, -inf
    %1676 = vmax.xlane.f32.xlu0 %v1675
    %v1677 = vpop.xlane.xlu0 %1676
    %v1678 = vsel %vm314, %v1674, -inf
    %1679 = vmax.xlane.f32.xlu0 %v1678
    %v1680 = vpop.xlane.xlu0 %1679
    %v1681 = vsub.f32 %v1673, %v1677
    %v1682 = vsub.f32 %v1674, %v1680
    %v1683 = vmul.f32 %v1681, 1.442695
    %v1684 = vpow.pop %v1683
    %v1685 = vmul.f32 %v1682, 1.442695
    %v1686 = vpow.pop %v1685
    %v1687 = vsel %vm314, %v1684, 0.0
    %1688 = vadd.xlane.f32.xlu0 %v1687
    %v1689 = vpop.xlane.xlu0 %1688
    %v1690 = vsel %vm314, %v1686, 0.0
    %1691 = vadd.xlane.f32.xlu0 %v1690
    %v1692 = vpop.xlane.xlu0 %1691
    %v1693 = vrcp.pop %v1689
    %v1694 = vrcp.pop %v1692
    %v1695 = vmul.f32 %v1684, %v1693
    %v1696 = vmul.f32 %v1686, %v1694
    %1697 = vrot.lane.b32.xlu0 %v1367, 88
    %v1698 = vpop.permute.xlu0 %1697
    %1699 = vrot.lane.b32.xlu0 %v1372, 88
    %v1700 = vpop.permute.xlu0 %1699
    %v1704 = vsel %vm314, %v1695, 0
    %v1707 = vsel %vm314, %v1696, 0
    %1709 = vmatprep.subr.mxu0 0.0
    %1710 = vmatpush1.msra.mxu0 %v1698
    %1711 = vmatprep.subr.mxu0 0.0
    %1712 = vmatpush1.msra.mxu0 %v1700
    %1713 = vmatprep.subr.mxu0 0.0
    %1714 = vmatpush1.msra.mxu0 0.0
    %1715 = vmatprep.subr.mxu0 0.0
    %1716 = vmatpush1.msra.mxu0 0.0
    %1717 = vmatprep.subr.mxu0 0.0
    %1718 = vmatpush1.msra.mxu0 0.0
    %1719 = vmatprep.subr.mxu0 0.0
    %1720 = vmatpush1.msra.mxu0 0.0
    %1721 = vmatprep.subr.mxu0 0.0
    %1722 = vmatpush1.msra.mxu0 0.0
    %1723 = vmatprep.subr.mxu0 0.0
    %1724 = vmatpush1.msra.mxu0 0.0
    %1725 = vmatprep.subr.mxu0 0.0
    %1726 = vmatpush1.msra.mxu0 0.0
    %1727 = vmatprep.subr.mxu0 0.0
    %1728 = vmatpush1.msra.mxu0 0.0
    %1729 = vmatprep.subr.mxu0 0.0
    %1730 = vmatpush1.msra.mxu0 0.0
    %1731 = vmatprep.subr.mxu0 0.0
    %1732 = vmatpush1.msra.mxu0 0.0
    %1733 = vmatprep.subr.mxu0 0.0
    %1734 = vmatpush1.msra.mxu0 0.0
    %1735 = vmatprep.subr.mxu0 0.0
    %1736 = vmatpush1.msra.mxu0 0.0
    %1737 = vmatprep.subr.mxu0 0.0
    %1738 = vmatpush1.msra.mxu0 0.0
    %1739 = vmatprep.subr.mxu0 0.0
    %1740 = vmatpush1.msra.mxu0 0.0
    %1741 = vmatprep.subr.mxu0 0.0
    %1742 = vmatpush1.msra.mxu0 0.0
    %1743 = vmatprep.subr.mxu0 0.0
    %1744 = vmatpush1.msra.mxu0 0.0
    %1745 = vmatprep.subr.mxu0 0.0
    %1746 = vmatpush1.msra.mxu0 0.0
    %1747 = vmatprep.subr.mxu0 0.0
    %1748 = vmatpush1.msra.mxu0 0.0
    %1749 = vmatprep.subr.mxu0 0.0
    %1750 = vmatpush1.msra.mxu0 0.0
    %1751 = vmatprep.subr.mxu0 0.0
    %1752 = vmatpush1.msra.mxu0 0.0
    %1753 = vmatprep.subr.mxu0 0.0
    %1754 = vmatpush1.msra.mxu0 0.0
    %1755 = vmatprep.subr.mxu0 0.0
    %1756 = vmatpush1.msra.mxu0 0.0
    %1757 = vmatprep.subr.mxu0 0.0
    %1758 = vmatpush1.msra.mxu0 0.0
    %1759 = vmatprep.subr.mxu0 0.0
    %1760 = vmatpush1.msra.mxu0 0.0
    %1761 = vmatprep.subr.mxu0 0.0
    %1762 = vmatpush1.msra.mxu0 0.0
    %1763 = vmatprep.subr.mxu0 0.0
    %1764 = vmatpush1.msra.mxu0 0.0
    %1765 = vmatprep.subr.mxu0 0.0
    %1766 = vmatpush1.msra.mxu0 0.0
    %1767 = vmatprep.subr.mxu0 0.0
    %1768 = vmatpush1.msra.mxu0 0.0
    %1769 = vmatprep.subr.mxu0 0.0
    %1770 = vmatpush1.msra.mxu0 0.0
    %1771 = vmatprep.subr.mxu0 0.0
    %1772 = vmatpush1.msra.mxu0 0.0
    %1773 = vmatprep.mubr.f32.mxu0 0.0
    %1774 = vmatmul.mubr.f32.gmra.mrb[0].mxu0 %v1704
    %v1775 = vpop.f32.mrb[0].mxu0
    %v1776 = vadd.f32 0.0, %v1775
    %v1777 = vpop.f32.mrb[0].mxu0
    %1778 = vmatprep.mubr.f32.mxu0 0.0
    %1779 = vmatmul.mubr.f32.gmra.mrb[0].mxu0 %v1707
    %v1780 = vpop.f32.mrb[0].mxu0
    %v1781 = vadd.f32 0.0, %v1780
    %v1782 = vpop.f32.mrb[0].mxu0
    %1783 = vdwg.mxu0
    %1784 = vrot.lane.b32.xlu0 %v1277, 112
    %v1785 = vpop.permute.xlu0 %1784
    %1786 = vrot.lane.b32.xlu0 %v1282, 112
    %v1787 = vpop.permute.xlu0 %1786
    %1788 = vrot.lane.b32.xlu0 %v1367, 112
    %v1789 = vpop.permute.xlu0 %1788
    %1790 = vrot.lane.b32.xlu0 %v1372, 112
    %v1791 = vpop.permute.xlu0 %1790
    %v1792 = vsel %vm43, %v1785, 0
    %v1794 = vsel %vm43, %v1787, 0
    %v1796 = vsel %vm43, %v1789, 0
    %v1798 = vsel %vm43, %v1791, 0
    %1800 = vmatprep.subr.mxu0 0.0
    %1801 = vmatpush1.xpose.msra.mxu0 %v1796
    %1802 = vmatprep.subr.mxu0 0.0
    %1803 = vmatpush1.xpose.msra.mxu0 %v1798
    %1804 = vmatprep.subr.mxu0 0.0
    %1805 = vmatpush1.xpose.msra.mxu0 0.0
    %1806 = vmatprep.subr.mxu0 0.0
    %1807 = vmatpush1.xpose.msra.mxu0 0.0
    %1808 = vmatprep.subr.mxu0 0.0
    %1809 = vmatpush1.xpose.msra.mxu0 0.0
    %1810 = vmatprep.subr.mxu0 0.0
    %1811 = vmatpush1.xpose.msra.mxu0 0.0
    %1812 = vmatprep.subr.mxu0 0.0
    %1813 = vmatpush1.xpose.msra.mxu0 0.0
    %1814 = vmatprep.subr.mxu0 0.0
    %1815 = vmatpush1.xpose.msra.mxu0 0.0
    %1816 = vmatprep.subr.mxu0 0.0
    %1817 = vmatpush1.xpose.msra.mxu0 0.0
    %1818 = vmatprep.subr.mxu0 0.0
    %1819 = vmatpush1.xpose.msra.mxu0 0.0
    %1820 = vmatprep.subr.mxu0 0.0
    %1821 = vmatpush1.xpose.msra.mxu0 0.0
    %1822 = vmatprep.subr.mxu0 0.0
    %1823 = vmatpush1.xpose.msra.mxu0 0.0
    %1824 = vmatprep.subr.mxu0 0.0
    %1825 = vmatpush1.xpose.msra.mxu0 0.0
    %1826 = vmatprep.subr.mxu0 0.0
    %1827 = vmatpush1.xpose.msra.mxu0 0.0
    %1828 = vmatprep.subr.mxu0 0.0
    %1829 = vmatpush1.xpose.msra.mxu0 0.0
    %1830 = vmatprep.subr.mxu0 0.0
    %1831 = vmatpush1.xpose.msra.mxu0 0.0
    %1832 = vmatprep.subr.mxu0 0.0
    %1833 = vmatpush1.xpose.msra.mxu0 0.0
    %1834 = vmatprep.subr.mxu0 0.0
    %1835 = vmatpush1.xpose.msra.mxu0 0.0
    %1836 = vmatprep.subr.mxu0 0.0
    %1837 = vmatpush1.xpose.msra.mxu0 0.0
    %1838 = vmatprep.subr.mxu0 0.0
    %1839 = vmatpush1.xpose.msra.mxu0 0.0
    %1840 = vmatprep.subr.mxu0 0.0
    %1841 = vmatpush1.xpose.msra.mxu0 0.0
    %1842 = vmatprep.subr.mxu0 0.0
    %1843 = vmatpush1.xpose.msra.mxu0 0.0
    %1844 = vmatprep.subr.mxu0 0.0
    %1845 = vmatpush1.xpose.msra.mxu0 0.0
    %1846 = vmatprep.subr.mxu0 0.0
    %1847 = vmatpush1.xpose.msra.mxu0 0.0
    %1848 = vmatprep.subr.mxu0 0.0
    %1849 = vmatpush1.xpose.msra.mxu0 0.0
    %1850 = vmatprep.subr.mxu0 0.0
    %1851 = vmatpush1.xpose.msra.mxu0 0.0
    %1852 = vmatprep.subr.mxu0 0.0
    %1853 = vmatpush1.xpose.msra.mxu0 0.0
    %1854 = vmatprep.subr.mxu0 0.0
    %1855 = vmatpush1.xpose.msra.mxu0 0.0
    %1856 = vmatprep.subr.mxu0 0.0
    %1857 = vmatpush1.xpose.msra.mxu0 0.0
    %1858 = vmatprep.subr.mxu0 0.0
    %1859 = vmatpush1.xpose.msra.mxu0 0.0
    %1860 = vmatprep.subr.mxu0 0.0
    %1861 = vmatpush1.xpose.msra.mxu0 0.0
    %1862 = vmatprep.subr.mxu0 0.0
    %1863 = vmatpush1.xpose.msra.mxu0 0.0
    %1864 = vmatprep.mubr.f32.mxu0 0.0
    %1865 = vmatmul.mubr.f32.gmra.mrb[0].mxu0 %v1792
    %v1866 = vpop.f32.mrb[0].mxu0
    %v1867 = vadd.f32 0.0, %v1866
    %v1868 = vpop.f32.mrb[0].mxu0
    %1869 = vmatprep.mubr.f32.mxu0 0.0
    %1870 = vmatmul.mubr.f32.gmra.mrb[0].mxu0 %v1794
    %v1871 = vpop.f32.mrb[0].mxu0
    %v1872 = vadd.f32 0.0, %v1871
    %v1873 = vpop.f32.mrb[0].mxu0
    %1874 = vdwg.mxu0
    %v1875 = vmul.f32 %v1867, 0.35355338
    %v1876 = vmul.f32 %v1872, 0.35355338
    %v1877 = vadd.f32 %v1875, %v31
    %v1878 = vadd.f32 %v1876, %v32
    %v1879 = vsel %vm314, %v1877, -inf
    %1880 = vmax.xlane.f32.xlu0 %v1879
    %v1881 = vpop.xlane.xlu0 %1880
    %v1882 = vsel %vm314, %v1878, -inf
    %1883 = vmax.xlane.f32.xlu0 %v1882
    %v1884 = vpop.xlane.xlu0 %1883
    %v1885 = vsub.f32 %v1877, %v1881
    %v1886 = vsub.f32 %v1878, %v1884
    %v1887 = vmul.f32 %v1885, 1.442695
    %v1888 = vpow.pop %v1887
    %v1889 = vmul.f32 %v1886, 1.442695
    %v1890 = vpow.pop %v1889
    %v1891 = vsel %vm314, %v1888, 0.0
    %1892 = vadd.xlane.f32.xlu0 %v1891
    %v1893 = vpop.xlane.xlu0 %1892
    %v1894 = vsel %vm314, %v1890, 0.0
    %1895 = vadd.xlane.f32.xlu0 %v1894
    %v1896 = vpop.xlane.xlu0 %1895
    %v1897 = vrcp.pop %v1893
    %v1898 = vrcp.pop %v1896
    %v1899 = vmul.f32 %v1888, %v1897
    %v1900 = vmul.f32 %v1890, %v1898
    %1901 = vrot.lane.b32.xlu0 %v1367, 80
    %v1902 = vpop.permute.xlu0 %1901
    %1903 = vrot.lane.b32.xlu0 %v1372, 80
    %v1904 = vpop.permute.xlu0 %1903
    %v1908 = vsel %vm314, %v1899, 0
    %v1911 = vsel %vm314, %v1900, 0
    %1913 = vmatprep.subr.mxu0 0.0
    %1914 = vmatpush1.msra.mxu0 %v1902
    %1915 = vmatprep.subr.mxu0 0.0
    %1916 = vmatpush1.msra.mxu0 %v1904
    %1917 = vmatprep.subr.mxu0 0.0
    %1918 = vmatpush1.msra.mxu0 0.0
    %1919 = vmatprep.subr.mxu0 0.0
    %1920 = vmatpush1.msra.mxu0 0.0
    %1921 = vmatprep.subr.mxu0 0.0
    %1922 = vmatpush1.msra.mxu0 0.0
    %1923 = vmatprep.subr.mxu0 0.0
    %1924 = vmatpush1.msra.mxu0 0.0
    %1925 = vmatprep.subr.mxu0 0.0
    %1926 = vmatpush1.msra.mxu0 0.0
    %1927 = vmatprep.subr.mxu0 0.0
    %1928 = vmatpush1.msra.mxu0 0.0
    %1929 = vmatprep.subr.mxu0 0.0
    %1930 = vmatpush1.msra.mxu0 0.0
    %1931 = vmatprep.subr.mxu0 0.0
    %1932 = vmatpush1.msra.mxu0 0.0
    %1933 = vmatprep.subr.mxu0 0.0
    %1934 = vmatpush1.msra.mxu0 0.0
    %1935 = vmatprep.subr.mxu0 0.0
    %1936 = vmatpush1.msra.mxu0 0.0
    %1937 = vmatprep.subr.mxu0 0.0
    %1938 = vmatpush1.msra.mxu0 0.0
    %1939 = vmatprep.subr.mxu0 0.0
    %1940 = vmatpush1.msra.mxu0 0.0
    %1941 = vmatprep.subr.mxu0 0.0
    %1942 = vmatpush1.msra.mxu0 0.0
    %1943 = vmatprep.subr.mxu0 0.0
    %1944 = vmatpush1.msra.mxu0 0.0
    %1945 = vmatprep.subr.mxu0 0.0
    %1946 = vmatpush1.msra.mxu0 0.0
    %1947 = vmatprep.subr.mxu0 0.0
    %1948 = vmatpush1.msra.mxu0 0.0
    %1949 = vmatprep.subr.mxu0 0.0
    %1950 = vmatpush1.msra.mxu0 0.0
    %1951 = vmatprep.subr.mxu0 0.0
    %1952 = vmatpush1.msra.mxu0 0.0
    %1953 = vmatprep.subr.mxu0 0.0
    %1954 = vmatpush1.msra.mxu0 0.0
    %1955 = vmatprep.subr.mxu0 0.0
    %1956 = vmatpush1.msra.mxu0 0.0
    %1957 = vmatprep.subr.mxu0 0.0
    %1958 = vmatpush1.msra.mxu0 0.0
    %1959 = vmatprep.subr.mxu0 0.0
    %1960 = vmatpush1.msra.mxu0 0.0
    %1961 = vmatprep.subr.mxu0 0.0
    %1962 = vmatpush1.msra.mxu0 0.0
    %1963 = vmatprep.subr.mxu0 0.0
    %1964 = vmatpush1.msra.mxu0 0.0
    %1965 = vmatprep.subr.mxu0 0.0
    %1966 = vmatpush1.msra.mxu0 0.0
    %1967 = vmatprep.subr.mxu0 0.0
    %1968 = vmatpush1.msra.mxu0 0.0
    %1969 = vmatprep.subr.mxu0 0.0
    %1970 = vmatpush1.msra.mxu0 0.0
    %1971 = vmatprep.subr.mxu0 0.0
    %1972 = vmatpush1.msra.mxu0 0.0
    %1973 = vmatprep.subr.mxu0 0.0
    %1974 = vmatpush1.msra.mxu0 0.0
    %1975 = vmatprep.subr.mxu0 0.0
    %1976 = vmatpush1.msra.mxu0 0.0
    %1977 = vmatprep.mubr.f32.mxu0 0.0
    %1978 = vmatmul.mubr.f32.gmra.mrb[0].mxu0 %v1908
    %v1979 = vpop.f32.mrb[0].mxu0
    %v1980 = vadd.f32 0.0, %v1979
    %v1981 = vpop.f32.mrb[0].mxu0
    %1982 = vmatprep.mubr.f32.mxu0 0.0
    %1983 = vmatmul.mubr.f32.gmra.mrb[0].mxu0 %v1911
    %v1984 = vpop.f32.mrb[0].mxu0
    %v1985 = vadd.f32 0.0, %v1984
    %v1986 = vpop.f32.mrb[0].mxu0
    %1987 = vdwg.mxu0
    %1988 = vrot.lane.b32.xlu0 %v1277, 104
    %v1989 = vpop.permute.xlu0 %1988
    %1990 = vrot.lane.b32.xlu0 %v1282, 104
    %v1991 = vpop.permute.xlu0 %1990
    %1992 = vrot.lane.b32.xlu0 %v1367, 104
    %v1993 = vpop.permute.xlu0 %1992
    %1994 = vrot.lane.b32.xlu0 %v1372, 104
    %v1995 = vpop.permute.xlu0 %1994
    %v1996 = vsel %vm43, %v1989, 0
    %v1998 = vsel %vm43, %v1991, 0
    %v2000 = vsel %vm43, %v1993, 0
    %v2002 = vsel %vm43, %v1995, 0
    %2004 = vmatprep.subr.mxu0 0.0
    %2005 = vmatpush1.xpose.msra.mxu0 %v2000
    %2006 = vmatprep.subr.mxu0 0.0
    %2007 = vmatpush1.xpose.msra.mxu0 %v2002
    %2008 = vmatprep.subr.mxu0 0.0
    %2009 = vmatpush1.xpose.msra.mxu0 0.0
    %2010 = vmatprep.subr.mxu0 0.0
    %2011 = vmatpush1.xpose.msra.mxu0 0.0
    %2012 = vmatprep.subr.mxu0 0.0
    %2013 = vmatpush1.xpose.msra.mxu0 0.0
    %2014 = vmatprep.subr.mxu0 0.0
    %2015 = vmatpush1.xpose.msra.mxu0 0.0
    %2016 = vmatprep.subr.mxu0 0.0
    %2017 = vmatpush1.xpose.msra.mxu0 0.0
    %2018 = vmatprep.subr.mxu0 0.0
    %2019 = vmatpush1.xpose.msra.mxu0 0.0
    %2020 = vmatprep.subr.mxu0 0.0
    %2021 = vmatpush1.xpose.msra.mxu0 0.0
    %2022 = vmatprep.subr.mxu0 0.0
    %2023 = vmatpush1.xpose.msra.mxu0 0.0
    %2024 = vmatprep.subr.mxu0 0.0
    %2025 = vmatpush1.xpose.msra.mxu0 0.0
    %2026 = vmatprep.subr.mxu0 0.0
    %2027 = vmatpush1.xpose.msra.mxu0 0.0
    %2028 = vmatprep.subr.mxu0 0.0
    %2029 = vmatpush1.xpose.msra.mxu0 0.0
    %2030 = vmatprep.subr.mxu0 0.0
    %2031 = vmatpush1.xpose.msra.mxu0 0.0
    %2032 = vmatprep.subr.mxu0 0.0
    %2033 = vmatpush1.xpose.msra.mxu0 0.0
    %2034 = vmatprep.subr.mxu0 0.0
    %2035 = vmatpush1.xpose.msra.mxu0 0.0
    %2036 = vmatprep.subr.mxu0 0.0
    %2037 = vmatpush1.xpose.msra.mxu0 0.0
    %2038 = vmatprep.subr.mxu0 0.0
    %2039 = vmatpush1.xpose.msra.mxu0 0.0
    %2040 = vmatprep.subr.mxu0 0.0
    %2041 = vmatpush1.xpose.msra.mxu0 0.0
    %2042 = vmatprep.subr.mxu0 0.0
    %2043 = vmatpush1.xpose.msra.mxu0 0.0
    %2044 = vmatprep.subr.mxu0 0.0
    %2045 = vmatpush1.xpose.msra.mxu0 0.0
    %2046 = vmatprep.subr.mxu0 0.0
    %2047 = vmatpush1.xpose.msra.mxu0 0.0
    %2048 = vmatprep.subr.mxu0 0.0
    %2049 = vmatpush1.xpose.msra.mxu0 0.0
    %2050 = vmatprep.subr.mxu0 0.0
    %2051 = vmatpush1.xpose.msra.mxu0 0.0
    %2052 = vmatprep.subr.mxu0 0.0
    %2053 = vmatpush1.xpose.msra.mxu0 0.0
    %2054 = vmatprep.subr.mxu0 0.0
    %2055 = vmatpush1.xpose.msra.mxu0 0.0
    %2056 = vmatprep.subr.mxu0 0.0
    %2057 = vmatpush1.xpose.msra.mxu0 0.0
    %2058 = vmatprep.subr.mxu0 0.0
    %2059 = vmatpush1.xpose.msra.mxu0 0.0
    %2060 = vmatprep.subr.mxu0 0.0
    %2061 = vmatpush1.xpose.msra.mxu0 0.0
    %2062 = vmatprep.subr.mxu0 0.0
    %2063 = vmatpush1.xpose.msra.mxu0 0.0
    %2064 = vmatprep.subr.mxu0 0.0
    %2065 = vmatpush1.xpose.msra.mxu0 0.0
    %2066 = vmatprep.subr.mxu0 0.0
    %2067 = vmatpush1.xpose.msra.mxu0 0.0
    %2068 = vmatprep.mubr.f32.mxu0 0.0
    %2069 = vmatmul.mubr.f32.gmra.mrb[0].mxu0 %v1996
    %v2070 = vpop.f32.mrb[0].mxu0
    %v2071 = vadd.f32 0.0, %v2070
    %v2072 = vpop.f32.mrb[0].mxu0
    %2073 = vmatprep.mubr.f32.mxu0 0.0
    %2074 = vmatmul.mubr.f32.gmra.mrb[0].mxu0 %v1998
    %v2075 = vpop.f32.mrb[0].mxu0
    %v2076 = vadd.f32 0.0, %v2075
    %v2077 = vpop.f32.mrb[0].mxu0
    %2078 = vdwg.mxu0
    %v2079 = vmul.f32 %v2071, 0.35355338
    %v2080 = vmul.f32 %v2076, 0.35355338
    %v2081 = vadd.f32 %v2079, %v31
    %v2082 = vadd.f32 %v2080, %v32
    %v2083 = vsel %vm314, %v2081, -inf
    %2084 = vmax.xlane.f32.xlu0 %v2083
    %v2085 = vpop.xlane.xlu0 %2084
    %v2086 = vsel %vm314, %v2082, -inf
    %2087 = vmax.xlane.f32.xlu0 %v2086
    %v2088 = vpop.xlane.xlu0 %2087
    %v2089 = vsub.f32 %v2081, %v2085
    %v2090 = vsub.f32 %v2082, %v2088
    %v2091 = vmul.f32 %v2089, 1.442695
    %v2092 = vpow.pop %v2091
    %v2093 = vmul.f32 %v2090, 1.442695
    %v2094 = vpow.pop %v2093
    %v2095 = vsel %vm314, %v2092, 0.0
    %2096 = vadd.xlane.f32.xlu0 %v2095
    %v2097 = vpop.xlane.xlu0 %2096
    %v2098 = vsel %vm314, %v2094, 0.0
    %2099 = vadd.xlane.f32.xlu0 %v2098
    %v2100 = vpop.xlane.xlu0 %2099
    %v2101 = vrcp.pop %v2097
    %v2102 = vrcp.pop %v2100
    %v2103 = vmul.f32 %v2092, %v2101
    %v2104 = vmul.f32 %v2094, %v2102
    %2105 = vrot.lane.b32.xlu0 %v1367, 72
    %v2106 = vpop.permute.xlu0 %2105
    %2107 = vrot.lane.b32.xlu0 %v1372, 72
    %v2108 = vpop.permute.xlu0 %2107
    %v2112 = vsel %vm314, %v2103, 0
    %v2115 = vsel %vm314, %v2104, 0
    %2117 = vmatprep.subr.mxu0 0.0
    %2118 = vmatpush1.msra.mxu0 %v2106
    %2119 = vmatprep.subr.mxu0 0.0
    %2120 = vmatpush1.msra.mxu0 %v2108
    %2121 = vmatprep.subr.mxu0 0.0
    %2122 = vmatpush1.msra.mxu0 0.0
    %2123 = vmatprep.subr.mxu0 0.0
    %2124 = vmatpush1.msra.mxu0 0.0
    %2125 = vmatprep.subr.mxu0 0.0
    %2126 = vmatpush1.msra.mxu0 0.0
    %2127 = vmatprep.subr.mxu0 0.0
    %2128 = vmatpush1.msra.mxu0 0.0
    %2129 = vmatprep.subr.mxu0 0.0
    %2130 = vmatpush1.msra.mxu0 0.0
    %2131 = vmatprep.subr.mxu0 0.0
    %2132 = vmatpush1.msra.mxu0 0.0
    %2133 = vmatprep.subr.mxu0 0.0
    %2134 = vmatpush1.msra.mxu0 0.0
    %2135 = vmatprep.subr.mxu0 0.0
    %2136 = vmatpush1.msra.mxu0 0.0
    %2137 = vmatprep.subr.mxu0 0.0
    %2138 = vmatpush1.msra.mxu0 0.0
    %2139 = vmatprep.subr.mxu0 0.0
    %2140 = vmatpush1.msra.mxu0 0.0
    %2141 = vmatprep.subr.mxu0 0.0
    %2142 = vmatpush1.msra.mxu0 0.0
    %2143 = vmatprep.subr.mxu0 0.0
    %2144 = vmatpush1.msra.mxu0 0.0
    %2145 = vmatprep.subr.mxu0 0.0
    %2146 = vmatpush1.msra.mxu0 0.0
    %2147 = vmatprep.subr.mxu0 0.0
    %2148 = vmatpush1.msra.mxu0 0.0
    %2149 = vmatprep.subr.mxu0 0.0
    %2150 = vmatpush1.msra.mxu0 0.0
    %2151 = vmatprep.subr.mxu0 0.0
    %2152 = vmatpush1.msra.mxu0 0.0
    %2153 = vmatprep.subr.mxu0 0.0
    %2154 = vmatpush1.msra.mxu0 0.0
    %2155 = vmatprep.subr.mxu0 0.0
    %2156 = vmatpush1.msra.mxu0 0.0
    %2157 = vmatprep.subr.mxu0 0.0
    %2158 = vmatpush1.msra.mxu0 0.0
    %2159 = vmatprep.subr.mxu0 0.0
    %2160 = vmatpush1.msra.mxu0 0.0
    %2161 = vmatprep.subr.mxu0 0.0
    %2162 = vmatpush1.msra.mxu0 0.0
    %2163 = vmatprep.subr.mxu0 0.0
    %2164 = vmatpush1.msra.mxu0 0.0
    %2165 = vmatprep.subr.mxu0 0.0
    %2166 = vmatpush1.msra.mxu0 0.0
    %2167 = vmatprep.subr.mxu0 0.0
    %2168 = vmatpush1.msra.mxu0 0.0
    %2169 = vmatprep.subr.mxu0 0.0
    %2170 = vmatpush1.msra.mxu0 0.0
    %2171 = vmatprep.subr.mxu0 0.0
    %2172 = vmatpush1.msra.mxu0 0.0
    %2173 = vmatprep.subr.mxu0 0.0
    %2174 = vmatpush1.msra.mxu0 0.0
    %2175 = vmatprep.subr.mxu0 0.0
    %2176 = vmatpush1.msra.mxu0 0.0
    %2177 = vmatprep.subr.mxu0 0.0
    %2178 = vmatpush1.msra.mxu0 0.0
    %2179 = vmatprep.subr.mxu0 0.0
    %2180 = vmatpush1.msra.mxu0 0.0
    %2181 = vmatprep.mubr.f32.mxu0 0.0
    %2182 = vmatmul.mubr.f32.gmra.mrb[0].mxu0 %v2112
    %v2183 = vpop.f32.mrb[0].mxu0
    %v2184 = vadd.f32 0.0, %v2183
    %v2185 = vpop.f32.mrb[0].mxu0
    %2186 = vmatprep.mubr.f32.mxu0 0.0
    %2187 = vmatmul.mubr.f32.gmra.mrb[0].mxu0 %v2115
    %v2188 = vpop.f32.mrb[0].mxu0
    %v2189 = vadd.f32 0.0, %v2188
    %v2190 = vpop.f32.mrb[0].mxu0
    %2191 = vdwg.mxu0
    %2194 = vrot.lane.b32.xlu0 %v1776, 8
    %v2195 = vpop.permute.xlu0 %2194
    %2196 = vrot.lane.b32.xlu0 %v1781, 8
    %v2197 = vpop.permute.xlu0 %2196
    %2202 = vrot.lane.b32.xlu0 %v1980, 16
    %v2203 = vpop.permute.xlu0 %2202
    %2204 = vrot.lane.b32.xlu0 %v1985, 16
    %v2205 = vpop.permute.xlu0 %2204
    %2210 = vrot.lane.b32.xlu0 %v2184, 24
    %v2211 = vpop.permute.xlu0 %2210
    %2212 = vrot.lane.b32.xlu0 %v2189, 24
    %v2213 = vpop.permute.xlu0 %2212
    %v2216 = vsel %vm43, %v1572, %v2195
    %v2217 = vsel %vm43, %v1577, %v2197
    %v2218 = vsel %vm314, %v2216, %v2203
    %v2219 = vsel %vm314, %v2217, %v2205
    %v2220 = vsel %vm1064, %v2218, %v2211
    %v2221 = vsel %vm1064, %v2219, %v2213
    %v2222 = vlaneseq
    %v2223 = vshrl.u32 %v2222, 7
    %v2224 = vsub.s32 0, %v2223
    %v2225 = vrot.slane %v1379, %v2224
    %v2227 = vsel %vm134, %v2220, 0
    %v2230 = vsel %vm134, %v2221, 0
    %2232 = vmatprep.subr.mxu0 0.0
    %2233 = vmatpush1.msra.mxu0 %v1375
    %2234 = vmatprep.subr.mxu0 0.0
    %2235 = vmatpush1.msra.mxu0 %v1376
    %2236 = vmatprep.subr.mxu0 0.0
    %2237 = vmatpush1.msra.mxu0 %v1377
    %2238 = vmatprep.subr.mxu0 0.0
    %2239 = vmatpush1.msra.mxu0 %v1378
    %2240 = vmatprep.subr.mxu0 0.0
    %2241 = vmatpush1.msra.mxu0 0.0
    %2242 = vmatprep.subr.mxu0 0.0
    %2243 = vmatpush1.msra.mxu0 0.0
    %2244 = vmatprep.subr.mxu0 0.0
    %2245 = vmatpush1.msra.mxu0 0.0
    %2246 = vmatprep.subr.mxu0 0.0
    %2247 = vmatpush1.msra.mxu0 0.0
    %2248 = vmatprep.subr.mxu0 0.0
    %2249 = vmatpush1.msra.mxu0 0.0
    %2250 = vmatprep.subr.mxu0 0.0
    %2251 = vmatpush1.msra.mxu0 0.0
    %2252 = vmatprep.subr.mxu0 0.0
    %2253 = vmatpush1.msra.mxu0 0.0
    %2254 = vmatprep.subr.mxu0 0.0
    %2255 = vmatpush1.msra.mxu0 0.0
    %2256 = vmatprep.subr.mxu0 0.0
    %2257 = vmatpush1.msra.mxu0 0.0
    %2258 = vmatprep.subr.mxu0 0.0
    %2259 = vmatpush1.msra.mxu0 0.0
    %2260 = vmatprep.subr.mxu0 0.0
    %2261 = vmatpush1.msra.mxu0 0.0
    %2262 = vmatprep.subr.mxu0 0.0
    %2263 = vmatpush1.msra.mxu0 0.0
    %2264 = vmatprep.subr.mxu0 0.0
    %2265 = vmatpush1.msra.mxu0 0.0
    %2266 = vmatprep.subr.mxu0 0.0
    %2267 = vmatpush1.msra.mxu0 0.0
    %2268 = vmatprep.subr.mxu0 0.0
    %2269 = vmatpush1.msra.mxu0 0.0
    %2270 = vmatprep.subr.mxu0 0.0
    %2271 = vmatpush1.msra.mxu0 0.0
    %2272 = vmatprep.subr.mxu0 0.0
    %2273 = vmatpush1.msra.mxu0 0.0
    %2274 = vmatprep.subr.mxu0 0.0
    %2275 = vmatpush1.msra.mxu0 0.0
    %2276 = vmatprep.subr.mxu0 0.0
    %2277 = vmatpush1.msra.mxu0 0.0
    %2278 = vmatprep.subr.mxu0 0.0
    %2279 = vmatpush1.msra.mxu0 0.0
    %2280 = vmatprep.subr.mxu0 0.0
    %2281 = vmatpush1.msra.mxu0 0.0
    %2282 = vmatprep.subr.mxu0 0.0
    %2283 = vmatpush1.msra.mxu0 0.0
    %2284 = vmatprep.subr.mxu0 0.0
    %2285 = vmatpush1.msra.mxu0 0.0
    %2286 = vmatprep.subr.mxu0 0.0
    %2287 = vmatpush1.msra.mxu0 0.0
    %2288 = vmatprep.subr.mxu0 0.0
    %2289 = vmatpush1.msra.mxu0 0.0
    %2290 = vmatprep.subr.mxu0 0.0
    %2291 = vmatpush1.msra.mxu0 0.0
    %2292 = vmatprep.subr.mxu0 0.0
    %2293 = vmatpush1.msra.mxu0 0.0
    %2294 = vmatprep.subr.mxu0 0.0
    %2295 = vmatpush1.msra.mxu0 0.0
    %2296 = vmatprep.mubr.f32.mxu0 0.0
    %2297 = vmatmul.mubr.f32.gmra.mrb[0].mxu0 %v2227
    %v2298 = vpop.f32.mrb[0].mxu0
    %v2299 = vadd.f32 %v2225, %v2298
    %v2300 = vpop.f32.mrb[0].mxu0
    %2301 = vmatprep.mubr.f32.mxu0 0.0
    %2302 = vmatmul.mubr.f32.gmra.mrb[0].mxu0 %v2230
    %v2303 = vpop.f32.mrb[0].mxu0
    %v2304 = vadd.f32 %v2225, %v2303
    %v2305 = vpop.f32.mrb[0].mxu0
    %2306 = vdwg.mxu0
    %v2307 = vadd.f32 %v1193, %v2299
    %v2308 = vadd.f32 %v1194, %v2304
    %v2309 = vld [vmem:[#allocation2 + $0x158] sm:$0x1]
    %v2310 = vld [vmem:[#allocation2 + $0x160] sm:$0x1]
    %v2311 = vsel %vm134, %v2307, 0.0
    %2312 = vadd.xlane.f32.xlu0 %v2311
    %v2313 = vpop.xlane.xlu0 %2312
    %v2314 = vsel %vm134, %v2308, 0.0
    %2315 = vadd.xlane.f32.xlu0 %v2314
    %v2316 = vpop.xlane.xlu0 %2315
    %v2317 = vmul.f32 %v2313, %v1162
    %v2318 = vmul.f32 %v2316, %v1162
    %v2319 = vsub.f32 %v2307, %v2317
    %v2320 = vsub.f32 %v2308, %v2318
    %v2321 = vmul.f32 %v2319, %v2319
    %v2322 = vmul.f32 %v2320, %v2320
    %v2323 = vsel %vm134, %v2321, 0.0
    %2324 = vadd.xlane.f32.xlu0 %v2323
    %v2325 = vpop.xlane.xlu0 %2324
    %v2326 = vsel %vm134, %v2322, 0.0
    %2327 = vadd.xlane.f32.xlu0 %v2326
    %v2328 = vpop.xlane.xlu0 %2327
    %v2329 = vmul.f32 %v2325, %v1162
    %v2330 = vmul.f32 %v2328, %v1162
    %v2331 = vadd.f32 %v2329, 1e-05
    %v2332 = vadd.f32 %v2330, 1e-05
    %v2333 = vrsqrt.pop %v2331
    %v2334 = vrsqrt.pop %v2332
    %v2335 = vmul.f32 %v2319, %v2333
    %v2336 = vmul.f32 %v2320, %v2334
    %v2337 = vlaneseq
    %v2338 = vshrl.u32 %v2337, 7
    %v2339 = vsub.s32 0, %v2338
    %v2340 = vrot.slane %v2309, %v2339
    %v2341 = vmul.f32 %v2335, %v2340
    %v2342 = vmul.f32 %v2336, %v2340
    %v2343 = vlaneseq
    %v2344 = vshrl.u32 %v2343, 7
    %v2345 = vsub.s32 0, %v2344
    %v2346 = vrot.slane %v2310, %v2345
    %v2347 = vadd.f32 %v2341, %v2346
    %v2348 = vadd.f32 %v2342, %v2346
    %v2349 = vld [vmem:[#allocation2 + $0xd8] sm:$0xff]
    %v2350 = vld [vmem:[#allocation2 + $0xe0] sm:$0xff]
    %v2351 = vld [vmem:[#allocation2 + $0xe8] sm:$0xff]
    %v2352 = vld [vmem:[#allocation2 + $0xf0] sm:$0xff]
    %v2353 = vld [vmem:[#allocation2 + $0xf8] sm:$0x1]
    %v2354 = vlaneseq
    %v2355 = vshrl.u32 %v2354, 7
    %v2356 = vsub.s32 0, %v2355
    %v2357 = vrot.slane %v2353, %v2356
    %v2359 = vsel %vm134, %v2347, 0
    %v2362 = vsel %vm134, %v2348, 0
    %2364 = vmatprep.subr.mxu0 0.0
    %2365 = vmatpush1.msra.mxu0 %v2349
    %2366 = vmatprep.subr.mxu0 0.0
    %2367 = vmatpush1.msra.mxu0 %v2350
    %2368 = vmatprep.subr.mxu0 0.0
    %2369 = vmatpush1.msra.mxu0 %v2351
    %2370 = vmatprep.subr.mxu0 0.0
    %2371 = vmatpush1.msra.mxu0 %v2352
    %2372 = vmatprep.subr.mxu0 0.0
    %2373 = vmatpush1.msra.mxu0 0.0
    %2374 = vmatprep.subr.mxu0 0.0
    %2375 = vmatpush1.msra.mxu0 0.0
    %2376 = vmatprep.subr.mxu0 0.0
    %2377 = vmatpush1.msra.mxu0 0.0
    %2378 = vmatprep.subr.mxu0 0.0
    %2379 = vmatpush1.msra.mxu0 0.0
    %2380 = vmatprep.subr.mxu0 0.0
    %2381 = vmatpush1.msra.mxu0 0.0
    %2382 = vmatprep.subr.mxu0 0.0
    %2383 = vmatpush1.msra.mxu0 0.0
    %2384 = vmatprep.subr.mxu0 0.0
    %2385 = vmatpush1.msra.mxu0 0.0
    %2386 = vmatprep.subr.mxu0 0.0
    %2387 = vmatpush1.msra.mxu0 0.0
    %2388 = vmatprep.subr.mxu0 0.0
    %2389 = vmatpush1.msra.mxu0 0.0
    %2390 = vmatprep.subr.mxu0 0.0
    %2391 = vmatpush1.msra.mxu0 0.0
    %2392 = vmatprep.subr.mxu0 0.0
    %2393 = vmatpush1.msra.mxu0 0.0
    %2394 = vmatprep.subr.mxu0 0.0
    %2395 = vmatpush1.msra.mxu0 0.0
    %2396 = vmatprep.subr.mxu0 0.0
    %2397 = vmatpush1.msra.mxu0 0.0
    %2398 = vmatprep.subr.mxu0 0.0
    %2399 = vmatpush1.msra.mxu0 0.0
    %2400 = vmatprep.subr.mxu0 0.0
    %2401 = vmatpush1.msra.mxu0 0.0
    %2402 = vmatprep.subr.mxu0 0.0
    %2403 = vmatpush1.msra.mxu0 0.0
    %2404 = vmatprep.subr.mxu0 0.0
    %2405 = vmatpush1.msra.mxu0 0.0
    %2406 = vmatprep.subr.mxu0 0.0
    %2407 = vmatpush1.msra.mxu0 0.0
    %2408 = vmatprep.subr.mxu0 0.0
    %2409 = vmatpush1.msra.mxu0 0.0
    %2410 = vmatprep.subr.mxu0 0.0
    %2411 = vmatpush1.msra.mxu0 0.0
    %2412 = vmatprep.subr.mxu0 0.0
    %2413 = vmatpush1.msra.mxu0 0.0
    %2414 = vmatprep.subr.mxu0 0.0
    %2415 = vmatpush1.msra.mxu0 0.0
    %2416 = vmatprep.subr.mxu0 0.0
    %2417 = vmatpush1.msra.mxu0 0.0
    %2418 = vmatprep.subr.mxu0 0.0
    %2419 = vmatpush1.msra.mxu0 0.0
    %2420 = vmatprep.subr.mxu0 0.0
    %2421 = vmatpush1.msra.mxu0 0.0
    %2422 = vmatprep.subr.mxu0 0.0
    %2423 = vmatpush1.msra.mxu0 0.0
    %2424 = vmatprep.subr.mxu0 0.0
    %2425 = vmatpush1.msra.mxu0 0.0
    %2426 = vmatprep.subr.mxu0 0.0
    %2427 = vmatpush1.msra.mxu0 0.0
    %2428 = vmatprep.mubr.f32.mxu0 0.0
    %2429 = vmatmul.mubr.f32.gmra.mrb[0].mxu0 %v2359
    %v2430 = vpop.f32.mrb[0].mxu0
    %v2431 = vadd.f32 %v2357, %v2430
    %v2432 = vpop.f32.mrb[0].mxu0
    %2433 = vmatprep.mubr.f32.mxu0 0.0
    %2434 = vmatmul.mubr.f32.gmra.mrb[0].mxu0 %v2362
    %v2435 = vpop.f32.mrb[0].mxu0
    %v2436 = vadd.f32 %v2357, %v2435
    %v2437 = vpop.f32.mrb[0].mxu0
    %2438 = vdwg.mxu0
    %v2439 = vmax.f32 %v2431, 0.0
    %v2440 = vmax.f32 %v2436, 0.0
    %v2441 = vld [vmem:[#allocation2 + $0x100] sm:$0xff]
    %v2442 = vld [vmem:[#allocation2 + $0x108] sm:$0xff]
    %v2443 = vld [vmem:[#allocation2 + $0x110] sm:$0xff]
    %v2444 = vld [vmem:[#allocation2 + $0x118] sm:$0xff]
    %v2445 = vld [vmem:[#allocation2 + $0x120] sm:$0xff]
    %v2446 = vld [vmem:[#allocation2 + $0x128] sm:$0xff]
    %v2447 = vld [vmem:[#allocation2 + $0x130] sm:$0xff]
    %v2448 = vld [vmem:[#allocation2 + $0x138] sm:$0xff]
    %v2449 = vld [vmem:[#allocation2 + $0x140] sm:$0x1]
    %v2450 = vlaneseq
    %v2451 = vshrl.u32 %v2450, 7
    %v2452 = vsub.s32 0, %v2451
    %v2453 = vrot.slane %v2449, %v2452
    %vm2454 = vcmask 523264
    %v2456 = vsel %vm2454, %v2439, 0
    %v2459 = vsel %vm2454, %v2440, 0
    %2461 = vmatprep.subr.mxu0 0.0
    %2462 = vmatpush1.msra.mxu0 %v2441
    %2463 = vmatprep.subr.mxu0 0.0
    %2464 = vmatpush1.msra.mxu0 %v2442
    %2465 = vmatprep.subr.mxu0 0.0
    %2466 = vmatpush1.msra.mxu0 %v2443
    %2467 = vmatprep.subr.mxu0 0.0
    %2468 = vmatpush1.msra.mxu0 %v2444
    %2469 = vmatprep.subr.mxu0 0.0
    %2470 = vmatpush1.msra.mxu0 %v2445
    %2471 = vmatprep.subr.mxu0 0.0
    %2472 = vmatpush1.msra.mxu0 %v2446
    %2473 = vmatprep.subr.mxu0 0.0
    %2474 = vmatpush1.msra.mxu0 %v2447
    %2475 = vmatprep.subr.mxu0 0.0
    %2476 = vmatpush1.msra.mxu0 %v2448
    %2477 = vmatprep.subr.mxu0 0.0
    %2478 = vmatpush1.msra.mxu0 0.0
    %2479 = vmatprep.subr.mxu0 0.0
    %2480 = vmatpush1.msra.mxu0 0.0
    %2481 = vmatprep.subr.mxu0 0.0
    %2482 = vmatpush1.msra.mxu0 0.0
    %2483 = vmatprep.subr.mxu0 0.0
    %2484 = vmatpush1.msra.mxu0 0.0
    %2485 = vmatprep.subr.mxu0 0.0
    %2486 = vmatpush1.msra.mxu0 0.0
    %2487 = vmatprep.subr.mxu0 0.0
    %2488 = vmatpush1.msra.mxu0 0.0
    %2489 = vmatprep.subr.mxu0 0.0
    %2490 = vmatpush1.msra.mxu0 0.0
    %2491 = vmatprep.subr.mxu0 0.0
    %2492 = vmatpush1.msra.mxu0 0.0
    %2493 = vmatprep.subr.mxu0 0.0
    %2494 = vmatpush1.msra.mxu0 0.0
    %2495 = vmatprep.subr.mxu0 0.0
    %2496 = vmatpush1.msra.mxu0 0.0
    %2497 = vmatprep.subr.mxu0 0.0
    %2498 = vmatpush1.msra.mxu0 0.0
    %2499 = vmatprep.subr.mxu0 0.0
    %2500 = vmatpush1.msra.mxu0 0.0
    %2501 = vmatprep.subr.mxu0 0.0
    %2502 = vmatpush1.msra.mxu0 0.0
    %2503 = vmatprep.subr.mxu0 0.0
    %2504 = vmatpush1.msra.mxu0 0.0
    %2505 = vmatprep.subr.mxu0 0.0
    %2506 = vmatpush1.msra.mxu0 0.0
    %2507 = vmatprep.subr.mxu0 0.0
    %2508 = vmatpush1.msra.mxu0 0.0
    %2509 = vmatprep.subr.mxu0 0.0
    %2510 = vmatpush1.msra.mxu0 0.0
    %2511 = vmatprep.subr.mxu0 0.0
    %2512 = vmatpush1.msra.mxu0 0.0
    %2513 = vmatprep.subr.mxu0 0.0
    %2514 = vmatpush1.msra.mxu0 0.0
    %2515 = vmatprep.subr.mxu0 0.0
    %2516 = vmatpush1.msra.mxu0 0.0
    %2517 = vmatprep.subr.mxu0 0.0
    %2518 = vmatpush1.msra.mxu0 0.0
    %2519 = vmatprep.subr.mxu0 0.0
    %2520 = vmatpush1.msra.mxu0 0.0
    %2521 = vmatprep.subr.mxu0 0.0
    %2522 = vmatpush1.msra.mxu0 0.0
    %2523 = vmatprep.subr.mxu0 0.0
    %2524 = vmatpush1.msra.mxu0 0.0
    %2525 = vmatprep.mubr.f32.mxu0 0.0
    %2526 = vmatmul.mubr.f32.gmra.mrb[0].mxu0 %v2456
    %v2527 = vpop.f32.mrb[0].mxu0
    %v2528 = vadd.f32 %v2453, %v2527
    %v2529 = vpop.f32.mrb[0].mxu0
    %2530 = vmatprep.mubr.f32.mxu0 0.0
    %2531 = vmatmul.mubr.f32.gmra.mrb[0].mxu0 %v2459
    %v2532 = vpop.f32.mrb[0].mxu0
    %v2533 = vadd.f32 %v2453, %v2532
    %v2534 = vpop.f32.mrb[0].mxu0
    %2535 = vdwg.mxu0
    %v2536 = vadd.f32 %v2347, %v2528
    %v2537 = vadd.f32 %v2348, %v2533
    %v2538 = vld [vmem:[#allocation2 + $0x168] sm:$0x1]
    %v2539 = vld [vmem:[#allocation2 + $0x170] sm:$0x1]
    %v2540 = vsel %vm134, %v2536, 0.0
    %2541 = vadd.xlane.f32.xlu0 %v2540
    %v2542 = vpop.xlane.xlu0 %2541
    %v2543 = vsel %vm134, %v2537, 0.0
    %2544 = vadd.xlane.f32.xlu0 %v2543
    %v2545 = vpop.xlane.xlu0 %2544
    %v2546 = vmul.f32 %v2542, %v1162
    %v2547 = vmul.f32 %v2545, %v1162
    %v2548 = vsub.f32 %v2536, %v2546
    %v2549 = vsub.f32 %v2537, %v2547
    %v2550 = vmul.f32 %v2548, %v2548
    %v2551 = vmul.f32 %v2549, %v2549
    %v2552 = vsel %vm134, %v2550, 0.0
    %2553 = vadd.xlane.f32.xlu0 %v2552
    %v2554 = vpop.xlane.xlu0 %2553
    %v2555 = vsel %vm134, %v2551, 0.0
    %2556 = vadd.xlane.f32.xlu0 %v2555
    %v2557 = vpop.xlane.xlu0 %2556
    %v2558 = vmul.f32 %v2554, %v1162
    %v2559 = vmul.f32 %v2557, %v1162
    %v2560 = vadd.f32 %v2558, 1e-05
    %v2561 = vadd.f32 %v2559, 1e-05
    %v2562 = vrsqrt.pop %v2560
    %v2563 = vrsqrt.pop %v2561
    %v2564 = vmul.f32 %v2548, %v2562
    %v2565 = vmul.f32 %v2549, %v2563
    %v2566 = vlaneseq
    %v2567 = vshrl.u32 %v2566, 7
    %v2568 = vsub.s32 0, %v2567
    %v2569 = vrot.slane %v2538, %v2568
    %v2570 = vmul.f32 %v2564, %v2569
    %v2571 = vmul.f32 %v2565, %v2569
    %v2572 = vlaneseq
    %v2573 = vshrl.u32 %v2572, 7
    %v2574 = vsub.s32 0, %v2573
    %v2575 = vrot.slane %v2539, %v2574
    %v2576 = vadd.f32 %v2570, %v2575
    %v2577 = vadd.f32 %v2571, %v2575
    %v2578 = vld [vmem:[#allocation2 + $0x178] sm:$0xff]
    %v2579 = vld [vmem:[#allocation2 + $0x180] sm:$0xff]
    %v2580 = vld [vmem:[#allocation2 + $0x188] sm:$0xff]
    %v2581 = vld [vmem:[#allocation2 + $0x190] sm:$0xff]
    %v2582 = vld [vmem:[#allocation2 + $0x198] sm:$0x1]
    %v2583 = vlaneseq
    %v2584 = vshrl.u32 %v2583, 7
    %v2585 = vsub.s32 0, %v2584
    %v2586 = vrot.slane %v2582, %v2585
    %v2588 = vsel %vm134, %v2576, 0
    %v2591 = vsel %vm134, %v2577, 0
    %2593 = vmatprep.subr.mxu0 0.0
    %2594 = vmatpush1.msra.mxu0 %v2578
    %2595 = vmatprep.subr.mxu0 0.0
    %2596 = vmatpush1.msra.mxu0 %v2579
    %2597 = vmatprep.subr.mxu0 0.0
    %2598 = vmatpush1.msra.mxu0 %v2580
    %2599 = vmatprep.subr.mxu0 0.0
    %2600 = vmatpush1.msra.mxu0 %v2581
    %2601 = vmatprep.subr.mxu0 0.0
    %2602 = vmatpush1.msra.mxu0 0.0
    %2603 = vmatprep.subr.mxu0 0.0
    %2604 = vmatpush1.msra.mxu0 0.0
    %2605 = vmatprep.subr.mxu0 0.0
    %2606 = vmatpush1.msra.mxu0 0.0
    %2607 = vmatprep.subr.mxu0 0.0
    %2608 = vmatpush1.msra.mxu0 0.0
    %2609 = vmatprep.subr.mxu0 0.0
    %2610 = vmatpush1.msra.mxu0 0.0
    %2611 = vmatprep.subr.mxu0 0.0
    %2612 = vmatpush1.msra.mxu0 0.0
    %2613 = vmatprep.subr.mxu0 0.0
    %2614 = vmatpush1.msra.mxu0 0.0
    %2615 = vmatprep.subr.mxu0 0.0
    %2616 = vmatpush1.msra.mxu0 0.0
    %2617 = vmatprep.subr.mxu0 0.0
    %2618 = vmatpush1.msra.mxu0 0.0
    %2619 = vmatprep.subr.mxu0 0.0
    %2620 = vmatpush1.msra.mxu0 0.0
    %2621 = vmatprep.subr.mxu0 0.0
    %2622 = vmatpush1.msra.mxu0 0.0
    %2623 = vmatprep.subr.mxu0 0.0
    %2624 = vmatpush1.msra.mxu0 0.0
    %2625 = vmatprep.subr.mxu0 0.0
    %2626 = vmatpush1.msra.mxu0 0.0
    %2627 = vmatprep.subr.mxu0 0.0
    %2628 = vmatpush1.msra.mxu0 0.0
    %2629 = vmatprep.subr.mxu0 0.0
    %2630 = vmatpush1.msra.mxu0 0.0
    %2631 = vmatprep.subr.mxu0 0.0
    %2632 = vmatpush1.msra.mxu0 0.0
    %2633 = vmatprep.subr.mxu0 0.0
    %2634 = vmatpush1.msra.mxu0 0.0
    %2635 = vmatprep.subr.mxu0 0.0
    %2636 = vmatpush1.msra.mxu0 0.0
    %2637 = vmatprep.subr.mxu0 0.0
    %2638 = vmatpush1.msra.mxu0 0.0
    %2639 = vmatprep.subr.mxu0 0.0
    %2640 = vmatpush1.msra.mxu0 0.0
    %2641 = vmatprep.subr.mxu0 0.0
    %2642 = vmatpush1.msra.mxu0 0.0
    %2643 = vmatprep.subr.mxu0 0.0
    %2644 = vmatpush1.msra.mxu0 0.0
    %2645 = vmatprep.subr.mxu0 0.0
    %2646 = vmatpush1.msra.mxu0 0.0
    %2647 = vmatprep.subr.mxu0 0.0
    %2648 = vmatpush1.msra.mxu0 0.0
    %2649 = vmatprep.subr.mxu0 0.0
    %2650 = vmatpush1.msra.mxu0 0.0
    %2651 = vmatprep.subr.mxu0 0.0
    %2652 = vmatpush1.msra.mxu0 0.0
    %2653 = vmatprep.subr.mxu0 0.0
    %2654 = vmatpush1.msra.mxu0 0.0
    %2655 = vmatprep.subr.mxu0 0.0
    %2656 = vmatpush1.msra.mxu0 0.0
    %2657 = vmatprep.mubr.f32.mxu0 0.0
    %2658 = vmatmul.mubr.f32.gmra.mrb[0].mxu0 %v2588
    %v2659 = vpop.f32.mrb[0].mxu0
    %v2660 = vadd.f32 %v2586, %v2659
    %v2661 = vpop.f32.mrb[0].mxu0
    %2662 = vmatprep.mubr.f32.mxu0 0.0
    %2663 = vmatmul.mubr.f32.gmra.mrb[0].mxu0 %v2591
    %v2664 = vpop.f32.mrb[0].mxu0
    %v2665 = vadd.f32 %v2586, %v2664
    %v2666 = vpop.f32.mrb[0].mxu0
    %2667 = vdwg.mxu0
    %v2668 = vld [vmem:[#allocation2 + $0x1a0] sm:$0xff]
    %v2669 = vld [vmem:[#allocation2 + $0x1a8] sm:$0xff]
    %v2670 = vld [vmem:[#allocation2 + $0x1b0] sm:$0xff]
    %v2671 = vld [vmem:[#allocation2 + $0x1b8] sm:$0xff]
    %v2672 = vld [vmem:[#allocation2 + $0x1c0] sm:$0x1]
    %2675 = vrot.lane.b32.xlu0 %v2660, 96
    %v2676 = vpop.permute.xlu0 %2675
    %2677 = vrot.lane.b32.xlu0 %v2665, 96
    %v2678 = vpop.permute.xlu0 %2677
    %v2679 = vsel %vm43, %v2660, 0
    %v2681 = vsel %vm43, %v2665, 0
    %v2683 = vsel %vm43, %v2676, 0
    %v2685 = vsel %vm43, %v2678, 0
    %2687 = vmatprep.subr.mxu0 0.0
    %2688 = vmatpush1.xpose.msra.mxu0 %v2683
    %2689 = vmatprep.subr.mxu0 0.0
    %2690 = vmatpush1.xpose.msra.mxu0 %v2685
    %2691 = vmatprep.subr.mxu0 0.0
    %2692 = vmatpush1.xpose.msra.mxu0 0.0
    %2693 = vmatprep.subr.mxu0 0.0
    %2694 = vmatpush1.xpose.msra.mxu0 0.0
    %2695 = vmatprep.subr.mxu0 0.0
    %2696 = vmatpush1.xpose.msra.mxu0 0.0
    %2697 = vmatprep.subr.mxu0 0.0
    %2698 = vmatpush1.xpose.msra.mxu0 0.0
    %2699 = vmatprep.subr.mxu0 0.0
    %2700 = vmatpush1.xpose.msra.mxu0 0.0
    %2701 = vmatprep.subr.mxu0 0.0
    %2702 = vmatpush1.xpose.msra.mxu0 0.0
    %2703 = vmatprep.subr.mxu0 0.0
    %2704 = vmatpush1.xpose.msra.mxu0 0.0
    %2705 = vmatprep.subr.mxu0 0.0
    %2706 = vmatpush1.xpose.msra.mxu0 0.0
    %2707 = vmatprep.subr.mxu0 0.0
    %2708 = vmatpush1.xpose.msra.mxu0 0.0
    %2709 = vmatprep.subr.mxu0 0.0
    %2710 = vmatpush1.xpose.msra.mxu0 0.0
    %2711 = vmatprep.subr.mxu0 0.0
    %2712 = vmatpush1.xpose.msra.mxu0 0.0
    %2713 = vmatprep.subr.mxu0 0.0
    %2714 = vmatpush1.xpose.msra.mxu0 0.0
    %2715 = vmatprep.subr.mxu0 0.0
    %2716 = vmatpush1.xpose.msra.mxu0 0.0
    %2717 = vmatprep.subr.mxu0 0.0
    %2718 = vmatpush1.xpose.msra.mxu0 0.0
    %2719 = vmatprep.subr.mxu0 0.0
    %2720 = vmatpush1.xpose.msra.mxu0 0.0
    %2721 = vmatprep.subr.mxu0 0.0
    %2722 = vmatpush1.xpose.msra.mxu0 0.0
    %2723 = vmatprep.subr.mxu0 0.0
    %2724 = vmatpush1.xpose.msra.mxu0 0.0
    %2725 = vmatprep.subr.mxu0 0.0
    %2726 = vmatpush1.xpose.msra.mxu0 0.0
    %2727 = vmatprep.subr.mxu0 0.0
    %2728 = vmatpush1.xpose.msra.mxu0 0.0
    %2729 = vmatprep.subr.mxu0 0.0
    %2730 = vmatpush1.xpose.msra.mxu0 0.0
    %2731 = vmatprep.subr.mxu0 0.0
    %2732 = vmatpush1.xpose.msra.mxu0 0.0
    %2733 = vmatprep.subr.mxu0 0.0
    %2734 = vmatpush1.xpose.msra.mxu0 0.0
    %2735 = vmatprep.subr.mxu0 0.0
    %2736 = vmatpush1.xpose.msra.mxu0 0.0
    %2737 = vmatprep.subr.mxu0 0.0
    %2738 = vmatpush1.xpose.msra.mxu0 0.0
    %2739 = vmatprep.subr.mxu0 0.0
    %2740 = vmatpush1.xpose.msra.mxu0 0.0
    %2741 = vmatprep.subr.mxu0 0.0
    %2742 = vmatpush1.xpose.msra.mxu0 0.0
    %2743 = vmatprep.subr.mxu0 0.0
    %2744 = vmatpush1.xpose.msra.mxu0 0.0
    %2745 = vmatprep.subr.mxu0 0.0
    %2746 = vmatpush1.xpose.msra.mxu0 0.0
    %2747 = vmatprep.subr.mxu0 0.0
    %2748 = vmatpush1.xpose.msra.mxu0 0.0
    %2749 = vmatprep.subr.mxu0 0.0
    %2750 = vmatpush1.xpose.msra.mxu0 0.0
    %2751 = vmatprep.mubr.f32.mxu0 0.0
    %2752 = vmatmul.mubr.f32.gmra.mrb[0].mxu0 %v2679
    %v2753 = vpop.f32.mrb[0].mxu0
    %v2754 = vadd.f32 0.0, %v2753
    %v2755 = vpop.f32.mrb[0].mxu0
    %2756 = vmatprep.mubr.f32.mxu0 0.0
    %2757 = vmatmul.mubr.f32.gmra.mrb[0].mxu0 %v2681
    %v2758 = vpop.f32.mrb[0].mxu0
    %v2759 = vadd.f32 0.0, %v2758
    %v2760 = vpop.f32.mrb[0].mxu0
    %2761 = vdwg.mxu0
    %v2762 = vmul.f32 %v2754, 0.35355338
    %v2763 = vmul.f32 %v2759, 0.35355338
    %v2764 = vadd.f32 %v2762, %v29
    %v2765 = vadd.f32 %v2763, %v30
    %v2766 = vsel %vm314, %v2764, -inf
    %2767 = vmax.xlane.f32.xlu0 %v2766
    %v2768 = vpop.xlane.xlu0 %2767
    %v2769 = vsel %vm314, %v2765, -inf
    %2770 = vmax.xlane.f32.xlu0 %v2769
    %v2771 = vpop.xlane.xlu0 %2770
    %v2772 = vsub.f32 %v2764, %v2768
    %v2773 = vsub.f32 %v2765, %v2771
    %v2774 = vmul.f32 %v2772, 1.442695
    %v2775 = vpow.pop %v2774
    %v2776 = vmul.f32 %v2773, 1.442695
    %v2777 = vpow.pop %v2776
    %v2778 = vsel %vm314, %v2775, 0.0
    %2779 = vadd.xlane.f32.xlu0 %v2778
    %v2780 = vpop.xlane.xlu0 %2779
    %v2781 = vsel %vm314, %v2777, 0.0
    %2782 = vadd.xlane.f32.xlu0 %v2781
    %v2783 = vpop.xlane.xlu0 %2782
    %v2784 = vrcp.pop %v2780
    %v2785 = vrcp.pop %v2783
    %v2786 = vmul.f32 %v2775, %v2784
    %v2787 = vmul.f32 %v2777, %v2785
    %2788 = vrot.lane.b32.xlu0 %v2660, 64
    %v2789 = vpop.permute.xlu0 %2788
    %2790 = vrot.lane.b32.xlu0 %v2665, 64
    %v2791 = vpop.permute.xlu0 %2790
    %v2795 = vsel %vm314, %v2786, 0
    %v2798 = vsel %vm314, %v2787, 0
    %2800 = vmatprep.subr.mxu0 0.0
    %2801 = vmatpush1.msra.mxu0 %v2789
    %2802 = vmatprep.subr.mxu0 0.0
    %2803 = vmatpush1.msra.mxu0 %v2791
    %2804 = vmatprep.subr.mxu0 0.0
    %2805 = vmatpush1.msra.mxu0 0.0
    %2806 = vmatprep.subr.mxu0 0.0
    %2807 = vmatpush1.msra.mxu0 0.0
    %2808 = vmatprep.subr.mxu0 0.0
    %2809 = vmatpush1.msra.mxu0 0.0
    %2810 = vmatprep.subr.mxu0 0.0
    %2811 = vmatpush1.msra.mxu0 0.0
    %2812 = vmatprep.subr.mxu0 0.0
    %2813 = vmatpush1.msra.mxu0 0.0
    %2814 = vmatprep.subr.mxu0 0.0
    %2815 = vmatpush1.msra.mxu0 0.0
    %2816 = vmatprep.subr.mxu0 0.0
    %2817 = vmatpush1.msra.mxu0 0.0
    %2818 = vmatprep.subr.mxu0 0.0
    %2819 = vmatpush1.msra.mxu0 0.0
    %2820 = vmatprep.subr.mxu0 0.0
    %2821 = vmatpush1.msra.mxu0 0.0
    %2822 = vmatprep.subr.mxu0 0.0
    %2823 = vmatpush1.msra.mxu0 0.0
    %2824 = vmatprep.subr.mxu0 0.0
    %2825 = vmatpush1.msra.mxu0 0.0
    %2826 = vmatprep.subr.mxu0 0.0
    %2827 = vmatpush1.msra.mxu0 0.0
    %2828 = vmatprep.subr.mxu0 0.0
    %2829 = vmatpush1.msra.mxu0 0.0
    %2830 = vmatprep.subr.mxu0 0.0
    %2831 = vmatpush1.msra.mxu0 0.0
    %2832 = vmatprep.subr.mxu0 0.0
    %2833 = vmatpush1.msra.mxu0 0.0
    %2834 = vmatprep.subr.mxu0 0.0
    %2835 = vmatpush1.msra.mxu0 0.0
    %2836 = vmatprep.subr.mxu0 0.0
    %2837 = vmatpush1.msra.mxu0 0.0
    %2838 = vmatprep.subr.mxu0 0.0
    %2839 = vmatpush1.msra.mxu0 0.0
    %2840 = vmatprep.subr.mxu0 0.0
    %2841 = vmatpush1.msra.mxu0 0.0
    %2842 = vmatprep.subr.mxu0 0.0
    %2843 = vmatpush1.msra.mxu0 0.0
    %2844 = vmatprep.subr.mxu0 0.0
    %2845 = vmatpush1.msra.mxu0 0.0
    %2846 = vmatprep.subr.mxu0 0.0
    %2847 = vmatpush1.msra.mxu0 0.0
    %2848 = vmatprep.subr.mxu0 0.0
    %2849 = vmatpush1.msra.mxu0 0.0
    %2850 = vmatprep.subr.mxu0 0.0
    %2851 = vmatpush1.msra.mxu0 0.0
    %2852 = vmatprep.subr.mxu0 0.0
    %2853 = vmatpush1.msra.mxu0 0.0
    %2854 = vmatprep.subr.mxu0 0.0
    %2855 = vmatpush1.msra.mxu0 0.0
    %2856 = vmatprep.subr.mxu0 0.0
    %2857 = vmatpush1.msra.mxu0 0.0
    %2858 = vmatprep.subr.mxu0 0.0
    %2859 = vmatpush1.msra.mxu0 0.0
    %2860 = vmatprep.subr.mxu0 0.0
    %2861 = vmatpush1.msra.mxu0 0.0
    %2862 = vmatprep.subr.mxu0 0.0
    %2863 = vmatpush1.msra.mxu0 0.0
    %2864 = vmatprep.mubr.f32.mxu0 0.0
    %2865 = vmatmul.mubr.f32.gmra.mrb[0].mxu0 %v2795
    %v2866 = vpop.f32.mrb[0].mxu0
    %v2867 = vadd.f32 0.0, %v2866
    %v2868 = vpop.f32.mrb[0].mxu0
    %2869 = vmatprep.mubr.f32.mxu0 0.0
    %2870 = vmatmul.mubr.f32.gmra.mrb[0].mxu0 %v2798
    %v2871 = vpop.f32.mrb[0].mxu0
    %v2872 = vadd.f32 0.0, %v2871
    %v2873 = vpop.f32.mrb[0].mxu0
    %2874 = vdwg.mxu0
    %2875 = vrot.lane.b32.xlu0 %v2660, 120
    %v2876 = vpop.permute.xlu0 %2875
    %2877 = vrot.lane.b32.xlu0 %v2665, 120
    %v2878 = vpop.permute.xlu0 %2877
    %2879 = vrot.lane.b32.xlu0 %v2660, 88
    %v2880 = vpop.permute.xlu0 %2879
    %2881 = vrot.lane.b32.xlu0 %v2665, 88
    %v2882 = vpop.permute.xlu0 %2881
    %v2883 = vsel %vm43, %v2876, 0
    %v2885 = vsel %vm43, %v2878, 0
    %v2887 = vsel %vm43, %v2880, 0
    %v2889 = vsel %vm43, %v2882, 0
    %2891 = vmatprep.subr.mxu0 0.0
    %2892 = vmatpush1.xpose.msra.mxu0 %v2887
    %2893 = vmatprep.subr.mxu0 0.0
    %2894 = vmatpush1.xpose.msra.mxu0 %v2889
    %2895 = vmatprep.subr.mxu0 0.0
    %2896 = vmatpush1.xpose.msra.mxu0 0.0
    %2897 = vmatprep.subr.mxu0 0.0
    %2898 = vmatpush1.xpose.msra.mxu0 0.0
    %2899 = vmatprep.subr.mxu0 0.0
    %2900 = vmatpush1.xpose.msra.mxu0 0.0
    %2901 = vmatprep.subr.mxu0 0.0
    %2902 = vmatpush1.xpose.msra.mxu0 0.0
    %2903 = vmatprep.subr.mxu0 0.0
    %2904 = vmatpush1.xpose.msra.mxu0 0.0
    %2905 = vmatprep.subr.mxu0 0.0
    %2906 = vmatpush1.xpose.msra.mxu0 0.0
    %2907 = vmatprep.subr.mxu0 0.0
    %2908 = vmatpush1.xpose.msra.mxu0 0.0
    %2909 = vmatprep.subr.mxu0 0.0
    %2910 = vmatpush1.xpose.msra.mxu0 0.0
    %2911 = vmatprep.subr.mxu0 0.0
    %2912 = vmatpush1.xpose.msra.mxu0 0.0
    %2913 = vmatprep.subr.mxu0 0.0
    %2914 = vmatpush1.xpose.msra.mxu0 0.0
    %2915 = vmatprep.subr.mxu0 0.0
    %2916 = vmatpush1.xpose.msra.mxu0 0.0
    %2917 = vmatprep.subr.mxu0 0.0
    %2918 = vmatpush1.xpose.msra.mxu0 0.0
    %2919 = vmatprep.subr.mxu0 0.0
    %2920 = vmatpush1.xpose.msra.mxu0 0.0
    %2921 = vmatprep.subr.mxu0 0.0
    %2922 = vmatpush1.xpose.msra.mxu0 0.0
    %2923 = vmatprep.subr.mxu0 0.0
    %2924 = vmatpush1.xpose.msra.mxu0 0.0
    %2925 = vmatprep.subr.mxu0 0.0
    %2926 = vmatpush1.xpose.msra.mxu0 0.0
    %2927 = vmatprep.subr.mxu0 0.0
    %2928 = vmatpush1.xpose.msra.mxu0 0.0
    %2929 = vmatprep.subr.mxu0 0.0
    %2930 = vmatpush1.xpose.msra.mxu0 0.0
    %2931 = vmatprep.subr.mxu0 0.0
    %2932 = vmatpush1.xpose.msra.mxu0 0.0
    %2933 = vmatprep.subr.mxu0 0.0
    %2934 = vmatpush1.xpose.msra.mxu0 0.0
    %2935 = vmatprep.subr.mxu0 0.0
    %2936 = vmatpush1.xpose.msra.mxu0 0.0
    %2937 = vmatprep.subr.mxu0 0.0
    %2938 = vmatpush1.xpose.msra.mxu0 0.0
    %2939 = vmatprep.subr.mxu0 0.0
    %2940 = vmatpush1.xpose.msra.mxu0 0.0
    %2941 = vmatprep.subr.mxu0 0.0
    %2942 = vmatpush1.xpose.msra.mxu0 0.0
    %2943 = vmatprep.subr.mxu0 0.0
    %2944 = vmatpush1.xpose.msra.mxu0 0.0
    %2945 = vmatprep.subr.mxu0 0.0
    %2946 = vmatpush1.xpose.msra.mxu0 0.0
    %2947 = vmatprep.subr.mxu0 0.0
    %2948 = vmatpush1.xpose.msra.mxu0 0.0
    %2949 = vmatprep.subr.mxu0 0.0
    %2950 = vmatpush1.xpose.msra.mxu0 0.0
    %2951 = vmatprep.subr.mxu0 0.0
    %2952 = vmatpush1.xpose.msra.mxu0 0.0
    %2953 = vmatprep.subr.mxu0 0.0
    %2954 = vmatpush1.xpose.msra.mxu0 0.0
    %2955 = vmatprep.mubr.f32.mxu0 0.0
    %2956 = vmatmul.mubr.f32.gmra.mrb[0].mxu0 %v2883
    %v2957 = vpop.f32.mrb[0].mxu0
    %v2958 = vadd.f32 0.0, %v2957
    %v2959 = vpop.f32.mrb[0].mxu0
    %2960 = vmatprep.mubr.f32.mxu0 0.0
    %2961 = vmatmul.mubr.f32.gmra.mrb[0].mxu0 %v2885
    %v2962 = vpop.f32.mrb[0].mxu0
    %v2963 = vadd.f32 0.0, %v2962
    %v2964 = vpop.f32.mrb[0].mxu0
    %2965 = vdwg.mxu0
    %v2966 = vmul.f32 %v2958, 0.35355338
    %v2967 = vmul.f32 %v2963, 0.35355338
    %v2968 = vadd.f32 %v2966, %v29
    %v2969 = vadd.f32 %v2967, %v30
    %v2970 = vsel %vm314, %v2968, -inf
    %2971 = vmax.xlane.f32.xlu0 %v2970
    %v2972 = vpop.xlane.xlu0 %2971
    %v2973 = vsel %vm314, %v2969, -inf
    %2974 = vmax.xlane.f32.xlu0 %v2973
    %v2975 = vpop.xlane.xlu0 %2974
    %v2976 = vsub.f32 %v2968, %v2972
    %v2977 = vsub.f32 %v2969, %v2975
    %v2978 = vmul.f32 %v2976, 1.442695
    %v2979 = vpow.pop %v2978
    %v2980 = vmul.f32 %v2977, 1.442695
    %v2981 = vpow.pop %v2980
    %v2982 = vsel %vm314, %v2979, 0.0
    %2983 = vadd.xlane.f32.xlu0 %v2982
    %v2984 = vpop.xlane.xlu0 %2983
    %v2985 = vsel %vm314, %v2981, 0.0
    %2986 = vadd.xlane.f32.xlu0 %v2985
    %v2987 = vpop.xlane.xlu0 %2986
    %v2988 = vrcp.pop %v2984
    %v2989 = vrcp.pop %v2987
    %v2990 = vmul.f32 %v2979, %v2988
    %v2991 = vmul.f32 %v2981, %v2989
    %2992 = vrot.lane.b32.xlu0 %v2660, 56
    %v2993 = vpop.permute.xlu0 %2992
    %2994 = vrot.lane.b32.xlu0 %v2665, 56
    %v2995 = vpop.permute.xlu0 %2994
    %v2999 = vsel %vm314, %v2990, 0
    %v3002 = vsel %vm314, %v2991, 0
    %3004 = vmatprep.subr.mxu0 0.0
    %3005 = vmatpush1.msra.mxu0 %v2993
    %3006 = vmatprep.subr.mxu0 0.0
    %3007 = vmatpush1.msra.mxu0 %v2995
    %3008 = vmatprep.subr.mxu0 0.0
    %3009 = vmatpush1.msra.mxu0 0.0
    %3010 = vmatprep.subr.mxu0 0.0
    %3011 = vmatpush1.msra.mxu0 0.0
    %3012 = vmatprep.subr.mxu0 0.0
    %3013 = vmatpush1.msra.mxu0 0.0
    %3014 = vmatprep.subr.mxu0 0.0
    %3015 = vmatpush1.msra.mxu0 0.0
    %3016 = vmatprep.subr.mxu0 0.0
    %3017 = vmatpush1.msra.mxu0 0.0
    %3018 = vmatprep.subr.mxu0 0.0
    %3019 = vmatpush1.msra.mxu0 0.0
    %3020 = vmatprep.subr.mxu0 0.0
    %3021 = vmatpush1.msra.mxu0 0.0
    %3022 = vmatprep.subr.mxu0 0.0
    %3023 = vmatpush1.msra.mxu0 0.0
    %3024 = vmatprep.subr.mxu0 0.0
    %3025 = vmatpush1.msra.mxu0 0.0
    %3026 = vmatprep.subr.mxu0 0.0
    %3027 = vmatpush1.msra.mxu0 0.0
    %3028 = vmatprep.subr.mxu0 0.0
    %3029 = vmatpush1.msra.mxu0 0.0
    %3030 = vmatprep.subr.mxu0 0.0
    %3031 = vmatpush1.msra.mxu0 0.0
    %3032 = vmatprep.subr.mxu0 0.0
    %3033 = vmatpush1.msra.mxu0 0.0
    %3034 = vmatprep.subr.mxu0 0.0
    %3035 = vmatpush1.msra.mxu0 0.0
    %3036 = vmatprep.subr.mxu0 0.0
    %3037 = vmatpush1.msra.mxu0 0.0
    %3038 = vmatprep.subr.mxu0 0.0
    %3039 = vmatpush1.msra.mxu0 0.0
    %3040 = vmatprep.subr.mxu0 0.0
    %3041 = vmatpush1.msra.mxu0 0.0
    %3042 = vmatprep.subr.mxu0 0.0
    %3043 = vmatpush1.msra.mxu0 0.0
    %3044 = vmatprep.subr.mxu0 0.0
    %3045 = vmatpush1.msra.mxu0 0.0
    %3046 = vmatprep.subr.mxu0 0.0
    %3047 = vmatpush1.msra.mxu0 0.0
    %3048 = vmatprep.subr.mxu0 0.0
    %3049 = vmatpush1.msra.mxu0 0.0
    %3050 = vmatprep.subr.mxu0 0.0
    %3051 = vmatpush1.msra.mxu0 0.0
    %3052 = vmatprep.subr.mxu0 0.0
    %3053 = vmatpush1.msra.mxu0 0.0
    %3054 = vmatprep.subr.mxu0 0.0
    %3055 = vmatpush1.msra.mxu0 0.0
    %3056 = vmatprep.subr.mxu0 0.0
    %3057 = vmatpush1.msra.mxu0 0.0
    %3058 = vmatprep.subr.mxu0 0.0
    %3059 = vmatpush1.msra.mxu0 0.0
    %3060 = vmatprep.subr.mxu0 0.0
    %3061 = vmatpush1.msra.mxu0 0.0
    %3062 = vmatprep.subr.mxu0 0.0
    %3063 = vmatpush1.msra.mxu0 0.0
    %3064 = vmatprep.subr.mxu0 0.0
    %3065 = vmatpush1.msra.mxu0 0.0
    %3066 = vmatprep.subr.mxu0 0.0
    %3067 = vmatpush1.msra.mxu0 0.0
    %3068 = vmatprep.mubr.f32.mxu0 0.0
    %3069 = vmatmul.mubr.f32.gmra.mrb[0].mxu0 %v2999
    %v3070 = vpop.f32.mrb[0].mxu0
    %v3071 = vadd.f32 0.0, %v3070
    %v3072 = vpop.f32.mrb[0].mxu0
    %3073 = vmatprep.mubr.f32.mxu0 0.0
    %3074 = vmatmul.mubr.f32.gmra.mrb[0].mxu0 %v3002
    %v3075 = vpop.f32.mrb[0].mxu0
    %v3076 = vadd.f32 0.0, %v3075
    %v3077 = vpop.f32.mrb[0].mxu0
    %3078 = vdwg.mxu0
    %3079 = vrot.lane.b32.xlu0 %v2660, 112
    %v3080 = vpop.permute.xlu0 %3079
    %3081 = vrot.lane.b32.xlu0 %v2665, 112
    %v3082 = vpop.permute.xlu0 %3081
    %3083 = vrot.lane.b32.xlu0 %v2660, 80
    %v3084 = vpop.permute.xlu0 %3083
    %3085 = vrot.lane.b32.xlu0 %v2665, 80
    %v3086 = vpop.permute.xlu0 %3085
    %v3087 = vsel %vm43, %v3080, 0
    %v3089 = vsel %vm43, %v3082, 0
    %v3091 = vsel %vm43, %v3084, 0
    %v3093 = vsel %vm43, %v3086, 0
    %3095 = vmatprep.subr.mxu0 0.0
    %3096 = vmatpush1.xpose.msra.mxu0 %v3091
    %3097 = vmatprep.subr.mxu0 0.0
    %3098 = vmatpush1.xpose.msra.mxu0 %v3093
    %3099 = vmatprep.subr.mxu0 0.0
    %3100 = vmatpush1.xpose.msra.mxu0 0.0
    %3101 = vmatprep.subr.mxu0 0.0
    %3102 = vmatpush1.xpose.msra.mxu0 0.0
    %3103 = vmatprep.subr.mxu0 0.0
    %3104 = vmatpush1.xpose.msra.mxu0 0.0
    %3105 = vmatprep.subr.mxu0 0.0
    %3106 = vmatpush1.xpose.msra.mxu0 0.0
    %3107 = vmatprep.subr.mxu0 0.0
    %3108 = vmatpush1.xpose.msra.mxu0 0.0
    %3109 = vmatprep.subr.mxu0 0.0
    %3110 = vmatpush1.xpose.msra.mxu0 0.0
    %3111 = vmatprep.subr.mxu0 0.0
    %3112 = vmatpush1.xpose.msra.mxu0 0.0
    %3113 = vmatprep.subr.mxu0 0.0
    %3114 = vmatpush1.xpose.msra.mxu0 0.0
    %3115 = vmatprep.subr.mxu0 0.0
    %3116 = vmatpush1.xpose.msra.mxu0 0.0
    %3117 = vmatprep.subr.mxu0 0.0
    %3118 = vmatpush1.xpose.msra.mxu0 0.0
    %3119 = vmatprep.subr.mxu0 0.0
    %3120 = vmatpush1.xpose.msra.mxu0 0.0
    %3121 = vmatprep.subr.mxu0 0.0
    %3122 = vmatpush1.xpose.msra.mxu0 0.0
    %3123 = vmatprep.subr.mxu0 0.0
    %3124 = vmatpush1.xpose.msra.mxu0 0.0
    %3125 = vmatprep.subr.mxu0 0.0
    %3126 = vmatpush1.xpose.msra.mxu0 0.0
    %3127 = vmatprep.subr.mxu0 0.0
    %3128 = vmatpush1.xpose.msra.mxu0 0.0
    %3129 = vmatprep.subr.mxu0 0.0
    %3130 = vmatpush1.xpose.msra.mxu0 0.0
    %3131 = vmatprep.subr.mxu0 0.0
    %3132 = vmatpush1.xpose.msra.mxu0 0.0
    %3133 = vmatprep.subr.mxu0 0.0
    %3134 = vmatpush1.xpose.msra.mxu0 0.0
    %3135 = vmatprep.subr.mxu0 0.0
    %3136 = vmatpush1.xpose.msra.mxu0 0.0
    %3137 = vmatprep.subr.mxu0 0.0
    %3138 = vmatpush1.xpose.msra.mxu0 0.0
    %3139 = vmatprep.subr.mxu0 0.0
    %3140 = vmatpush1.xpose.msra.mxu0 0.0
    %3141 = vmatprep.subr.mxu0 0.0
    %3142 = vmatpush1.xpose.msra.mxu0 0.0
    %3143 = vmatprep.subr.mxu0 0.0
    %3144 = vmatpush1.xpose.msra.mxu0 0.0
    %3145 = vmatprep.subr.mxu0 0.0
    %3146 = vmatpush1.xpose.msra.mxu0 0.0
    %3147 = vmatprep.subr.mxu0 0.0
    %3148 = vmatpush1.xpose.msra.mxu0 0.0
    %3149 = vmatprep.subr.mxu0 0.0
    %3150 = vmatpush1.xpose.msra.mxu0 0.0
    %3151 = vmatprep.subr.mxu0 0.0
    %3152 = vmatpush1.xpose.msra.mxu0 0.0
    %3153 = vmatprep.subr.mxu0 0.0
    %3154 = vmatpush1.xpose.msra.mxu0 0.0
    %3155 = vmatprep.subr.mxu0 0.0
    %3156 = vmatpush1.xpose.msra.mxu0 0.0
    %3157 = vmatprep.subr.mxu0 0.0
    %3158 = vmatpush1.xpose.msra.mxu0 0.0
    %3159 = vmatprep.mubr.f32.mxu0 0.0
    %3160 = vmatmul.mubr.f32.gmra.mrb[0].mxu0 %v3087
    %v3161 = vpop.f32.mrb[0].mxu0
    %v3162 = vadd.f32 0.0, %v3161
    %v3163 = vpop.f32.mrb[0].mxu0
    %3164 = vmatprep.mubr.f32.mxu0 0.0
    %3165 = vmatmul.mubr.f32.gmra.mrb[0].mxu0 %v3089
    %v3166 = vpop.f32.mrb[0].mxu0
    %v3167 = vadd.f32 0.0, %v3166
    %v3168 = vpop.f32.mrb[0].mxu0
    %3169 = vdwg.mxu0
    %v3170 = vmul.f32 %v3162, 0.35355338
    %v3171 = vmul.f32 %v3167, 0.35355338
    %v3172 = vadd.f32 %v3170, %v29
    %v3173 = vadd.f32 %v3171, %v30
    %v3174 = vsel %vm314, %v3172, -inf
    %3175 = vmax.xlane.f32.xlu0 %v3174
    %v3176 = vpop.xlane.xlu0 %3175
    %v3177 = vsel %vm314, %v3173, -inf
    %3178 = vmax.xlane.f32.xlu0 %v3177
    %v3179 = vpop.xlane.xlu0 %3178
    %v3180 = vsub.f32 %v3172, %v3176
    %v3181 = vsub.f32 %v3173, %v3179
    %v3182 = vmul.f32 %v3180, 1.442695
    %v3183 = vpow.pop %v3182
    %v3184 = vmul.f32 %v3181, 1.442695
    %v3185 = vpow.pop %v3184
    %v3186 = vsel %vm314, %v3183, 0.0
    %3187 = vadd.xlane.f32.xlu0 %v3186
    %v3188 = vpop.xlane.xlu0 %3187
    %v3189 = vsel %vm314, %v3185, 0.0
    %3190 = vadd.xlane.f32.xlu0 %v3189
    %v3191 = vpop.xlane.xlu0 %3190
    %v3192 = vrcp.pop %v3188
    %v3193 = vrcp.pop %v3191
    %v3194 = vmul.f32 %v3183, %v3192
    %v3195 = vmul.f32 %v3185, %v3193
    %3196 = vrot.lane.b32.xlu0 %v2660, 48
    %v3197 = vpop.permute.xlu0 %3196
    %3198 = vrot.lane.b32.xlu0 %v2665, 48
    %v3199 = vpop.permute.xlu0 %3198
    %v3203 = vsel %vm314, %v3194, 0
    %v3206 = vsel %vm314, %v3195, 0
    %3208 = vmatprep.subr.mxu0 0.0
    %3209 = vmatpush1.msra.mxu0 %v3197
    %3210 = vmatprep.subr.mxu0 0.0
    %3211 = vmatpush1.msra.mxu0 %v3199
    %3212 = vmatprep.subr.mxu0 0.0
    %3213 = vmatpush1.msra.mxu0 0.0
    %3214 = vmatprep.subr.mxu0 0.0
    %3215 = vmatpush1.msra.mxu0 0.0
    %3216 = vmatprep.subr.mxu0 0.0
    %3217 = vmatpush1.msra.mxu0 0.0
    %3218 = vmatprep.subr.mxu0 0.0
    %3219 = vmatpush1.msra.mxu0 0.0
    %3220 = vmatprep.subr.mxu0 0.0
    %3221 = vmatpush1.msra.mxu0 0.0
    %3222 = vmatprep.subr.mxu0 0.0
    %3223 = vmatpush1.msra.mxu0 0.0
    %3224 = vmatprep.subr.mxu0 0.0
    %3225 = vmatpush1.msra.mxu0 0.0
    %3226 = vmatprep.subr.mxu0 0.0
    %3227 = vmatpush1.msra.mxu0 0.0
    %3228 = vmatprep.subr.mxu0 0.0
    %3229 = vmatpush1.msra.mxu0 0.0
    %3230 = vmatprep.subr.mxu0 0.0
    %3231 = vmatpush1.msra.mxu0 0.0
    %3232 = vmatprep.subr.mxu0 0.0
    %3233 = vmatpush1.msra.mxu0 0.0
    %3234 = vmatprep.subr.mxu0 0.0
    %3235 = vmatpush1.msra.mxu0 0.0
    %3236 = vmatprep.subr.mxu0 0.0
    %3237 = vmatpush1.msra.mxu0 0.0
    %3238 = vmatprep.subr.mxu0 0.0
    %3239 = vmatpush1.msra.mxu0 0.0
    %3240 = vmatprep.subr.mxu0 0.0
    %3241 = vmatpush1.msra.mxu0 0.0
    %3242 = vmatprep.subr.mxu0 0.0
    %3243 = vmatpush1.msra.mxu0 0.0
    %3244 = vmatprep.subr.mxu0 0.0
    %3245 = vmatpush1.msra.mxu0 0.0
    %3246 = vmatprep.subr.mxu0 0.0
    %3247 = vmatpush1.msra.mxu0 0.0
    %3248 = vmatprep.subr.mxu0 0.0
    %3249 = vmatpush1.msra.mxu0 0.0
    %3250 = vmatprep.subr.mxu0 0.0
    %3251 = vmatpush1.msra.mxu0 0.0
    %3252 = vmatprep.subr.mxu0 0.0
    %3253 = vmatpush1.msra.mxu0 0.0
    %3254 = vmatprep.subr.mxu0 0.0
    %3255 = vmatpush1.msra.mxu0 0.0
    %3256 = vmatprep.subr.mxu0 0.0
    %3257 = vmatpush1.msra.mxu0 0.0
    %3258 = vmatprep.subr.mxu0 0.0
    %3259 = vmatpush1.msra.mxu0 0.0
    %3260 = vmatprep.subr.mxu0 0.0
    %3261 = vmatpush1.msra.mxu0 0.0
    %3262 = vmatprep.subr.mxu0 0.0
    %3263 = vmatpush1.msra.mxu0 0.0
    %3264 = vmatprep.subr.mxu0 0.0
    %3265 = vmatpush1.msra.mxu0 0.0
    %3266 = vmatprep.subr.mxu0 0.0
    %3267 = vmatpush1.msra.mxu0 0.0
    %3268 = vmatprep.subr.mxu0 0.0
    %3269 = vmatpush1.msra.mxu0 0.0
    %3270 = vmatprep.subr.mxu0 0.0
    %3271 = vmatpush1.msra.mxu0 0.0
    %3272 = vmatprep.mubr.f32.mxu0 0.0
    %3273 = vmatmul.mubr.f32.gmra.mrb[0].mxu0 %v3203
    %v3274 = vpop.f32.mrb[0].mxu0
    %v3275 = vadd.f32 0.0, %v3274
    %v3276 = vpop.f32.mrb[0].mxu0
    %3277 = vmatprep.mubr.f32.mxu0 0.0
    %3278 = vmatmul.mubr.f32.gmra.mrb[0].mxu0 %v3206
    %v3279 = vpop.f32.mrb[0].mxu0
    %v3280 = vadd.f32 0.0, %v3279
    %v3281 = vpop.f32.mrb[0].mxu0
    %3282 = vdwg.mxu0
    %3283 = vrot.lane.b32.xlu0 %v2660, 104
    %v3284 = vpop.permute.xlu0 %3283
    %3285 = vrot.lane.b32.xlu0 %v2665, 104
    %v3286 = vpop.permute.xlu0 %3285
    %3287 = vrot.lane.b32.xlu0 %v2660, 72
    %v3288 = vpop.permute.xlu0 %3287
    %3289 = vrot.lane.b32.xlu0 %v2665, 72
    %v3290 = vpop.permute.xlu0 %3289
    %v3291 = vsel %vm43, %v3284, 0
    %v3293 = vsel %vm43, %v3286, 0
    %v3295 = vsel %vm43, %v3288, 0
    %v3297 = vsel %vm43, %v3290, 0
    %3299 = vmatprep.subr.mxu0 0.0
    %3300 = vmatpush1.xpose.msra.mxu0 %v3295
    %3301 = vmatprep.subr.mxu0 0.0
    %3302 = vmatpush1.xpose.msra.mxu0 %v3297
    %3303 = vmatprep.subr.mxu0 0.0
    %3304 = vmatpush1.xpose.msra.mxu0 0.0
    %3305 = vmatprep.subr.mxu0 0.0
    %3306 = vmatpush1.xpose.msra.mxu0 0.0
    %3307 = vmatprep.subr.mxu0 0.0
    %3308 = vmatpush1.xpose.msra.mxu0 0.0
    %3309 = vmatprep.subr.mxu0 0.0
    %3310 = vmatpush1.xpose.msra.mxu0 0.0
    %3311 = vmatprep.subr.mxu0 0.0
    %3312 = vmatpush1.xpose.msra.mxu0 0.0
    %3313 = vmatprep.subr.mxu0 0.0
    %3314 = vmatpush1.xpose.msra.mxu0 0.0
    %3315 = vmatprep.subr.mxu0 0.0
    %3316 = vmatpush1.xpose.msra.mxu0 0.0
    %3317 = vmatprep.subr.mxu0 0.0
    %3318 = vmatpush1.xpose.msra.mxu0 0.0
    %3319 = vmatprep.subr.mxu0 0.0
    %3320 = vmatpush1.xpose.msra.mxu0 0.0
    %3321 = vmatprep.subr.mxu0 0.0
    %3322 = vmatpush1.xpose.msra.mxu0 0.0
    %3323 = vmatprep.subr.mxu0 0.0
    %3324 = vmatpush1.xpose.msra.mxu0 0.0
    %3325 = vmatprep.subr.mxu0 0.0
    %3326 = vmatpush1.xpose.msra.mxu0 0.0
    %3327 = vmatprep.subr.mxu0 0.0
    %3328 = vmatpush1.xpose.msra.mxu0 0.0
    %3329 = vmatprep.subr.mxu0 0.0
    %3330 = vmatpush1.xpose.msra.mxu0 0.0
    %3331 = vmatprep.subr.mxu0 0.0
    %3332 = vmatpush1.xpose.msra.mxu0 0.0
    %3333 = vmatprep.subr.mxu0 0.0
    %3334 = vmatpush1.xpose.msra.mxu0 0.0
    %3335 = vmatprep.subr.mxu0 0.0
    %3336 = vmatpush1.xpose.msra.mxu0 0.0
    %3337 = vmatprep.subr.mxu0 0.0
    %3338 = vmatpush1.xpose.msra.mxu0 0.0
    %3339 = vmatprep.subr.mxu0 0.0
    %3340 = vmatpush1.xpose.msra.mxu0 0.0
    %3341 = vmatprep.subr.mxu0 0.0
    %3342 = vmatpush1.xpose.msra.mxu0 0.0
    %3343 = vmatprep.subr.mxu0 0.0
    %3344 = vmatpush1.xpose.msra.mxu0 0.0
    %3345 = vmatprep.subr.mxu0 0.0
    %3346 = vmatpush1.xpose.msra.mxu0 0.0
    %3347 = vmatprep.subr.mxu0 0.0
    %3348 = vmatpush1.xpose.msra.mxu0 0.0
    %3349 = vmatprep.subr.mxu0 0.0
    %3350 = vmatpush1.xpose.msra.mxu0 0.0
    %3351 = vmatprep.subr.mxu0 0.0
    %3352 = vmatpush1.xpose.msra.mxu0 0.0
    %3353 = vmatprep.subr.mxu0 0.0
    %3354 = vmatpush1.xpose.msra.mxu0 0.0
    %3355 = vmatprep.subr.mxu0 0.0
    %3356 = vmatpush1.xpose.msra.mxu0 0.0
    %3357 = vmatprep.subr.mxu0 0.0
    %3358 = vmatpush1.xpose.msra.mxu0 0.0
    %3359 = vmatprep.subr.mxu0 0.0
    %3360 = vmatpush1.xpose.msra.mxu0 0.0
    %3361 = vmatprep.subr.mxu0 0.0
    %3362 = vmatpush1.xpose.msra.mxu0 0.0
    %3363 = vmatprep.mubr.f32.mxu0 0.0
    %3364 = vmatmul.mubr.f32.gmra.mrb[0].mxu0 %v3291
    %v3365 = vpop.f32.mrb[0].mxu0
    %v3366 = vadd.f32 0.0, %v3365
    %v3367 = vpop.f32.mrb[0].mxu0
    %3368 = vmatprep.mubr.f32.mxu0 0.0
    %3369 = vmatmul.mubr.f32.gmra.mrb[0].mxu0 %v3293
    %v3370 = vpop.f32.mrb[0].mxu0
    %v3371 = vadd.f32 0.0, %v3370
    %v3372 = vpop.f32.mrb[0].mxu0
    %3373 = vdwg.mxu0
    %v3374 = vmul.f32 %v3366, 0.35355338
    %v3375 = vmul.f32 %v3371, 0.35355338
    %v3376 = vadd.f32 %v3374, %v29
    %v3377 = vadd.f32 %v3375, %v30
    %v3378 = vsel %vm314, %v3376, -inf
    %3379 = vmax.xlane.f32.xlu0 %v3378
    %v3380 = vpop.xlane.xlu0 %3379
    %v3381 = vsel %vm314, %v3377, -inf
    %3382 = vmax.xlane.f32.xlu0 %v3381
    %v3383 = vpop.xlane.xlu0 %3382
    %v3384 = vsub.f32 %v3376, %v3380
    %v3385 = vsub.f32 %v3377, %v3383
    %v3386 = vmul.f32 %v3384, 1.442695
    %v3387 = vpow.pop %v3386
    %v3388 = vmul.f32 %v3385, 1.442695
    %v3389 = vpow.pop %v3388
    %v3390 = vsel %vm314, %v3387, 0.0
    %3391 = vadd.xlane.f32.xlu0 %v3390
    %v3392 = vpop.xlane.xlu0 %3391
    %v3393 = vsel %vm314, %v3389, 0.0
    %3394 = vadd.xlane.f32.xlu0 %v3393
    %v3395 = vpop.xlane.xlu0 %3394
    %v3396 = vrcp.pop %v3392
    %v3397 = vrcp.pop %v3395
    %v3398 = vmul.f32 %v3387, %v3396
    %v3399 = vmul.f32 %v3389, %v3397
    %3400 = vrot.lane.b32.xlu0 %v2660, 40
    %v3401 = vpop.permute.xlu0 %3400
    %3402 = vrot.lane.b32.xlu0 %v2665, 40
    %v3403 = vpop.permute.xlu0 %3402
    %v3407 = vsel %vm314, %v3398, 0
    %v3410 = vsel %vm314, %v3399, 0
    %3412 = vmatprep.subr.mxu0 0.0
    %3413 = vmatpush1.msra.mxu0 %v3401
    %3414 = vmatprep.subr.mxu0 0.0
    %3415 = vmatpush1.msra.mxu0 %v3403
    %3416 = vmatprep.subr.mxu0 0.0
    %3417 = vmatpush1.msra.mxu0 0.0
    %3418 = vmatprep.subr.mxu0 0.0
    %3419 = vmatpush1.msra.mxu0 0.0
    %3420 = vmatprep.subr.mxu0 0.0
    %3421 = vmatpush1.msra.mxu0 0.0
    %3422 = vmatprep.subr.mxu0 0.0
    %3423 = vmatpush1.msra.mxu0 0.0
    %3424 = vmatprep.subr.mxu0 0.0
    %3425 = vmatpush1.msra.mxu0 0.0
    %3426 = vmatprep.subr.mxu0 0.0
    %3427 = vmatpush1.msra.mxu0 0.0
    %3428 = vmatprep.subr.mxu0 0.0
    %3429 = vmatpush1.msra.mxu0 0.0
    %3430 = vmatprep.subr.mxu0 0.0
    %3431 = vmatpush1.msra.mxu0 0.0
    %3432 = vmatprep.subr.mxu0 0.0
    %3433 = vmatpush1.msra.mxu0 0.0
    %3434 = vmatprep.subr.mxu0 0.0
    %3435 = vmatpush1.msra.mxu0 0.0
    %3436 = vmatprep.subr.mxu0 0.0
    %3437 = vmatpush1.msra.mxu0 0.0
    %3438 = vmatprep.subr.mxu0 0.0
    %3439 = vmatpush1.msra.mxu0 0.0
    %3440 = vmatprep.subr.mxu0 0.0
    %3441 = vmatpush1.msra.mxu0 0.0
    %3442 = vmatprep.subr.mxu0 0.0
    %3443 = vmatpush1.msra.mxu0 0.0
    %3444 = vmatprep.subr.mxu0 0.0
    %3445 = vmatpush1.msra.mxu0 0.0
    %3446 = vmatprep.subr.mxu0 0.0
    %3447 = vmatpush1.msra.mxu0 0.0
    %3448 = vmatprep.subr.mxu0 0.0
    %3449 = vmatpush1.msra.mxu0 0.0
    %3450 = vmatprep.subr.mxu0 0.0
    %3451 = vmatpush1.msra.mxu0 0.0
    %3452 = vmatprep.subr.mxu0 0.0
    %3453 = vmatpush1.msra.mxu0 0.0
    %3454 = vmatprep.subr.mxu0 0.0
    %3455 = vmatpush1.msra.mxu0 0.0
    %3456 = vmatprep.subr.mxu0 0.0
    %3457 = vmatpush1.msra.mxu0 0.0
    %3458 = vmatprep.subr.mxu0 0.0
    %3459 = vmatpush1.msra.mxu0 0.0
    %3460 = vmatprep.subr.mxu0 0.0
    %3461 = vmatpush1.msra.mxu0 0.0
    %3462 = vmatprep.subr.mxu0 0.0
    %3463 = vmatpush1.msra.mxu0 0.0
    %3464 = vmatprep.subr.mxu0 0.0
    %3465 = vmatpush1.msra.mxu0 0.0
    %3466 = vmatprep.subr.mxu0 0.0
    %3467 = vmatpush1.msra.mxu0 0.0
    %3468 = vmatprep.subr.mxu0 0.0
    %3469 = vmatpush1.msra.mxu0 0.0
    %3470 = vmatprep.subr.mxu0 0.0
    %3471 = vmatpush1.msra.mxu0 0.0
    %3472 = vmatprep.subr.mxu0 0.0
    %3473 = vmatpush1.msra.mxu0 0.0
    %3474 = vmatprep.subr.mxu0 0.0
    %3475 = vmatpush1.msra.mxu0 0.0
    %3476 = vmatprep.mubr.f32.mxu0 0.0
    %3477 = vmatmul.mubr.f32.gmra.mrb[0].mxu0 %v3407
    %v3478 = vpop.f32.mrb[0].mxu0
    %v3479 = vadd.f32 0.0, %v3478
    %v3480 = vpop.f32.mrb[0].mxu0
    %3481 = vmatprep.mubr.f32.mxu0 0.0
    %3482 = vmatmul.mubr.f32.gmra.mrb[0].mxu0 %v3410
    %v3483 = vpop.f32.mrb[0].mxu0
    %v3484 = vadd.f32 0.0, %v3483
    %v3485 = vpop.f32.mrb[0].mxu0
    %3486 = vdwg.mxu0
    %3489 = vrot.lane.b32.xlu0 %v3071, 8
    %v3490 = vpop.permute.xlu0 %3489
    %3491 = vrot.lane.b32.xlu0 %v3076, 8
    %v3492 = vpop.permute.xlu0 %3491
    %3497 = vrot.lane.b32.xlu0 %v3275, 16
    %v3498 = vpop.permute.xlu0 %3497
    %3499 = vrot.lane.b32.xlu0 %v3280, 16
    %v3500 = vpop.permute.xlu0 %3499
    %3505 = vrot.lane.b32.xlu0 %v3479, 24
    %v3506 = vpop.permute.xlu0 %3505
    %3507 = vrot.lane.b32.xlu0 %v3484, 24
    %v3508 = vpop.permute.xlu0 %3507
    %v3511 = vsel %vm43, %v2867, %v3490
    %v3512 = vsel %vm43, %v2872, %v3492
    %v3513 = vsel %vm314, %v3511, %v3498
    %v3514 = vsel %vm314, %v3512, %v3500
    %v3515 = vsel %vm1064, %v3513, %v3506
    %v3516 = vsel %vm1064, %v3514, %v3508
    %v3517 = vlaneseq
    %v3518 = vshrl.u32 %v3517, 7
    %v3519 = vsub.s32 0, %v3518
    %v3520 = vrot.slane %v2672, %v3519
    %v3522 = vsel %vm134, %v3515, 0
    %v3525 = vsel %vm134, %v3516, 0
    %3527 = vmatprep.subr.mxu0 0.0
    %3528 = vmatpush1.msra.mxu0 %v2668
    %3529 = vmatprep.subr.mxu0 0.0
    %3530 = vmatpush1.msra.mxu0 %v2669
    %3531 = vmatprep.subr.mxu0 0.0
    %3532 = vmatpush1.msra.mxu0 %v2670
    %3533 = vmatprep.subr.mxu0 0.0
    %3534 = vmatpush1.msra.mxu0 %v2671
    %3535 = vmatprep.subr.mxu0 0.0
    %3536 = vmatpush1.msra.mxu0 0.0
    %3537 = vmatprep.subr.mxu0 0.0
    %3538 = vmatpush1.msra.mxu0 0.0
    %3539 = vmatprep.subr.mxu0 0.0
    %3540 = vmatpush1.msra.mxu0 0.0
    %3541 = vmatprep.subr.mxu0 0.0
    %3542 = vmatpush1.msra.mxu0 0.0
    %3543 = vmatprep.subr.mxu0 0.0
    %3544 = vmatpush1.msra.mxu0 0.0
    %3545 = vmatprep.subr.mxu0 0.0
    %3546 = vmatpush1.msra.mxu0 0.0
    %3547 = vmatprep.subr.mxu0 0.0
    %3548 = vmatpush1.msra.mxu0 0.0
    %3549 = vmatprep.subr.mxu0 0.0
    %3550 = vmatpush1.msra.mxu0 0.0
    %3551 = vmatprep.subr.mxu0 0.0
    %3552 = vmatpush1.msra.mxu0 0.0
    %3553 = vmatprep.subr.mxu0 0.0
    %3554 = vmatpush1.msra.mxu0 0.0
    %3555 = vmatprep.subr.mxu0 0.0
    %3556 = vmatpush1.msra.mxu0 0.0
    %3557 = vmatprep.subr.mxu0 0.0
    %3558 = vmatpush1.msra.mxu0 0.0
    %3559 = vmatprep.subr.mxu0 0.0
    %3560 = vmatpush1.msra.mxu0 0.0
    %3561 = vmatprep.subr.mxu0 0.0
    %3562 = vmatpush1.msra.mxu0 0.0
    %3563 = vmatprep.subr.mxu0 0.0
    %3564 = vmatpush1.msra.mxu0 0.0
    %3565 = vmatprep.subr.mxu0 0.0
    %3566 = vmatpush1.msra.mxu0 0.0
    %3567 = vmatprep.subr.mxu0 0.0
    %3568 = vmatpush1.msra.mxu0 0.0
    %3569 = vmatprep.subr.mxu0 0.0
    %3570 = vmatpush1.msra.mxu0 0.0
    %3571 = vmatprep.subr.mxu0 0.0
    %3572 = vmatpush1.msra.mxu0 0.0
    %3573 = vmatprep.subr.mxu0 0.0
    %3574 = vmatpush1.msra.mxu0 0.0
    %3575 = vmatprep.subr.mxu0 0.0
    %3576 = vmatpush1.msra.mxu0 0.0
    %3577 = vmatprep.subr.mxu0 0.0
    %3578 = vmatpush1.msra.mxu0 0.0
    %3579 = vmatprep.subr.mxu0 0.0
    %3580 = vmatpush1.msra.mxu0 0.0
    %3581 = vmatprep.subr.mxu0 0.0
    %3582 = vmatpush1.msra.mxu0 0.0
    %3583 = vmatprep.subr.mxu0 0.0
    %3584 = vmatpush1.msra.mxu0 0.0
    %3585 = vmatprep.subr.mxu0 0.0
    %3586 = vmatpush1.msra.mxu0 0.0
    %3587 = vmatprep.subr.mxu0 0.0
    %3588 = vmatpush1.msra.mxu0 0.0
    %3589 = vmatprep.subr.mxu0 0.0
    %3590 = vmatpush1.msra.mxu0 0.0
    %3591 = vmatprep.mubr.f32.mxu0 0.0
    %3592 = vmatmul.mubr.f32.gmra.mrb[0].mxu0 %v3522
    %v3593 = vpop.f32.mrb[0].mxu0
    %v3594 = vadd.f32 %v3520, %v3593
    %v3595 = vpop.f32.mrb[0].mxu0
    %3596 = vmatprep.mubr.f32.mxu0 0.0
    %3597 = vmatmul.mubr.f32.gmra.mrb[0].mxu0 %v3525
    %v3598 = vpop.f32.mrb[0].mxu0
    %v3599 = vadd.f32 %v3520, %v3598
    %v3600 = vpop.f32.mrb[0].mxu0
    %3601 = vdwg.mxu0
    %v3602 = vadd.f32 %v2576, %v3594
    %v3603 = vadd.f32 %v2577, %v3599
    %v3604 = vld [vmem:[#allocation2 + $0x2b0] sm:$0x1]
    %v3605 = vld [vmem:[#allocation2 + $0x2b8] sm:$0x1]
    %v3606 = vsel %vm134, %v3602, 0.0
    %3607 = vadd.xlane.f32.xlu0 %v3606
    %v3608 = vpop.xlane.xlu0 %3607
    %v3609 = vsel %vm134, %v3603, 0.0
    %3610 = vadd.xlane.f32.xlu0 %v3609
    %v3611 = vpop.xlane.xlu0 %3610
    %v3612 = vmul.f32 %v3608, %v1162
    %v3613 = vmul.f32 %v3611, %v1162
    %v3614 = vsub.f32 %v3602, %v3612
    %v3615 = vsub.f32 %v3603, %v3613
    %v3616 = vmul.f32 %v3614, %v3614
    %v3617 = vmul.f32 %v3615, %v3615
    %v3618 = vsel %vm134, %v3616, 0.0
    %3619 = vadd.xlane.f32.xlu0 %v3618
    %v3620 = vpop.xlane.xlu0 %3619
    %v3621 = vsel %vm134, %v3617, 0.0
    %3622 = vadd.xlane.f32.xlu0 %v3621
    %v3623 = vpop.xlane.xlu0 %3622
    %v3624 = vmul.f32 %v3620, %v1162
    %v3625 = vmul.f32 %v3623, %v1162
    %v3626 = vadd.f32 %v3624, 1e-05
    %v3627 = vadd.f32 %v3625, 1e-05
    %v3628 = vrsqrt.pop %v3626
    %v3629 = vrsqrt.pop %v3627
    %v3630 = vmul.f32 %v3614, %v3628
    %v3631 = vmul.f32 %v3615, %v3629
    %v3632 = vlaneseq
    %v3633 = vshrl.u32 %v3632, 7
    %v3634 = vsub.s32 0, %v3633
    %v3635 = vrot.slane %v3604, %v3634
    %v3636 = vmul.f32 %v3630, %v3635
    %v3637 = vmul.f32 %v3631, %v3635
    %v3638 = vlaneseq
    %v3639 = vshrl.u32 %v3638, 7
    %v3640 = vsub.s32 0, %v3639
    %v3641 = vrot.slane %v3605, %v3640
    %v3642 = vadd.f32 %v3636, %v3641
    %v3643 = vadd.f32 %v3637, %v3641
    %v3644 = vld [vmem:[#allocation2 + $0x1c8] sm:$0xff]
    %v3645 = vld [vmem:[#allocation2 + $0x1d0] sm:$0xff]
    %v3646 = vld [vmem:[#allocation2 + $0x1d8] sm:$0xff]
    %v3647 = vld [vmem:[#allocation2 + $0x1e0] sm:$0xff]
    %v3648 = vld [vmem:[#allocation2 + $0x1e8] sm:$0x1]
    %v3649 = vlaneseq
    %v3650 = vshrl.u32 %v3649, 7
    %v3651 = vsub.s32 0, %v3650
    %v3652 = vrot.slane %v3648, %v3651
    %v3654 = vsel %vm134, %v3642, 0
    %v3657 = vsel %vm134, %v3643, 0
    %3659 = vmatprep.subr.mxu0 0.0
    %3660 = vmatpush1.msra.mxu0 %v3644
    %3661 = vmatprep.subr.mxu0 0.0
    %3662 = vmatpush1.msra.mxu0 %v3645
    %3663 = vmatprep.subr.mxu0 0.0
    %3664 = vmatpush1.msra.mxu0 %v3646
    %3665 = vmatprep.subr.mxu0 0.0
    %3666 = vmatpush1.msra.mxu0 %v3647
    %3667 = vmatprep.subr.mxu0 0.0
    %3668 = vmatpush1.msra.mxu0 0.0
    %3669 = vmatprep.subr.mxu0 0.0
    %3670 = vmatpush1.msra.mxu0 0.0
    %3671 = vmatprep.subr.mxu0 0.0
    %3672 = vmatpush1.msra.mxu0 0.0
    %3673 = vmatprep.subr.mxu0 0.0
    %3674 = vmatpush1.msra.mxu0 0.0
    %3675 = vmatprep.subr.mxu0 0.0
    %3676 = vmatpush1.msra.mxu0 0.0
    %3677 = vmatprep.subr.mxu0 0.0
    %3678 = vmatpush1.msra.mxu0 0.0
    %3679 = vmatprep.subr.mxu0 0.0
    %3680 = vmatpush1.msra.mxu0 0.0
    %3681 = vmatprep.subr.mxu0 0.0
    %3682 = vmatpush1.msra.mxu0 0.0
    %3683 = vmatprep.subr.mxu0 0.0
    %3684 = vmatpush1.msra.mxu0 0.0
    %3685 = vmatprep.subr.mxu0 0.0
    %3686 = vmatpush1.msra.mxu0 0.0
    %3687 = vmatprep.subr.mxu0 0.0
    %3688 = vmatpush1.msra.mxu0 0.0
    %3689 = vmatprep.subr.mxu0 0.0
    %3690 = vmatpush1.msra.mxu0 0.0
    %3691 = vmatprep.subr.mxu0 0.0
    %3692 = vmatpush1.msra.mxu0 0.0
    %3693 = vmatprep.subr.mxu0 0.0
    %3694 = vmatpush1.msra.mxu0 0.0
    %3695 = vmatprep.subr.mxu0 0.0
    %3696 = vmatpush1.msra.mxu0 0.0
    %3697 = vmatprep.subr.mxu0 0.0
    %3698 = vmatpush1.msra.mxu0 0.0
    %3699 = vmatprep.subr.mxu0 0.0
    %3700 = vmatpush1.msra.mxu0 0.0
    %3701 = vmatprep.subr.mxu0 0.0
    %3702 = vmatpush1.msra.mxu0 0.0
    %3703 = vmatprep.subr.mxu0 0.0
    %3704 = vmatpush1.msra.mxu0 0.0
    %3705 = vmatprep.subr.mxu0 0.0
    %3706 = vmatpush1.msra.mxu0 0.0
    %3707 = vmatprep.subr.mxu0 0.0
    %3708 = vmatpush1.msra.mxu0 0.0
    %3709 = vmatprep.subr.mxu0 0.0
    %3710 = vmatpush1.msra.mxu0 0.0
    %3711 = vmatprep.subr.mxu0 0.0
    %3712 = vmatpush1.msra.mxu0 0.0
    %3713 = vmatprep.subr.mxu0 0.0
    %3714 = vmatpush1.msra.mxu0 0.0
    %3715 = vmatprep.subr.mxu0 0.0
    %3716 = vmatpush1.msra.mxu0 0.0
    %3717 = vmatprep.subr.mxu0 0.0
    %3718 = vmatpush1.msra.mxu0 0.0
    %3719 = vmatprep.subr.mxu0 0.0
    %3720 = vmatpush1.msra.mxu0 0.0
    %3721 = vmatprep.subr.mxu0 0.0
    %3722 = vmatpush1.msra.mxu0 0.0
    %3723 = vmatprep.mubr.f32.mxu0 0.0
    %3724 = vmatmul.mubr.f32.gmra.mrb[0].mxu0 %v3654
    %v3725 = vpop.f32.mrb[0].mxu0
    %v3726 = vadd.f32 %v3652, %v3725
    %v3727 = vpop.f32.mrb[0].mxu0
    %3728 = vmatprep.mubr.f32.mxu0 0.0
    %3729 = vmatmul.mubr.f32.gmra.mrb[0].mxu0 %v3657
    %v3730 = vpop.f32.mrb[0].mxu0
    %v3731 = vadd.f32 %v3652, %v3730
    %v3732 = vpop.f32.mrb[0].mxu0
    %3733 = vdwg.mxu0
    %v3734 = vld [vmem:[#allocation2 + $0x1f0] sm:$0xff]
    %v3735 = vld [vmem:[#allocation2 + $0x1f8] sm:$0xff]
    %v3736 = vld [vmem:[#allocation2 + $0x200] sm:$0xff]
    %v3737 = vld [vmem:[#allocation2 + $0x208] sm:$0xff]
    %v3738 = vld [vmem:[#allocation2 + $0x210] sm:$0x1]
    %v3739 = vlaneseq
    %v3740 = vshrl.u32 %v3739, 7
    %v3741 = vsub.s32 0, %v3740
    %v3742 = vrot.slane %v3738, %v3741
    %3743 = vmatprep.subr.mxu0 0.0
    %3744 = vmatpush1.msra.mxu0 %v3734
    %3745 = vmatprep.subr.mxu0 0.0
    %3746 = vmatpush1.msra.mxu0 %v3735
    %3747 = vmatprep.subr.mxu0 0.0
    %3748 = vmatpush1.msra.mxu0 %v3736
    %3749 = vmatprep.subr.mxu0 0.0
    %3750 = vmatpush1.msra.mxu0 %v3737
    %3751 = vmatprep.subr.mxu0 0.0
    %3752 = vmatpush1.msra.mxu0 0.0
    %3753 = vmatprep.subr.mxu0 0.0
    %3754 = vmatpush1.msra.mxu0 0.0
    %3755 = vmatprep.subr.mxu0 0.0
    %3756 = vmatpush1.msra.mxu0 0.0
    %3757 = vmatprep.subr.mxu0 0.0
    %3758 = vmatpush1.msra.mxu0 0.0
    %3759 = vmatprep.subr.mxu0 0.0
    %3760 = vmatpush1.msra.mxu0 0.0
    %3761 = vmatprep.subr.mxu0 0.0
    %3762 = vmatpush1.msra.mxu0 0.0
    %3763 = vmatprep.subr.mxu0 0.0
    %3764 = vmatpush1.msra.mxu0 0.0
    %3765 = vmatprep.subr.mxu0 0.0
    %3766 = vmatpush1.msra.mxu0 0.0
    %3767 = vmatprep.subr.mxu0 0.0
    %3768 = vmatpush1.msra.mxu0 0.0
    %3769 = vmatprep.subr.mxu0 0.0
    %3770 = vmatpush1.msra.mxu0 0.0
    %3771 = vmatprep.subr.mxu0 0.0
    %3772 = vmatpush1.msra.mxu0 0.0
    %3773 = vmatprep.subr.mxu0 0.0
    %3774 = vmatpush1.msra.mxu0 0.0
    %3775 = vmatprep.subr.mxu0 0.0
    %3776 = vmatpush1.msra.mxu0 0.0
    %3777 = vmatprep.subr.mxu0 0.0
    %3778 = vmatpush1.msra.mxu0 0.0
    %3779 = vmatprep.subr.mxu0 0.0
    %3780 = vmatpush1.msra.mxu0 0.0
    %3781 = vmatprep.subr.mxu0 0.0
    %3782 = vmatpush1.msra.mxu0 0.0
    %3783 = vmatprep.subr.mxu0 0.0
    %3784 = vmatpush1.msra.mxu0 0.0
    %3785 = vmatprep.subr.mxu0 0.0
    %3786 = vmatpush1.msra.mxu0 0.0
    %3787 = vmatprep.subr.mxu0 0.0
    %3788 = vmatpush1.msra.mxu0 0.0
    %3789 = vmatprep.subr.mxu0 0.0
    %3790 = vmatpush1.msra.mxu0 0.0
    %3791 = vmatprep.subr.mxu0 0.0
    %3792 = vmatpush1.msra.mxu0 0.0
    %3793 = vmatprep.subr.mxu0 0.0
    %3794 = vmatpush1.msra.mxu0 0.0
    %3795 = vmatprep.subr.mxu0 0.0
    %3796 = vmatpush1.msra.mxu0 0.0
    %3797 = vmatprep.subr.mxu0 0.0
    %3798 = vmatpush1.msra.mxu0 0.0
    %3799 = vmatprep.subr.mxu0 0.0
    %3800 = vmatpush1.msra.mxu0 0.0
    %3801 = vmatprep.subr.mxu0 0.0
    %3802 = vmatpush1.msra.mxu0 0.0
    %3803 = vmatprep.subr.mxu0 0.0
    %3804 = vmatpush1.msra.mxu0 0.0
    %3805 = vmatprep.subr.mxu0 0.0
    %3806 = vmatpush1.msra.mxu0 0.0
    %3807 = vmatprep.mubr.f32.mxu0 0.0
    %3808 = vmatmul.mubr.f32.gmra.mrb[0].mxu0 %v1295
    %v3809 = vpop.f32.mrb[0].mxu0
    %v3810 = vadd.f32 %v3742, %v3809
    %v3811 = vpop.f32.mrb[0].mxu0
    %3812 = vmatprep.mubr.f32.mxu0 0.0
    %3813 = vmatmul.mubr.f32.gmra.mrb[0].mxu0 %v1298
    %v3814 = vpop.f32.mrb[0].mxu0
    %v3815 = vadd.f32 %v3742, %v3814
    %v3816 = vpop.f32.mrb[0].mxu0
    %3817 = vdwg.mxu0
    %v3818 = vld [vmem:[#allocation2 + $0x218] sm:$0xff]
    %v3819 = vld [vmem:[#allocation2 + $0x220] sm:$0xff]
    %v3820 = vld [vmem:[#allocation2 + $0x228] sm:$0xff]
    %v3821 = vld [vmem:[#allocation2 + $0x230] sm:$0xff]
    %v3822 = vld [vmem:[#allocation2 + $0x238] sm:$0x1]
    %v3824 = vsel %vm43, %v3726, 0
    %v3827 = vsel %vm43, %v3731, 0
    %v3830 = vsel %vm43, %v3810, 0
    %v3833 = vsel %vm43, %v3815, 0
    %3835 = vmatprep.subr.mxu0 0.0
    %3836 = vmatpush1.xpose.msra.mxu0 %v3830
    %3837 = vmatprep.subr.mxu0 0.0
    %3838 = vmatpush1.xpose.msra.mxu0 %v3833
    %3839 = vmatprep.subr.mxu0 0.0
    %3840 = vmatpush1.xpose.msra.mxu0 0.0
    %3841 = vmatprep.subr.mxu0 0.0
    %3842 = vmatpush1.xpose.msra.mxu0 0.0
    %3843 = vmatprep.subr.mxu0 0.0
    %3844 = vmatpush1.xpose.msra.mxu0 0.0
    %3845 = vmatprep.subr.mxu0 0.0
    %3846 = vmatpush1.xpose.msra.mxu0 0.0
    %3847 = vmatprep.subr.mxu0 0.0
    %3848 = vmatpush1.xpose.msra.mxu0 0.0
    %3849 = vmatprep.subr.mxu0 0.0
    %3850 = vmatpush1.xpose.msra.mxu0 0.0
    %3851 = vmatprep.subr.mxu0 0.0
    %3852 = vmatpush1.xpose.msra.mxu0 0.0
    %3853 = vmatprep.subr.mxu0 0.0
    %3854 = vmatpush1.xpose.msra.mxu0 0.0
    %3855 = vmatprep.subr.mxu0 0.0
    %3856 = vmatpush1.xpose.msra.mxu0 0.0
    %3857 = vmatprep.subr.mxu0 0.0
    %3858 = vmatpush1.xpose.msra.mxu0 0.0
    %3859 = vmatprep.subr.mxu0 0.0
    %3860 = vmatpush1.xpose.msra.mxu0 0.0
    %3861 = vmatprep.subr.mxu0 0.0
    %3862 = vmatpush1.xpose.msra.mxu0 0.0
    %3863 = vmatprep.subr.mxu0 0.0
    %3864 = vmatpush1.xpose.msra.mxu0 0.0
    %3865 = vmatprep.subr.mxu0 0.0
    %3866 = vmatpush1.xpose.msra.mxu0 0.0
    %3867 = vmatprep.subr.mxu0 0.0
    %3868 = vmatpush1.xpose.msra.mxu0 0.0
    %3869 = vmatprep.subr.mxu0 0.0
    %3870 = vmatpush1.xpose.msra.mxu0 0.0
    %3871 = vmatprep.subr.mxu0 0.0
    %3872 = vmatpush1.xpose.msra.mxu0 0.0
    %3873 = vmatprep.subr.mxu0 0.0
    %3874 = vmatpush1.xpose.msra.mxu0 0.0
    %3875 = vmatprep.subr.mxu0 0.0
    %3876 = vmatpush1.xpose.msra.mxu0 0.0
    %3877 = vmatprep.subr.mxu0 0.0
    %3878 = vmatpush1.xpose.msra.mxu0 0.0
    %3879 = vmatprep.subr.mxu0 0.0
    %3880 = vmatpush1.xpose.msra.mxu0 0.0
    %3881 = vmatprep.subr.mxu0 0.0
    %3882 = vmatpush1.xpose.msra.mxu0 0.0
    %3883 = vmatprep.subr.mxu0 0.0
    %3884 = vmatpush1.xpose.msra.mxu0 0.0
    %3885 = vmatprep.subr.mxu0 0.0
    %3886 = vmatpush1.xpose.msra.mxu0 0.0
    %3887 = vmatprep.subr.mxu0 0.0
    %3888 = vmatpush1.xpose.msra.mxu0 0.0
    %3889 = vmatprep.subr.mxu0 0.0
    %3890 = vmatpush1.xpose.msra.mxu0 0.0
    %3891 = vmatprep.subr.mxu0 0.0
    %3892 = vmatpush1.xpose.msra.mxu0 0.0
    %3893 = vmatprep.subr.mxu0 0.0
    %3894 = vmatpush1.xpose.msra.mxu0 0.0
    %3895 = vmatprep.subr.mxu0 0.0
    %3896 = vmatpush1.xpose.msra.mxu0 0.0
    %3897 = vmatprep.subr.mxu0 0.0
    %3898 = vmatpush1.xpose.msra.mxu0 0.0
    %3899 = vmatprep.mubr.f32.mxu0 0.0
    %3900 = vmatmul.mubr.f32.gmra.mrb[0].mxu0 %v3824
    %v3901 = vpop.f32.mrb[0].mxu0
    %v3902 = vadd.f32 0.0, %v3901
    %v3903 = vpop.f32.mrb[0].mxu0
    %3904 = vmatprep.mubr.f32.mxu0 0.0
    %3905 = vmatmul.mubr.f32.gmra.mrb[0].mxu0 %v3827
    %v3906 = vpop.f32.mrb[0].mxu0
    %v3907 = vadd.f32 0.0, %v3906
    %v3908 = vpop.f32.mrb[0].mxu0
    %3909 = vdwg.mxu0
    %v3910 = vmul.f32 %v3902, 0.35355338
    %v3911 = vmul.f32 %v3907, 0.35355338
    %v3912 = vadd.f32 %v3910, %v31
    %v3913 = vadd.f32 %v3911, %v32
    %v3914 = vsel %vm314, %v3912, -inf
    %3915 = vmax.xlane.f32.xlu0 %v3914
    %v3916 = vpop.xlane.xlu0 %3915
    %v3917 = vsel %vm314, %v3913, -inf
    %3918 = vmax.xlane.f32.xlu0 %v3917
    %v3919 = vpop.xlane.xlu0 %3918
    %v3920 = vsub.f32 %v3912, %v3916
    %v3921 = vsub.f32 %v3913, %v3919
    %v3922 = vmul.f32 %v3920, 1.442695
    %v3923 = vpow.pop %v3922
    %v3924 = vmul.f32 %v3921, 1.442695
    %v3925 = vpow.pop %v3924
    %v3926 = vsel %vm314, %v3923, 0.0
    %3927 = vadd.xlane.f32.xlu0 %v3926
    %v3928 = vpop.xlane.xlu0 %3927
    %v3929 = vsel %vm314, %v3925, 0.0
    %3930 = vadd.xlane.f32.xlu0 %v3929
    %v3931 = vpop.xlane.xlu0 %3930
    %v3932 = vrcp.pop %v3928
    %v3933 = vrcp.pop %v3931
    %v3934 = vmul.f32 %v3923, %v3932
    %v3935 = vmul.f32 %v3925, %v3933
    %3936 = vrot.lane.b32.xlu0 %v3810, 96
    %v3937 = vpop.permute.xlu0 %3936
    %3938 = vrot.lane.b32.xlu0 %v3815, 96
    %v3939 = vpop.permute.xlu0 %3938
    %v3943 = vsel %vm314, %v3934, 0
    %v3946 = vsel %vm314, %v3935, 0
    %3948 = vmatprep.subr.mxu0 0.0
    %3949 = vmatpush1.msra.mxu0 %v3937
    %3950 = vmatprep.subr.mxu0 0.0
    %3951 = vmatpush1.msra.mxu0 %v3939
    %3952 = vmatprep.subr.mxu0 0.0
    %3953 = vmatpush1.msra.mxu0 0.0
    %3954 = vmatprep.subr.mxu0 0.0
    %3955 = vmatpush1.msra.mxu0 0.0
    %3956 = vmatprep.subr.mxu0 0.0
    %3957 = vmatpush1.msra.mxu0 0.0
    %3958 = vmatprep.subr.mxu0 0.0
    %3959 = vmatpush1.msra.mxu0 0.0
    %3960 = vmatprep.subr.mxu0 0.0
    %3961 = vmatpush1.msra.mxu0 0.0
    %3962 = vmatprep.subr.mxu0 0.0
    %3963 = vmatpush1.msra.mxu0 0.0
    %3964 = vmatprep.subr.mxu0 0.0
    %3965 = vmatpush1.msra.mxu0 0.0
    %3966 = vmatprep.subr.mxu0 0.0
    %3967 = vmatpush1.msra.mxu0 0.0
    %3968 = vmatprep.subr.mxu0 0.0
    %3969 = vmatpush1.msra.mxu0 0.0
    %3970 = vmatprep.subr.mxu0 0.0
    %3971 = vmatpush1.msra.mxu0 0.0
    %3972 = vmatprep.subr.mxu0 0.0
    %3973 = vmatpush1.msra.mxu0 0.0
    %3974 = vmatprep.subr.mxu0 0.0
    %3975 = vmatpush1.msra.mxu0 0.0
    %3976 = vmatprep.subr.mxu0 0.0
    %3977 = vmatpush1.msra.mxu0 0.0
    %3978 = vmatprep.subr.mxu0 0.0
    %3979 = vmatpush1.msra.mxu0 0.0
    %3980 = vmatprep.subr.mxu0 0.0
    %3981 = vmatpush1.msra.mxu0 0.0
    %3982 = vmatprep.subr.mxu0 0.0
    %3983 = vmatpush1.msra.mxu0 0.0
    %3984 = vmatprep.subr.mxu0 0.0
    %3985 = vmatpush1.msra.mxu0 0.0
    %3986 = vmatprep.subr.mxu0 0.0
    %3987 = vmatpush1.msra.mxu0 0.0
    %3988 = vmatprep.subr.mxu0 0.0
    %3989 = vmatpush1.msra.mxu0 0.0
    %3990 = vmatprep.subr.mxu0 0.0
    %3991 = vmatpush1.msra.mxu0 0.0
    %3992 = vmatprep.subr.mxu0 0.0
    %3993 = vmatpush1.msra.mxu0 0.0
    %3994 = vmatprep.subr.mxu0 0.0
    %3995 = vmatpush1.msra.mxu0 0.0
    %3996 = vmatprep.subr.mxu0 0.0
    %3997 = vmatpush1.msra.mxu0 0.0
    %3998 = vmatprep.subr.mxu0 0.0
    %3999 = vmatpush1.msra.mxu0 0.0
    %4000 = vmatprep.subr.mxu0 0.0
    %4001 = vmatpush1.msra.mxu0 0.0
    %4002 = vmatprep.subr.mxu0 0.0
    %4003 = vmatpush1.msra.mxu0 0.0
    %4004 = vmatprep.subr.mxu0 0.0
    %4005 = vmatpush1.msra.mxu0 0.0
    %4006 = vmatprep.subr.mxu0 0.0
    %4007 = vmatpush1.msra.mxu0 0.0
    %4008 = vmatprep.subr.mxu0 0.0
    %4009 = vmatpush1.msra.mxu0 0.0
    %4010 = vmatprep.subr.mxu0 0.0
    %4011 = vmatpush1.msra.mxu0 0.0
    %4012 = vmatprep.mubr.f32.mxu0 0.0
    %4013 = vmatmul.mubr.f32.gmra.mrb[0].mxu0 %v3943
    %v4014 = vpop.f32.mrb[0].mxu0
    %v4015 = vadd.f32 0.0, %v4014
    %v4016 = vpop.f32.mrb[0].mxu0
    %4017 = vmatprep.mubr.f32.mxu0 0.0
    %4018 = vmatmul.mubr.f32.gmra.mrb[0].mxu0 %v3946
    %v4019 = vpop.f32.mrb[0].mxu0
    %v4020 = vadd.f32 0.0, %v4019
    %v4021 = vpop.f32.mrb[0].mxu0
    %4022 = vdwg.mxu0
    %4023 = vrot.lane.b32.xlu0 %v3726, 120
    %v4024 = vpop.permute.xlu0 %4023
    %4025 = vrot.lane.b32.xlu0 %v3731, 120
    %v4026 = vpop.permute.xlu0 %4025
    %4027 = vrot.lane.b32.xlu0 %v3810, 120
    %v4028 = vpop.permute.xlu0 %4027
    %4029 = vrot.lane.b32.xlu0 %v3815, 120
    %v4030 = vpop.permute.xlu0 %4029
    %v4031 = vsel %vm43, %v4024, 0
    %v4033 = vsel %vm43, %v4026, 0
    %v4035 = vsel %vm43, %v4028, 0
    %v4037 = vsel %vm43, %v4030, 0
    %4039 = vmatprep.subr.mxu0 0.0
    %4040 = vmatpush1.xpose.msra.mxu0 %v4035
    %4041 = vmatprep.subr.mxu0 0.0
    %4042 = vmatpush1.xpose.msra.mxu0 %v4037
    %4043 = vmatprep.subr.mxu0 0.0
    %4044 = vmatpush1.xpose.msra.mxu0 0.0
    %4045 = vmatprep.subr.mxu0 0.0
    %4046 = vmatpush1.xpose.msra.mxu0 0.0
    %4047 = vmatprep.subr.mxu0 0.0
    %4048 = vmatpush1.xpose.msra.mxu0 0.0
    %4049 = vmatprep.subr.mxu0 0.0
    %4050 = vmatpush1.xpose.msra.mxu0 0.0
    %4051 = vmatprep.subr.mxu0 0.0
    %4052 = vmatpush1.xpose.msra.mxu0 0.0
    %4053 = vmatprep.subr.mxu0 0.0
    %4054 = vmatpush1.xpose.msra.mxu0 0.0
    %4055 = vmatprep.subr.mxu0 0.0
    %4056 = vmatpush1.xpose.msra.mxu0 0.0
    %4057 = vmatprep.subr.mxu0 0.0
    %4058 = vmatpush1.xpose.msra.mxu0 0.0
    %4059 = vmatprep.subr.mxu0 0.0
    %4060 = vmatpush1.xpose.msra.mxu0 0.0
    %4061 = vmatprep.subr.mxu0 0.0
    %4062 = vmatpush1.xpose.msra.mxu0 0.0
    %4063 = vmatprep.subr.mxu0 0.0
    %4064 = vmatpush1.xpose.msra.mxu0 0.0
    %4065 = vmatprep.subr.mxu0 0.0
    %4066 = vmatpush1.xpose.msra.mxu0 0.0
    %4067 = vmatprep.subr.mxu0 0.0
    %4068 = vmatpush1.xpose.msra.mxu0 0.0
    %4069 = vmatprep.subr.mxu0 0.0
    %4070 = vmatpush1.xpose.msra.mxu0 0.0
    %4071 = vmatprep.subr.mxu0 0.0
    %4072 = vmatpush1.xpose.msra.mxu0 0.0
    %4073 = vmatprep.subr.mxu0 0.0
    %4074 = vmatpush1.xpose.msra.mxu0 0.0
    %4075 = vmatprep.subr.mxu0 0.0
    %4076 = vmatpush1.xpose.msra.mxu0 0.0
    %4077 = vmatprep.subr.mxu0 0.0
    %4078 = vmatpush1.xpose.msra.mxu0 0.0
    %4079 = vmatprep.subr.mxu0 0.0
    %4080 = vmatpush1.xpose.msra.mxu0 0.0
    %4081 = vmatprep.subr.mxu0 0.0
    %4082 = vmatpush1.xpose.msra.mxu0 0.0
    %4083 = vmatprep.subr.mxu0 0.0
    %4084 = vmatpush1.xpose.msra.mxu0 0.0
    %4085 = vmatprep.subr.mxu0 0.0
    %4086 = vmatpush1.xpose.msra.mxu0 0.0
    %4087 = vmatprep.subr.mxu0 0.0
    %4088 = vmatpush1.xpose.msra.mxu0 0.0
    %4089 = vmatprep.subr.mxu0 0.0
    %4090 = vmatpush1.xpose.msra.mxu0 0.0
    %4091 = vmatprep.subr.mxu0 0.0
    %4092 = vmatpush1.xpose.msra.mxu0 0.0
    %4093 = vmatprep.subr.mxu0 0.0
    %4094 = vmatpush1.xpose.msra.mxu0 0.0
    %4095 = vmatprep.subr.mxu0 0.0
    %4096 = vmatpush1.xpose.msra.mxu0 0.0
    %4097 = vmatprep.subr.mxu0 0.0
    %4098 = vmatpush1.xpose.msra.mxu0 0.0
    %4099 = vmatprep.subr.mxu0 0.0
    %4100 = vmatpush1.xpose.msra.mxu0 0.0
    %4101 = vmatprep.subr.mxu0 0.0
    %4102 = vmatpush1.xpose.msra.mxu0 0.0
    %4103 = vmatprep.mubr.f32.mxu0 0.0
    %4104 = vmatmul.mubr.f32.gmra.mrb[0].mxu0 %v4031
    %v4105 = vpop.f32.mrb[0].mxu0
    %v4106 = vadd.f32 0.0, %v4105
    %v4107 = vpop.f32.mrb[0].mxu0
    %4108 = vmatprep.mubr.f32.mxu0 0.0
    %4109 = vmatmul.mubr.f32.gmra.mrb[0].mxu0 %v4033
    %v4110 = vpop.f32.mrb[0].mxu0
    %v4111 = vadd.f32 0.0, %v4110
    %v4112 = vpop.f32.mrb[0].mxu0
    %4113 = vdwg.mxu0
    %v4114 = vmul.f32 %v4106, 0.35355338
    %v4115 = vmul.f32 %v4111, 0.35355338
    %v4116 = vadd.f32 %v4114, %v31
    %v4117 = vadd.f32 %v4115, %v32
    %v4118 = vsel %vm314, %v4116, -inf
    %4119 = vmax.xlane.f32.xlu0 %v4118
    %v4120 = vpop.xlane.xlu0 %4119
    %v4121 = vsel %vm314, %v4117, -inf
    %4122 = vmax.xlane.f32.xlu0 %v4121
    %v4123 = vpop.xlane.xlu0 %4122
    %v4124 = vsub.f32 %v4116, %v4120
    %v4125 = vsub.f32 %v4117, %v4123
    %v4126 = vmul.f32 %v4124, 1.442695
    %v4127 = vpow.pop %v4126
    %v4128 = vmul.f32 %v4125, 1.442695
    %v4129 = vpow.pop %v4128
    %v4130 = vsel %vm314, %v4127, 0.0
    %4131 = vadd.xlane.f32.xlu0 %v4130
    %v4132 = vpop.xlane.xlu0 %4131
    %v4133 = vsel %vm314, %v4129, 0.0
    %4134 = vadd.xlane.f32.xlu0 %v4133
    %v4135 = vpop.xlane.xlu0 %4134
    %v4136 = vrcp.pop %v4132
    %v4137 = vrcp.pop %v4135
    %v4138 = vmul.f32 %v4127, %v4136
    %v4139 = vmul.f32 %v4129, %v4137
    %4140 = vrot.lane.b32.xlu0 %v3810, 88
    %v4141 = vpop.permute.xlu0 %4140
    %4142 = vrot.lane.b32.xlu0 %v3815, 88
    %v4143 = vpop.permute.xlu0 %4142
    %v4147 = vsel %vm314, %v4138, 0
    %v4150 = vsel %vm314, %v4139, 0
    %4152 = vmatprep.subr.mxu0 0.0
    %4153 = vmatpush1.msra.mxu0 %v4141
    %4154 = vmatprep.subr.mxu0 0.0
    %4155 = vmatpush1.msra.mxu0 %v4143
    %4156 = vmatprep.subr.mxu0 0.0
    %4157 = vmatpush1.msra.mxu0 0.0
    %4158 = vmatprep.subr.mxu0 0.0
    %4159 = vmatpush1.msra.mxu0 0.0
    %4160 = vmatprep.subr.mxu0 0.0
    %4161 = vmatpush1.msra.mxu0 0.0
    %4162 = vmatprep.subr.mxu0 0.0
    %4163 = vmatpush1.msra.mxu0 0.0
    %4164 = vmatprep.subr.mxu0 0.0
    %4165 = vmatpush1.msra.mxu0 0.0
    %4166 = vmatprep.subr.mxu0 0.0
    %4167 = vmatpush1.msra.mxu0 0.0
    %4168 = vmatprep.subr.mxu0 0.0
    %4169 = vmatpush1.msra.mxu0 0.0
    %4170 = vmatprep.subr.mxu0 0.0
    %4171 = vmatpush1.msra.mxu0 0.0
    %4172 = vmatprep.subr.mxu0 0.0
    %4173 = vmatpush1.msra.mxu0 0.0
    %4174 = vmatprep.subr.mxu0 0.0
    %4175 = vmatpush1.msra.mxu0 0.0
    %4176 = vmatprep.subr.mxu0 0.0
    %4177 = vmatpush1.msra.mxu0 0.0
    %4178 = vmatprep.subr.mxu0 0.0
    %4179 = vmatpush1.msra.mxu0 0.0
    %4180 = vmatprep.subr.mxu0 0.0
    %4181 = vmatpush1.msra.mxu0 0.0
    %4182 = vmatprep.subr.mxu0 0.0
    %4183 = vmatpush1.msra.mxu0 0.0
    %4184 = vmatprep.subr.mxu0 0.0
    %4185 = vmatpush1.msra.mxu0 0.0
    %4186 = vmatprep.subr.mxu0 0.0
    %4187 = vmatpush1.msra.mxu0 0.0
    %4188 = vmatprep.subr.mxu0 0.0
    %4189 = vmatpush1.msra.mxu0 0.0
    %4190 = vmatprep.subr.mxu0 0.0
    %4191 = vmatpush1.msra.mxu0 0.0
    %4192 = vmatprep.subr.mxu0 0.0
    %4193 = vmatpush1.msra.mxu0 0.0
    %4194 = vmatprep.subr.mxu0 0.0
    %4195 = vmatpush1.msra.mxu0 0.0
    %4196 = vmatprep.subr.mxu0 0.0
    %4197 = vmatpush1.msra.mxu0 0.0
    %4198 = vmatprep.subr.mxu0 0.0
    %4199 = vmatpush1.msra.mxu0 0.0
    %4200 = vmatprep.subr.mxu0 0.0
    %4201 = vmatpush1.msra.mxu0 0.0
    %4202 = vmatprep.subr.mxu0 0.0
    %4203 = vmatpush1.msra.mxu0 0.0
    %4204 = vmatprep.subr.mxu0 0.0
    %4205 = vmatpush1.msra.mxu0 0.0
    %4206 = vmatprep.subr.mxu0 0.0
    %4207 = vmatpush1.msra.mxu0 0.0
    %4208 = vmatprep.subr.mxu0 0.0
    %4209 = vmatpush1.msra.mxu0 0.0
    %4210 = vmatprep.subr.mxu0 0.0
    %4211 = vmatpush1.msra.mxu0 0.0
    %4212 = vmatprep.subr.mxu0 0.0
    %4213 = vmatpush1.msra.mxu0 0.0
    %4214 = vmatprep.subr.mxu0 0.0
    %4215 = vmatpush1.msra.mxu0 0.0
    %4216 = vmatprep.mubr.f32.mxu0 0.0
    %4217 = vmatmul.mubr.f32.gmra.mrb[0].mxu0 %v4147
    %v4218 = vpop.f32.mrb[0].mxu0
    %v4219 = vadd.f32 0.0, %v4218
    %v4220 = vpop.f32.mrb[0].mxu0
    %4221 = vmatprep.mubr.f32.mxu0 0.0
    %4222 = vmatmul.mubr.f32.gmra.mrb[0].mxu0 %v4150
    %v4223 = vpop.f32.mrb[0].mxu0
    %v4224 = vadd.f32 0.0, %v4223
    %v4225 = vpop.f32.mrb[0].mxu0
    %4226 = vdwg.mxu0
    %4227 = vrot.lane.b32.xlu0 %v3726, 112
    %v4228 = vpop.permute.xlu0 %4227
    %4229 = vrot.lane.b32.xlu0 %v3731, 112
    %v4230 = vpop.permute.xlu0 %4229
    %4231 = vrot.lane.b32.xlu0 %v3810, 112
    %v4232 = vpop.permute.xlu0 %4231
    %4233 = vrot.lane.b32.xlu0 %v3815, 112
    %v4234 = vpop.permute.xlu0 %4233
    %v4235 = vsel %vm43, %v4228, 0
    %v4237 = vsel %vm43, %v4230, 0
    %v4239 = vsel %vm43, %v4232, 0
    %v4241 = vsel %vm43, %v4234, 0
    %4243 = vmatprep.subr.mxu0 0.0
    %4244 = vmatpush1.xpose.msra.mxu0 %v4239
    %4245 = vmatprep.subr.mxu0 0.0
    %4246 = vmatpush1.xpose.msra.mxu0 %v4241
    %4247 = vmatprep.subr.mxu0 0.0
    %4248 = vmatpush1.xpose.msra.mxu0 0.0
    %4249 = vmatprep.subr.mxu0 0.0
    %4250 = vmatpush1.xpose.msra.mxu0 0.0
    %4251 = vmatprep.subr.mxu0 0.0
    %4252 = vmatpush1.xpose.msra.mxu0 0.0
    %4253 = vmatprep.subr.mxu0 0.0
    %4254 = vmatpush1.xpose.msra.mxu0 0.0
    %4255 = vmatprep.subr.mxu0 0.0
    %4256 = vmatpush1.xpose.msra.mxu0 0.0
    %4257 = vmatprep.subr.mxu0 0.0
    %4258 = vmatpush1.xpose.msra.mxu0 0.0
    %4259 = vmatprep.subr.mxu0 0.0
    %4260 = vmatpush1.xpose.msra.mxu0 0.0
    %4261 = vmatprep.subr.mxu0 0.0
    %4262 = vmatpush1.xpose.msra.mxu0 0.0
    %4263 = vmatprep.subr.mxu0 0.0
    %4264 = vmatpush1.xpose.msra.mxu0 0.0
    %4265 = vmatprep.subr.mxu0 0.0
    %4266 = vmatpush1.xpose.msra.mxu0 0.0
    %4267 = vmatprep.subr.mxu0 0.0
    %4268 = vmatpush1.xpose.msra.mxu0 0.0
    %4269 = vmatprep.subr.mxu0 0.0
    %4270 = vmatpush1.xpose.msra.mxu0 0.0
    %4271 = vmatprep.subr.mxu0 0.0
    %4272 = vmatpush1.xpose.msra.mxu0 0.0
    %4273 = vmatprep.subr.mxu0 0.0
    %4274 = vmatpush1.xpose.msra.mxu0 0.0
    %4275 = vmatprep.subr.mxu0 0.0
    %4276 = vmatpush1.xpose.msra.mxu0 0.0
    %4277 = vmatprep.subr.mxu0 0.0
    %4278 = vmatpush1.xpose.msra.mxu0 0.0
    %4279 = vmatprep.subr.mxu0 0.0
    %4280 = vmatpush1.xpose.msra.mxu0 0.0
    %4281 = vmatprep.subr.mxu0 0.0
    %4282 = vmatpush1.xpose.msra.mxu0 0.0
    %4283 = vmatprep.subr.mxu0 0.0
    %4284 = vmatpush1.xpose.msra.mxu0 0.0
    %4285 = vmatprep.subr.mxu0 0.0
    %4286 = vmatpush1.xpose.msra.mxu0 0.0
    %4287 = vmatprep.subr.mxu0 0.0
    %4288 = vmatpush1.xpose.msra.mxu0 0.0
    %4289 = vmatprep.subr.mxu0 0.0
    %4290 = vmatpush1.xpose.msra.mxu0 0.0
    %4291 = vmatprep.subr.mxu0 0.0
    %4292 = vmatpush1.xpose.msra.mxu0 0.0
    %4293 = vmatprep.subr.mxu0 0.0
    %4294 = vmatpush1.xpose.msra.mxu0 0.0
    %4295 = vmatprep.subr.mxu0 0.0
    %4296 = vmatpush1.xpose.msra.mxu0 0.0
    %4297 = vmatprep.subr.mxu0 0.0
    %4298 = vmatpush1.xpose.msra.mxu0 0.0
    %4299 = vmatprep.subr.mxu0 0.0
    %4300 = vmatpush1.xpose.msra.mxu0 0.0
    %4301 = vmatprep.subr.mxu0 0.0
    %4302 = vmatpush1.xpose.msra.mxu0 0.0
    %4303 = vmatprep.subr.mxu0 0.0
    %4304 = vmatpush1.xpose.msra.mxu0 0.0
    %4305 = vmatprep.subr.mxu0 0.0
    %4306 = vmatpush1.xpose.msra.mxu0 0.0
    %4307 = vmatprep.mubr.f32.mxu0 0.0
    %4308 = vmatmul.mubr.f32.gmra.mrb[0].mxu0 %v4235
    %v4309 = vpop.f32.mrb[0].mxu0
    %v4310 = vadd.f32 0.0, %v4309
    %v4311 = vpop.f32.mrb[0].mxu0
    %4312 = vmatprep.mubr.f32.mxu0 0.0
    %4313 = vmatmul.mubr.f32.gmra.mrb[0].mxu0 %v4237
    %v4314 = vpop.f32.mrb[0].mxu0
    %v4315 = vadd.f32 0.0, %v4314
    %v4316 = vpop.f32.mrb[0].mxu0
    %4317 = vdwg.mxu0
    %v4318 = vmul.f32 %v4310, 0.35355338
    %v4319 = vmul.f32 %v4315, 0.35355338
    %v4320 = vadd.f32 %v4318, %v31
    %v4321 = vadd.f32 %v4319, %v32
    %v4322 = vsel %vm314, %v4320, -inf
    %4323 = vmax.xlane.f32.xlu0 %v4322
    %v4324 = vpop.xlane.xlu0 %4323
    %v4325 = vsel %vm314, %v4321, -inf
    %4326 = vmax.xlane.f32.xlu0 %v4325
    %v4327 = vpop.xlane.xlu0 %4326
    %v4328 = vsub.f32 %v4320, %v4324
    %v4329 = vsub.f32 %v4321, %v4327
    %v4330 = vmul.f32 %v4328, 1.442695
    %v4331 = vpow.pop %v4330
    %v4332 = vmul.f32 %v4329, 1.442695
    %v4333 = vpow.pop %v4332
    %v4334 = vsel %vm314, %v4331, 0.0
    %4335 = vadd.xlane.f32.xlu0 %v4334
    %v4336 = vpop.xlane.xlu0 %4335
    %v4337 = vsel %vm314, %v4333, 0.0
    %4338 = vadd.xlane.f32.xlu0 %v4337
    %v4339 = vpop.xlane.xlu0 %4338
    %v4340 = vrcp.pop %v4336
    %v4341 = vrcp.pop %v4339
    %v4342 = vmul.f32 %v4331, %v4340
    %v4343 = vmul.f32 %v4333, %v4341
    %4344 = vrot.lane.b32.xlu0 %v3810, 80
    %v4345 = vpop.permute.xlu0 %4344
    %4346 = vrot.lane.b32.xlu0 %v3815, 80
    %v4347 = vpop.permute.xlu0 %4346
    %v4351 = vsel %vm314, %v4342, 0
    %v4354 = vsel %vm314, %v4343, 0
    %4356 = vmatprep.subr.mxu0 0.0
    %4357 = vmatpush1.msra.mxu0 %v4345
    %4358 = vmatprep.subr.mxu0 0.0
    %4359 = vmatpush1.msra.mxu0 %v4347
    %4360 = vmatprep.subr.mxu0 0.0
    %4361 = vmatpush1.msra.mxu0 0.0
    %4362 = vmatprep.subr.mxu0 0.0
    %4363 = vmatpush1.msra.mxu0 0.0
    %4364 = vmatprep.subr.mxu0 0.0
    %4365 = vmatpush1.msra.mxu0 0.0
    %4366 = vmatprep.subr.mxu0 0.0
    %4367 = vmatpush1.msra.mxu0 0.0
    %4368 = vmatprep.subr.mxu0 0.0
    %4369 = vmatpush1.msra.mxu0 0.0
    %4370 = vmatprep.subr.mxu0 0.0
    %4371 = vmatpush1.msra.mxu0 0.0
    %4372 = vmatprep.subr.mxu0 0.0
    %4373 = vmatpush1.msra.mxu0 0.0
    %4374 = vmatprep.subr.mxu0 0.0
    %4375 = vmatpush1.msra.mxu0 0.0
    %4376 = vmatprep.subr.mxu0 0.0
    %4377 = vmatpush1.msra.mxu0 0.0
    %4378 = vmatprep.subr.mxu0 0.0
    %4379 = vmatpush1.msra.mxu0 0.0
    %4380 = vmatprep.subr.mxu0 0.0
    %4381 = vmatpush1.msra.mxu0 0.0
    %4382 = vmatprep.subr.mxu0 0.0
    %4383 = vmatpush1.msra.mxu0 0.0
    %4384 = vmatprep.subr.mxu0 0.0
    %4385 = vmatpush1.msra.mxu0 0.0
    %4386 = vmatprep.subr.mxu0 0.0
    %4387 = vmatpush1.msra.mxu0 0.0
    %4388 = vmatprep.subr.mxu0 0.0
    %4389 = vmatpush1.msra.mxu0 0.0
    %4390 = vmatprep.subr.mxu0 0.0
    %4391 = vmatpush1.msra.mxu0 0.0
    %4392 = vmatprep.subr.mxu0 0.0
    %4393 = vmatpush1.msra.mxu0 0.0
    %4394 = vmatprep.subr.mxu0 0.0
    %4395 = vmatpush1.msra.mxu0 0.0
    %4396 = vmatprep.subr.mxu0 0.0
    %4397 = vmatpush1.msra.mxu0 0.0
    %4398 = vmatprep.subr.mxu0 0.0
    %4399 = vmatpush1.msra.mxu0 0.0
    %4400 = vmatprep.subr.mxu0 0.0
    %4401 = vmatpush1.msra.mxu0 0.0
    %4402 = vmatprep.subr.mxu0 0.0
    %4403 = vmatpush1.msra.mxu0 0.0
    %4404 = vmatprep.subr.mxu0 0.0
    %4405 = vmatpush1.msra.mxu0 0.0
    %4406 = vmatprep.subr.mxu0 0.0
    %4407 = vmatpush1.msra.mxu0 0.0
    %4408 = vmatprep.subr.mxu0 0.0
    %4409 = vmatpush1.msra.mxu0 0.0
    %4410 = vmatprep.subr.mxu0 0.0
    %4411 = vmatpush1.msra.mxu0 0.0
    %4412 = vmatprep.subr.mxu0 0.0
    %4413 = vmatpush1.msra.mxu0 0.0
    %4414 = vmatprep.subr.mxu0 0.0
    %4415 = vmatpush1.msra.mxu0 0.0
    %4416 = vmatprep.subr.mxu0 0.0
    %4417 = vmatpush1.msra.mxu0 0.0
    %4418 = vmatprep.subr.mxu0 0.0
    %4419 = vmatpush1.msra.mxu0 0.0
    %4420 = vmatprep.mubr.f32.mxu0 0.0
    %4421 = vmatmul.mubr.f32.gmra.mrb[0].mxu0 %v4351
    %v4422 = vpop.f32.mrb[0].mxu0
    %v4423 = vadd.f32 0.0, %v4422
    %v4424 = vpop.f32.mrb[0].mxu0
    %4425 = vmatprep.mubr.f32.mxu0 0.0
    %4426 = vmatmul.mubr.f32.gmra.mrb[0].mxu0 %v4354
    %v4427 = vpop.f32.mrb[0].mxu0
    %v4428 = vadd.f32 0.0, %v4427
    %v4429 = vpop.f32.mrb[0].mxu0
    %4430 = vdwg.mxu0
    %4431 = vrot.lane.b32.xlu0 %v3726, 104
    %v4432 = vpop.permute.xlu0 %4431
    %4433 = vrot.lane.b32.xlu0 %v3731, 104
    %v4434 = vpop.permute.xlu0 %4433
    %4435 = vrot.lane.b32.xlu0 %v3810, 104
    %v4436 = vpop.permute.xlu0 %4435
    %4437 = vrot.lane.b32.xlu0 %v3815, 104
    %v4438 = vpop.permute.xlu0 %4437
    %v4439 = vsel %vm43, %v4432, 0
    %v4441 = vsel %vm43, %v4434, 0
    %v4443 = vsel %vm43, %v4436, 0
    %v4445 = vsel %vm43, %v4438, 0
    %4447 = vmatprep.subr.mxu0 0.0
    %4448 = vmatpush1.xpose.msra.mxu0 %v4443
    %4449 = vmatprep.subr.mxu0 0.0
    %4450 = vmatpush1.xpose.msra.mxu0 %v4445
    %4451 = vmatprep.subr.mxu0 0.0
    %4452 = vmatpush1.xpose.msra.mxu0 0.0
    %4453 = vmatprep.subr.mxu0 0.0
    %4454 = vmatpush1.xpose.msra.mxu0 0.0
    %4455 = vmatprep.subr.mxu0 0.0
    %4456 = vmatpush1.xpose.msra.mxu0 0.0
    %4457 = vmatprep.subr.mxu0 0.0
    %4458 = vmatpush1.xpose.msra.mxu0 0.0
    %4459 = vmatprep.subr.mxu0 0.0
    %4460 = vmatpush1.xpose.msra.mxu0 0.0
    %4461 = vmatprep.subr.mxu0 0.0
    %4462 = vmatpush1.xpose.msra.mxu0 0.0
    %4463 = vmatprep.subr.mxu0 0.0
    %4464 = vmatpush1.xpose.msra.mxu0 0.0
    %4465 = vmatprep.subr.mxu0 0.0
    %4466 = vmatpush1.xpose.msra.mxu0 0.0
    %4467 = vmatprep.subr.mxu0 0.0
    %4468 = vmatpush1.xpose.msra.mxu0 0.0
    %4469 = vmatprep.subr.mxu0 0.0
    %4470 = vmatpush1.xpose.msra.mxu0 0.0
    %4471 = vmatprep.subr.mxu0 0.0
    %4472 = vmatpush1.xpose.msra.mxu0 0.0
    %4473 = vmatprep.subr.mxu0 0.0
    %4474 = vmatpush1.xpose.msra.mxu0 0.0
    %4475 = vmatprep.subr.mxu0 0.0
    %4476 = vmatpush1.xpose.msra.mxu0 0.0
    %4477 = vmatprep.subr.mxu0 0.0
    %4478 = vmatpush1.xpose.msra.mxu0 0.0
    %4479 = vmatprep.subr.mxu0 0.0
    %4480 = vmatpush1.xpose.msra.mxu0 0.0
    %4481 = vmatprep.subr.mxu0 0.0
    %4482 = vmatpush1.xpose.msra.mxu0 0.0
    %4483 = vmatprep.subr.mxu0 0.0
    %4484 = vmatpush1.xpose.msra.mxu0 0.0
    %4485 = vmatprep.subr.mxu0 0.0
    %4486 = vmatpush1.xpose.msra.mxu0 0.0
    %4487 = vmatprep.subr.mxu0 0.0
    %4488 = vmatpush1.xpose.msra.mxu0 0.0
    %4489 = vmatprep.subr.mxu0 0.0
    %4490 = vmatpush1.xpose.msra.mxu0 0.0
    %4491 = vmatprep.subr.mxu0 0.0
    %4492 = vmatpush1.xpose.msra.mxu0 0.0
    %4493 = vmatprep.subr.mxu0 0.0
    %4494 = vmatpush1.xpose.msra.mxu0 0.0
    %4495 = vmatprep.subr.mxu0 0.0
    %4496 = vmatpush1.xpose.msra.mxu0 0.0
    %4497 = vmatprep.subr.mxu0 0.0
    %4498 = vmatpush1.xpose.msra.mxu0 0.0
    %4499 = vmatprep.subr.mxu0 0.0
    %4500 = vmatpush1.xpose.msra.mxu0 0.0
    %4501 = vmatprep.subr.mxu0 0.0
    %4502 = vmatpush1.xpose.msra.mxu0 0.0
    %4503 = vmatprep.subr.mxu0 0.0
    %4504 = vmatpush1.xpose.msra.mxu0 0.0
    %4505 = vmatprep.subr.mxu0 0.0
    %4506 = vmatpush1.xpose.msra.mxu0 0.0
    %4507 = vmatprep.subr.mxu0 0.0
    %4508 = vmatpush1.xpose.msra.mxu0 0.0
    %4509 = vmatprep.subr.mxu0 0.0
    %4510 = vmatpush1.xpose.msra.mxu0 0.0
    %4511 = vmatprep.mubr.f32.mxu0 0.0
    %4512 = vmatmul.mubr.f32.gmra.mrb[0].mxu0 %v4439
    %v4513 = vpop.f32.mrb[0].mxu0
    %v4514 = vadd.f32 0.0, %v4513
    %v4515 = vpop.f32.mrb[0].mxu0
    %4516 = vmatprep.mubr.f32.mxu0 0.0
    %4517 = vmatmul.mubr.f32.gmra.mrb[0].mxu0 %v4441
    %v4518 = vpop.f32.mrb[0].mxu0
    %v4519 = vadd.f32 0.0, %v4518
    %v4520 = vpop.f32.mrb[0].mxu0
    %4521 = vdwg.mxu0
    %v4522 = vmul.f32 %v4514, 0.35355338
    %v4523 = vmul.f32 %v4519, 0.35355338
    %v4524 = vadd.f32 %v4522, %v31
    %v4525 = vadd.f32 %v4523, %v32
    %v4526 = vsel %vm314, %v4524, -inf
    %4527 = vmax.xlane.f32.xlu0 %v4526
    %v4528 = vpop.xlane.xlu0 %4527
    %v4529 = vsel %vm314, %v4525, -inf
    %4530 = vmax.xlane.f32.xlu0 %v4529
    %v4531 = vpop.xlane.xlu0 %4530
    %v4532 = vsub.f32 %v4524, %v4528
    %v4533 = vsub.f32 %v4525, %v4531
    %v4534 = vmul.f32 %v4532, 1.442695
    %v4535 = vpow.pop %v4534
    %v4536 = vmul.f32 %v4533, 1.442695
    %v4537 = vpow.pop %v4536
    %v4538 = vsel %vm314, %v4535, 0.0
    %4539 = vadd.xlane.f32.xlu0 %v4538
    %v4540 = vpop.xlane.xlu0 %4539
    %v4541 = vsel %vm314, %v4537, 0.0
    %4542 = vadd.xlane.f32.xlu0 %v4541
    %v4543 = vpop.xlane.xlu0 %4542
    %v4544 = vrcp.pop %v4540
    %v4545 = vrcp.pop %v4543
    %v4546 = vmul.f32 %v4535, %v4544
    %v4547 = vmul.f32 %v4537, %v4545
    %4548 = vrot.lane.b32.xlu0 %v3810, 72
    %v4549 = vpop.permute.xlu0 %4548
    %4550 = vrot.lane.b32.xlu0 %v3815, 72
    %v4551 = vpop.permute.xlu0 %4550
    %v4555 = vsel %vm314, %v4546, 0
    %v4558 = vsel %vm314, %v4547, 0
    %4560 = vmatprep.subr.mxu0 0.0
    %4561 = vmatpush1.msra.mxu0 %v4549
    %4562 = vmatprep.subr.mxu0 0.0
    %4563 = vmatpush1.msra.mxu0 %v4551
    %4564 = vmatprep.subr.mxu0 0.0
    %4565 = vmatpush1.msra.mxu0 0.0
    %4566 = vmatprep.subr.mxu0 0.0
    %4567 = vmatpush1.msra.mxu0 0.0
    %4568 = vmatprep.subr.mxu0 0.0
    %4569 = vmatpush1.msra.mxu0 0.0
    %4570 = vmatprep.subr.mxu0 0.0
    %4571 = vmatpush1.msra.mxu0 0.0
    %4572 = vmatprep.subr.mxu0 0.0
    %4573 = vmatpush1.msra.mxu0 0.0
    %4574 = vmatprep.subr.mxu0 0.0
    %4575 = vmatpush1.msra.mxu0 0.0
    %4576 = vmatprep.subr.mxu0 0.0
    %4577 = vmatpush1.msra.mxu0 0.0
    %4578 = vmatprep.subr.mxu0 0.0
    %4579 = vmatpush1.msra.mxu0 0.0
    %4580 = vmatprep.subr.mxu0 0.0
    %4581 = vmatpush1.msra.mxu0 0.0
    %4582 = vmatprep.subr.mxu0 0.0
    %4583 = vmatpush1.msra.mxu0 0.0
    %4584 = vmatprep.subr.mxu0 0.0
    %4585 = vmatpush1.msra.mxu0 0.0
    %4586 = vmatprep.subr.mxu0 0.0
    %4587 = vmatpush1.msra.mxu0 0.0
    %4588 = vmatprep.subr.mxu0 0.0
    %4589 = vmatpush1.msra.mxu0 0.0
    %4590 = vmatprep.subr.mxu0 0.0
    %4591 = vmatpush1.msra.mxu0 0.0
    %4592 = vmatprep.subr.mxu0 0.0
    %4593 = vmatpush1.msra.mxu0 0.0
    %4594 = vmatprep.subr.mxu0 0.0
    %4595 = vmatpush1.msra.mxu0 0.0
    %4596 = vmatprep.subr.mxu0 0.0
    %4597 = vmatpush1.msra.mxu0 0.0
    %4598 = vmatprep.subr.mxu0 0.0
    %4599 = vmatpush1.msra.mxu0 0.0
    %4600 = vmatprep.subr.mxu0 0.0
    %4601 = vmatpush1.msra.mxu0 0.0
    %4602 = vmatprep.subr.mxu0 0.0
    %4603 = vmatpush1.msra.mxu0 0.0
    %4604 = vmatprep.subr.mxu0 0.0
    %4605 = vmatpush1.msra.mxu0 0.0
    %4606 = vmatprep.subr.mxu0 0.0
    %4607 = vmatpush1.msra.mxu0 0.0
    %4608 = vmatprep.subr.mxu0 0.0
    %4609 = vmatpush1.msra.mxu0 0.0
    %4610 = vmatprep.subr.mxu0 0.0
    %4611 = vmatpush1.msra.mxu0 0.0
    %4612 = vmatprep.subr.mxu0 0.0
    %4613 = vmatpush1.msra.mxu0 0.0
    %4614 = vmatprep.subr.mxu0 0.0
    %4615 = vmatpush1.msra.mxu0 0.0
    %4616 = vmatprep.subr.mxu0 0.0
    %4617 = vmatpush1.msra.mxu0 0.0
    %4618 = vmatprep.subr.mxu0 0.0
    %4619 = vmatpush1.msra.mxu0 0.0
    %4620 = vmatprep.subr.mxu0 0.0
    %4621 = vmatpush1.msra.mxu0 0.0
    %4622 = vmatprep.subr.mxu0 0.0
    %4623 = vmatpush1.msra.mxu0 0.0
    %4624 = vmatprep.mubr.f32.mxu0 0.0
    %4625 = vmatmul.mubr.f32.gmra.mrb[0].mxu0 %v4555
    %v4626 = vpop.f32.mrb[0].mxu0
    %v4627 = vadd.f32 0.0, %v4626
    %v4628 = vpop.f32.mrb[0].mxu0
    %4629 = vmatprep.mubr.f32.mxu0 0.0
    %4630 = vmatmul.mubr.f32.gmra.mrb[0].mxu0 %v4558
    %v4631 = vpop.f32.mrb[0].mxu0
    %v4632 = vadd.f32 0.0, %v4631
    %v4633 = vpop.f32.mrb[0].mxu0
    %4634 = vdwg.mxu0
    %4637 = vrot.lane.b32.xlu0 %v4219, 8
    %v4638 = vpop.permute.xlu0 %4637
    %4639 = vrot.lane.b32.xlu0 %v4224, 8
    %v4640 = vpop.permute.xlu0 %4639
    %4645 = vrot.lane.b32.xlu0 %v4423, 16
    %v4646 = vpop.permute.xlu0 %4645
    %4647 = vrot.lane.b32.xlu0 %v4428, 16
    %v4648 = vpop.permute.xlu0 %4647
    %4653 = vrot.lane.b32.xlu0 %v4627, 24
    %v4654 = vpop.permute.xlu0 %4653
    %4655 = vrot.lane.b32.xlu0 %v4632, 24
    %v4656 = vpop.permute.xlu0 %4655
    %v4659 = vsel %vm43, %v4015, %v4638
    %v4660 = vsel %vm43, %v4020, %v4640
    %v4661 = vsel %vm314, %v4659, %v4646
    %v4662 = vsel %vm314, %v4660, %v4648
    %v4663 = vsel %vm1064, %v4661, %v4654
    %v4664 = vsel %vm1064, %v4662, %v4656
    %v4665 = vlaneseq
    %v4666 = vshrl.u32 %v4665, 7
    %v4667 = vsub.s32 0, %v4666
    %v4668 = vrot.slane %v3822, %v4667
    %v4670 = vsel %vm134, %v4663, 0
    %v4673 = vsel %vm134, %v4664, 0
    %4675 = vmatprep.subr.mxu0 0.0
    %4676 = vmatpush1.msra.mxu0 %v3818
    %4677 = vmatprep.subr.mxu0 0.0
    %4678 = vmatpush1.msra.mxu0 %v3819
    %4679 = vmatprep.subr.mxu0 0.0
    %4680 = vmatpush1.msra.mxu0 %v3820
    %4681 = vmatprep.subr.mxu0 0.0
    %4682 = vmatpush1.msra.mxu0 %v3821
    %4683 = vmatprep.subr.mxu0 0.0
    %4684 = vmatpush1.msra.mxu0 0.0
    %4685 = vmatprep.subr.mxu0 0.0
    %4686 = vmatpush1.msra.mxu0 0.0
    %4687 = vmatprep.subr.mxu0 0.0
    %4688 = vmatpush1.msra.mxu0 0.0
    %4689 = vmatprep.subr.mxu0 0.0
    %4690 = vmatpush1.msra.mxu0 0.0
    %4691 = vmatprep.subr.mxu0 0.0
    %4692 = vmatpush1.msra.mxu0 0.0
    %4693 = vmatprep.subr.mxu0 0.0
    %4694 = vmatpush1.msra.mxu0 0.0
    %4695 = vmatprep.subr.mxu0 0.0
    %4696 = vmatpush1.msra.mxu0 0.0
    %4697 = vmatprep.subr.mxu0 0.0
    %4698 = vmatpush1.msra.mxu0 0.0
    %4699 = vmatprep.subr.mxu0 0.0
    %4700 = vmatpush1.msra.mxu0 0.0
    %4701 = vmatprep.subr.mxu0 0.0
    %4702 = vmatpush1.msra.mxu0 0.0
    %4703 = vmatprep.subr.mxu0 0.0
    %4704 = vmatpush1.msra.mxu0 0.0
    %4705 = vmatprep.subr.mxu0 0.0
    %4706 = vmatpush1.msra.mxu0 0.0
    %4707 = vmatprep.subr.mxu0 0.0
    %4708 = vmatpush1.msra.mxu0 0.0
    %4709 = vmatprep.subr.mxu0 0.0
    %4710 = vmatpush1.msra.mxu0 0.0
    %4711 = vmatprep.subr.mxu0 0.0
    %4712 = vmatpush1.msra.mxu0 0.0
    %4713 = vmatprep.subr.mxu0 0.0
    %4714 = vmatpush1.msra.mxu0 0.0
    %4715 = vmatprep.subr.mxu0 0.0
    %4716 = vmatpush1.msra.mxu0 0.0
    %4717 = vmatprep.subr.mxu0 0.0
    %4718 = vmatpush1.msra.mxu0 0.0
    %4719 = vmatprep.subr.mxu0 0.0
    %4720 = vmatpush1.msra.mxu0 0.0
    %4721 = vmatprep.subr.mxu0 0.0
    %4722 = vmatpush1.msra.mxu0 0.0
    %4723 = vmatprep.subr.mxu0 0.0
    %4724 = vmatpush1.msra.mxu0 0.0
    %4725 = vmatprep.subr.mxu0 0.0
    %4726 = vmatpush1.msra.mxu0 0.0
    %4727 = vmatprep.subr.mxu0 0.0
    %4728 = vmatpush1.msra.mxu0 0.0
    %4729 = vmatprep.subr.mxu0 0.0
    %4730 = vmatpush1.msra.mxu0 0.0
    %4731 = vmatprep.subr.mxu0 0.0
    %4732 = vmatpush1.msra.mxu0 0.0
    %4733 = vmatprep.subr.mxu0 0.0
    %4734 = vmatpush1.msra.mxu0 0.0
    %4735 = vmatprep.subr.mxu0 0.0
    %4736 = vmatpush1.msra.mxu0 0.0
    %4737 = vmatprep.subr.mxu0 0.0
    %4738 = vmatpush1.msra.mxu0 0.0
    %4739 = vmatprep.mubr.f32.mxu0 0.0
    %4740 = vmatmul.mubr.f32.gmra.mrb[0].mxu0 %v4670
    %v4741 = vpop.f32.mrb[0].mxu0
    %v4742 = vadd.f32 %v4668, %v4741
    %v4743 = vpop.f32.mrb[0].mxu0
    %4744 = vmatprep.mubr.f32.mxu0 0.0
    %4745 = vmatmul.mubr.f32.gmra.mrb[0].mxu0 %v4673
    %v4746 = vpop.f32.mrb[0].mxu0
    %v4747 = vadd.f32 %v4668, %v4746
    %v4748 = vpop.f32.mrb[0].mxu0
    %4749 = vdwg.mxu0
    %v4750 = vadd.f32 %v3642, %v4742
    %v4751 = vadd.f32 %v3643, %v4747
    %v4752 = vld [vmem:[#allocation2 + $0x2c0] sm:$0x1]
    %v4753 = vld [vmem:[#allocation2 + $0x2c8] sm:$0x1]
    %v4754 = vsel %vm134, %v4750, 0.0
    %4755 = vadd.xlane.f32.xlu0 %v4754
    %v4756 = vpop.xlane.xlu0 %4755
    %v4757 = vsel %vm134, %v4751, 0.0
    %4758 = vadd.xlane.f32.xlu0 %v4757
    %v4759 = vpop.xlane.xlu0 %4758
    %v4760 = vmul.f32 %v4756, %v1162
    %v4761 = vmul.f32 %v4759, %v1162
    %v4762 = vsub.f32 %v4750, %v4760
    %v4763 = vsub.f32 %v4751, %v4761
    %v4764 = vmul.f32 %v4762, %v4762
    %v4765 = vmul.f32 %v4763, %v4763
    %v4766 = vsel %vm134, %v4764, 0.0
    %4767 = vadd.xlane.f32.xlu0 %v4766
    %v4768 = vpop.xlane.xlu0 %4767
    %v4769 = vsel %vm134, %v4765, 0.0
    %4770 = vadd.xlane.f32.xlu0 %v4769
    %v4771 = vpop.xlane.xlu0 %4770
    %v4772 = vmul.f32 %v4768, %v1162
    %v4773 = vmul.f32 %v4771, %v1162
    %v4774 = vadd.f32 %v4772, 1e-05
    %v4775 = vadd.f32 %v4773, 1e-05
    %v4776 = vrsqrt.pop %v4774
    %v4777 = vrsqrt.pop %v4775
    %v4778 = vmul.f32 %v4762, %v4776
    %v4779 = vmul.f32 %v4763, %v4777
    %v4780 = vlaneseq
    %v4781 = vshrl.u32 %v4780, 7
    %v4782 = vsub.s32 0, %v4781
    %v4783 = vrot.slane %v4752, %v4782
    %v4784 = vmul.f32 %v4778, %v4783
    %v4785 = vmul.f32 %v4779, %v4783
    %v4786 = vlaneseq
    %v4787 = vshrl.u32 %v4786, 7
    %v4788 = vsub.s32 0, %v4787
    %v4789 = vrot.slane %v4753, %v4788
    %v4790 = vadd.f32 %v4784, %v4789
    %v4791 = vadd.f32 %v4785, %v4789
    %v4792 = vld [vmem:[#allocation2 + $0x240] sm:$0xff]
    %v4793 = vld [vmem:[#allocation2 + $0x248] sm:$0xff]
    %v4794 = vld [vmem:[#allocation2 + $0x250] sm:$0xff]
    %v4795 = vld [vmem:[#allocation2 + $0x258] sm:$0xff]
    %v4796 = vld [vmem:[#allocation2 + $0x260] sm:$0x1]
    %v4797 = vlaneseq
    %v4798 = vshrl.u32 %v4797, 7
    %v4799 = vsub.s32 0, %v4798
    %v4800 = vrot.slane %v4796, %v4799
    %v4802 = vsel %vm134, %v4790, 0
    %v4805 = vsel %vm134, %v4791, 0
    %4807 = vmatprep.subr.mxu0 0.0
    %4808 = vmatpush1.msra.mxu0 %v4792
    %4809 = vmatprep.subr.mxu0 0.0
    %4810 = vmatpush1.msra.mxu0 %v4793
    %4811 = vmatprep.subr.mxu0 0.0
    %4812 = vmatpush1.msra.mxu0 %v4794
    %4813 = vmatprep.subr.mxu0 0.0
    %4814 = vmatpush1.msra.mxu0 %v4795
    %4815 = vmatprep.subr.mxu0 0.0
    %4816 = vmatpush1.msra.mxu0 0.0
    %4817 = vmatprep.subr.mxu0 0.0
    %4818 = vmatpush1.msra.mxu0 0.0
    %4819 = vmatprep.subr.mxu0 0.0
    %4820 = vmatpush1.msra.mxu0 0.0
    %4821 = vmatprep.subr.mxu0 0.0
    %4822 = vmatpush1.msra.mxu0 0.0
    %4823 = vmatprep.subr.mxu0 0.0
    %4824 = vmatpush1.msra.mxu0 0.0
    %4825 = vmatprep.subr.mxu0 0.0
    %4826 = vmatpush1.msra.mxu0 0.0
    %4827 = vmatprep.subr.mxu0 0.0
    %4828 = vmatpush1.msra.mxu0 0.0
    %4829 = vmatprep.subr.mxu0 0.0
    %4830 = vmatpush1.msra.mxu0 0.0
    %4831 = vmatprep.subr.mxu0 0.0
    %4832 = vmatpush1.msra.mxu0 0.0
    %4833 = vmatprep.subr.mxu0 0.0
    %4834 = vmatpush1.msra.mxu0 0.0
    %4835 = vmatprep.subr.mxu0 0.0
    %4836 = vmatpush1.msra.mxu0 0.0
    %4837 = vmatprep.subr.mxu0 0.0
    %4838 = vmatpush1.msra.mxu0 0.0
    %4839 = vmatprep.subr.mxu0 0.0
    %4840 = vmatpush1.msra.mxu0 0.0
    %4841 = vmatprep.subr.mxu0 0.0
    %4842 = vmatpush1.msra.mxu0 0.0
    %4843 = vmatprep.subr.mxu0 0.0
    %4844 = vmatpush1.msra.mxu0 0.0
    %4845 = vmatprep.subr.mxu0 0.0
    %4846 = vmatpush1.msra.mxu0 0.0
    %4847 = vmatprep.subr.mxu0 0.0
    %4848 = vmatpush1.msra.mxu0 0.0
    %4849 = vmatprep.subr.mxu0 0.0
    %4850 = vmatpush1.msra.mxu0 0.0
    %4851 = vmatprep.subr.mxu0 0.0
    %4852 = vmatpush1.msra.mxu0 0.0
    %4853 = vmatprep.subr.mxu0 0.0
    %4854 = vmatpush1.msra.mxu0 0.0
    %4855 = vmatprep.subr.mxu0 0.0
    %4856 = vmatpush1.msra.mxu0 0.0
    %4857 = vmatprep.subr.mxu0 0.0
    %4858 = vmatpush1.msra.mxu0 0.0
    %4859 = vmatprep.subr.mxu0 0.0
    %4860 = vmatpush1.msra.mxu0 0.0
    %4861 = vmatprep.subr.mxu0 0.0
    %4862 = vmatpush1.msra.mxu0 0.0
    %4863 = vmatprep.subr.mxu0 0.0
    %4864 = vmatpush1.msra.mxu0 0.0
    %4865 = vmatprep.subr.mxu0 0.0
    %4866 = vmatpush1.msra.mxu0 0.0
    %4867 = vmatprep.subr.mxu0 0.0
    %4868 = vmatpush1.msra.mxu0 0.0
    %4869 = vmatprep.subr.mxu0 0.0
    %4870 = vmatpush1.msra.mxu0 0.0
    %4871 = vmatprep.mubr.f32.mxu0 0.0
    %4872 = vmatmul.mubr.f32.gmra.mrb[0].mxu0 %v4802
    %v4873 = vpop.f32.mrb[0].mxu0
    %v4874 = vadd.f32 %v4800, %v4873
    %v4875 = vpop.f32.mrb[0].mxu0
    %4876 = vmatprep.mubr.f32.mxu0 0.0
    %4877 = vmatmul.mubr.f32.gmra.mrb[0].mxu0 %v4805
    %v4878 = vpop.f32.mrb[0].mxu0
    %v4879 = vadd.f32 %v4800, %v4878
    %v4880 = vpop.f32.mrb[0].mxu0
    %4881 = vdwg.mxu0
    %v4882 = vmax.f32 %v4874, 0.0
    %v4883 = vmax.f32 %v4879, 0.0
    %v4884 = vld [vmem:[#allocation2 + $0x268] sm:$0xff]
    %v4885 = vld [vmem:[#allocation2 + $0x270] sm:$0xff]
    %v4886 = vld [vmem:[#allocation2 + $0x278] sm:$0xff]
    %v4887 = vld [vmem:[#allocation2 + $0x280] sm:$0xff]
    %v4888 = vld [vmem:[#allocation2 + $0x288] sm:$0xff]
    %v4889 = vld [vmem:[#allocation2 + $0x290] sm:$0xff]
    %v4890 = vld [vmem:[#allocation2 + $0x298] sm:$0xff]
    %v4891 = vld [vmem:[#allocation2 + $0x2a0] sm:$0xff]
    %v4892 = vld [vmem:[#allocation2 + $0x2a8] sm:$0x1]
    %v4893 = vlaneseq
    %v4894 = vshrl.u32 %v4893, 7
    %v4895 = vsub.s32 0, %v4894
    %v4896 = vrot.slane %v4892, %v4895
    %v4898 = vsel %vm2454, %v4882, 0
    %v4901 = vsel %vm2454, %v4883, 0
    %4903 = vmatprep.subr.mxu0 0.0
    %4904 = vmatpush1.msra.mxu0 %v4884
    %4905 = vmatprep.subr.mxu0 0.0
    %4906 = vmatpush1.msra.mxu0 %v4885
    %4907 = vmatprep.subr.mxu0 0.0
    %4908 = vmatpush1.msra.mxu0 %v4886
    %4909 = vmatprep.subr.mxu0 0.0
    %4910 = vmatpush1.msra.mxu0 %v4887
    %4911 = vmatprep.subr.mxu0 0.0
    %4912 = vmatpush1.msra.mxu0 %v4888
    %4913 = vmatprep.subr.mxu0 0.0
    %4914 = vmatpush1.msra.mxu0 %v4889
    %4915 = vmatprep.subr.mxu0 0.0
    %4916 = vmatpush1.msra.mxu0 %v4890
    %4917 = vmatprep.subr.mxu0 0.0
    %4918 = vmatpush1.msra.mxu0 %v4891
    %4919 = vmatprep.subr.mxu0 0.0
    %4920 = vmatpush1.msra.mxu0 0.0
    %4921 = vmatprep.subr.mxu0 0.0
    %4922 = vmatpush1.msra.mxu0 0.0
    %4923 = vmatprep.subr.mxu0 0.0
    %4924 = vmatpush1.msra.mxu0 0.0
    %4925 = vmatprep.subr.mxu0 0.0
    %4926 = vmatpush1.msra.mxu0 0.0
    %4927 = vmatprep.subr.mxu0 0.0
    %4928 = vmatpush1.msra.mxu0 0.0
    %4929 = vmatprep.subr.mxu0 0.0
    %4930 = vmatpush1.msra.mxu0 0.0
    %4931 = vmatprep.subr.mxu0 0.0
    %4932 = vmatpush1.msra.mxu0 0.0
    %4933 = vmatprep.subr.mxu0 0.0
    %4934 = vmatpush1.msra.mxu0 0.0
    %4935 = vmatprep.subr.mxu0 0.0
    %4936 = vmatpush1.msra.mxu0 0.0
    %4937 = vmatprep.subr.mxu0 0.0
    %4938 = vmatpush1.msra.mxu0 0.0
    %4939 = vmatprep.subr.mxu0 0.0
    %4940 = vmatpush1.msra.mxu0 0.0
    %4941 = vmatprep.subr.mxu0 0.0
    %4942 = vmatpush1.msra.mxu0 0.0
    %4943 = vmatprep.subr.mxu0 0.0
    %4944 = vmatpush1.msra.mxu0 0.0
    %4945 = vmatprep.subr.mxu0 0.0
    %4946 = vmatpush1.msra.mxu0 0.0
    %4947 = vmatprep.subr.mxu0 0.0
    %4948 = vmatpush1.msra.mxu0 0.0
    %4949 = vmatprep.subr.mxu0 0.0
    %4950 = vmatpush1.msra.mxu0 0.0
    %4951 = vmatprep.subr.mxu0 0.0
    %4952 = vmatpush1.msra.mxu0 0.0
    %4953 = vmatprep.subr.mxu0 0.0
    %4954 = vmatpush1.msra.mxu0 0.0
    %4955 = vmatprep.subr.mxu0 0.0
    %4956 = vmatpush1.msra.mxu0 0.0
    %4957 = vmatprep.subr.mxu0 0.0
    %4958 = vmatpush1.msra.mxu0 0.0
    %4959 = vmatprep.subr.mxu0 0.0
    %4960 = vmatpush1.msra.mxu0 0.0
    %4961 = vmatprep.subr.mxu0 0.0
    %4962 = vmatpush1.msra.mxu0 0.0
    %4963 = vmatprep.subr.mxu0 0.0
    %4964 = vmatpush1.msra.mxu0 0.0
    %4965 = vmatprep.subr.mxu0 0.0
    %4966 = vmatpush1.msra.mxu0 0.0
    %4967 = vmatprep.mubr.f32.mxu0 0.0
    %4968 = vmatmul.mubr.f32.gmra.mrb[0].mxu0 %v4898
    %v4969 = vpop.f32.mrb[0].mxu0
    %v4970 = vadd.f32 %v4896, %v4969
    %v4971 = vpop.f32.mrb[0].mxu0
    %4972 = vmatprep.mubr.f32.mxu0 0.0
    %4973 = vmatmul.mubr.f32.gmra.mrb[0].mxu0 %v4901
    %v4974 = vpop.f32.mrb[0].mxu0
    %v4975 = vadd.f32 %v4896, %v4974
    %v4976 = vpop.f32.mrb[0].mxu0
    %4977 = vdwg.mxu0
    %v4978 = vadd.f32 %v4790, %v4970
    %v4979 = vadd.f32 %v4791, %v4975
    %v4980 = vld [vmem:[#allocation2 + $0x2d0] sm:$0x1]
    %v4981 = vld [vmem:[#allocation2 + $0x2d8] sm:$0x1]
    %v4982 = vsel %vm134, %v4978, 0.0
    %4983 = vadd.xlane.f32.xlu0 %v4982
    %v4984 = vpop.xlane.xlu0 %4983
    %v4985 = vsel %vm134, %v4979, 0.0
    %4986 = vadd.xlane.f32.xlu0 %v4985
    %v4987 = vpop.xlane.xlu0 %4986
    %v4988 = vmul.f32 %v4984, %v1162
    %v4989 = vmul.f32 %v4987, %v1162
    %v4990 = vsub.f32 %v4978, %v4988
    %v4991 = vsub.f32 %v4979, %v4989
    %v4992 = vmul.f32 %v4990, %v4990
    %v4993 = vmul.f32 %v4991, %v4991
    %v4994 = vsel %vm134, %v4992, 0.0
    %4995 = vadd.xlane.f32.xlu0 %v4994
    %v4996 = vpop.xlane.xlu0 %4995
    %v4997 = vsel %vm134, %v4993, 0.0
    %4998 = vadd.xlane.f32.xlu0 %v4997
    %v4999 = vpop.xlane.xlu0 %4998
    %v5000 = vmul.f32 %v4996, %v1162
    %v5001 = vmul.f32 %v4999, %v1162
    %v5002 = vadd.f32 %v5000, 1e-05
    %v5003 = vadd.f32 %v5001, 1e-05
    %v5004 = vrsqrt.pop %v5002
    %v5005 = vrsqrt.pop %v5003
    %v5006 = vmul.f32 %v4990, %v5004
    %v5007 = vmul.f32 %v4991, %v5005
    %v5008 = vlaneseq
    %v5009 = vshrl.u32 %v5008, 7
    %v5010 = vsub.s32 0, %v5009
    %v5011 = vrot.slane %v4980, %v5010
    %v5012 = vmul.f32 %v5006, %v5011
    %v5013 = vmul.f32 %v5007, %v5011
    %v5014 = vlaneseq
    %v5015 = vshrl.u32 %v5014, 7
    %v5016 = vsub.s32 0, %v5015
    %v5017 = vrot.slane %v4981, %v5016
    %v5018 = vadd.f32 %v5012, %v5017
    %v5019 = vadd.f32 %v5013, %v5017
    %v5020 = vld [vmem:[#allocation2 + $0x2e0] sm:$0xff]
    %v5021 = vld [vmem:[#allocation2 + $0x2e8] sm:$0xff]
    %v5022 = vld [vmem:[#allocation2 + $0x2f0] sm:$0xff]
    %v5023 = vld [vmem:[#allocation2 + $0x2f8] sm:$0xff]
    %v5024 = vld [vmem:[#allocation2 + $0x300] sm:$0x1]
    %v5025 = vlaneseq
    %v5026 = vshrl.u32 %v5025, 7
    %v5027 = vsub.s32 0, %v5026
    %v5028 = vrot.slane %v5024, %v5027
    %v5030 = vsel %vm134, %v5018, 0
    %v5033 = vsel %vm134, %v5019, 0
    %5035 = vmatprep.subr.mxu0 0.0
    %5036 = vmatpush1.msra.mxu0 %v5020
    %5037 = vmatprep.subr.mxu0 0.0
    %5038 = vmatpush1.msra.mxu0 %v5021
    %5039 = vmatprep.subr.mxu0 0.0
    %5040 = vmatpush1.msra.mxu0 %v5022
    %5041 = vmatprep.subr.mxu0 0.0
    %5042 = vmatpush1.msra.mxu0 %v5023
    %5043 = vmatprep.subr.mxu0 0.0
    %5044 = vmatpush1.msra.mxu0 0.0
    %5045 = vmatprep.subr.mxu0 0.0
    %5046 = vmatpush1.msra.mxu0 0.0
    %5047 = vmatprep.subr.mxu0 0.0
    %5048 = vmatpush1.msra.mxu0 0.0
    %5049 = vmatprep.subr.mxu0 0.0
    %5050 = vmatpush1.msra.mxu0 0.0
    %5051 = vmatprep.subr.mxu0 0.0
    %5052 = vmatpush1.msra.mxu0 0.0
    %5053 = vmatprep.subr.mxu0 0.0
    %5054 = vmatpush1.msra.mxu0 0.0
    %5055 = vmatprep.subr.mxu0 0.0
    %5056 = vmatpush1.msra.mxu0 0.0
    %5057 = vmatprep.subr.mxu0 0.0
    %5058 = vmatpush1.msra.mxu0 0.0
    %5059 = vmatprep.subr.mxu0 0.0
    %5060 = vmatpush1.msra.mxu0 0.0
    %5061 = vmatprep.subr.mxu0 0.0
    %5062 = vmatpush1.msra.mxu0 0.0
    %5063 = vmatprep.subr.mxu0 0.0
    %5064 = vmatpush1.msra.mxu0 0.0
    %5065 = vmatprep.subr.mxu0 0.0
    %5066 = vmatpush1.msra.mxu0 0.0
    %5067 = vmatprep.subr.mxu0 0.0
    %5068 = vmatpush1.msra.mxu0 0.0
    %5069 = vmatprep.subr.mxu0 0.0
    %5070 = vmatpush1.msra.mxu0 0.0
    %5071 = vmatprep.subr.mxu0 0.0
    %5072 = vmatpush1.msra.mxu0 0.0
    %5073 = vmatprep.subr.mxu0 0.0
    %5074 = vmatpush1.msra.mxu0 0.0
    %5075 = vmatprep.subr.mxu0 0.0
    %5076 = vmatpush1.msra.mxu0 0.0
    %5077 = vmatprep.subr.mxu0 0.0
    %5078 = vmatpush1.msra.mxu0 0.0
    %5079 = vmatprep.subr.mxu0 0.0
    %5080 = vmatpush1.msra.mxu0 0.0
    %5081 = vmatprep.subr.mxu0 0.0
    %5082 = vmatpush1.msra.mxu0 0.0
    %5083 = vmatprep.subr.mxu0 0.0
    %5084 = vmatpush1.msra.mxu0 0.0
    %5085 = vmatprep.subr.mxu0 0.0
    %5086 = vmatpush1.msra.mxu0 0.0
    %5087 = vmatprep.subr.mxu0 0.0
    %5088 = vmatpush1.msra.mxu0 0.0
    %5089 = vmatprep.subr.mxu0 0.0
    %5090 = vmatpush1.msra.mxu0 0.0
    %5091 = vmatprep.subr.mxu0 0.0
    %5092 = vmatpush1.msra.mxu0 0.0
    %5093 = vmatprep.subr.mxu0 0.0
    %5094 = vmatpush1.msra.mxu0 0.0
    %5095 = vmatprep.subr.mxu0 0.0
    %5096 = vmatpush1.msra.mxu0 0.0
    %5097 = vmatprep.subr.mxu0 0.0
    %5098 = vmatpush1.msra.mxu0 0.0
    %5099 = vmatprep.mubr.f32.mxu0 0.0
    %5100 = vmatmul.mubr.f32.gmra.mrb[0].mxu0 %v5030
    %v5101 = vpop.f32.mrb[0].mxu0
    %v5102 = vadd.f32 %v5028, %v5101
    %v5103 = vpop.f32.mrb[0].mxu0
    %5104 = vmatprep.mubr.f32.mxu0 0.0
    %5105 = vmatmul.mubr.f32.gmra.mrb[0].mxu0 %v5033
    %v5106 = vpop.f32.mrb[0].mxu0
    %v5107 = vadd.f32 %v5028, %v5106
    %v5108 = vpop.f32.mrb[0].mxu0
    %5109 = vdwg.mxu0
    %v5110 = vmax.f32 %v5102, 0.0
    %v5111 = vmax.f32 %v5107, 0.0
    %v5112 = vld [vmem:[#allocation2 + $0x308] sm:$0xff]
    %v5113 = vld [vmem:[#allocation2 + $0x310] sm:$0xff]
    %v5114 = vld [vmem:[#allocation2 + $0x318] sm:$0xff]
    %v5115 = vld [vmem:[#allocation2 + $0x320] sm:$0xff]
    %v5116 = vld [vmem:[#allocation2 + $0x328] sm:$0xff]
    %v5117 = vld [vmem:[#allocation2 + $0x330] sm:$0xff]
    %v5118 = vld [vmem:[#allocation2 + $0x338] sm:$0xff]
    %v5119 = vld [vmem:[#allocation2 + $0x340] sm:$0xff]
    %v5120 = vld [vmem:[#allocation2 + $0x348] sm:$0x1]
    %v5121 = vlaneseq
    %v5122 = vshrl.u32 %v5121, 7
    %v5123 = vsub.s32 0, %v5122
    %v5124 = vrot.slane %v5120, %v5123
    %v5126 = vsel %vm2454, %v5110, 0
    %v5129 = vsel %vm2454, %v5111, 0
    %5131 = vmatprep.subr.mxu0 0.0
    %5132 = vmatpush1.msra.mxu0 %v5112
    %5133 = vmatprep.subr.mxu0 0.0
    %5134 = vmatpush1.msra.mxu0 %v5113
    %5135 = vmatprep.subr.mxu0 0.0
    %5136 = vmatpush1.msra.mxu0 %v5114
    %5137 = vmatprep.subr.mxu0 0.0
    %5138 = vmatpush1.msra.mxu0 %v5115
    %5139 = vmatprep.subr.mxu0 0.0
    %5140 = vmatpush1.msra.mxu0 %v5116
    %5141 = vmatprep.subr.mxu0 0.0
    %5142 = vmatpush1.msra.mxu0 %v5117
    %5143 = vmatprep.subr.mxu0 0.0
    %5144 = vmatpush1.msra.mxu0 %v5118
    %5145 = vmatprep.subr.mxu0 0.0
    %5146 = vmatpush1.msra.mxu0 %v5119
    %5147 = vmatprep.subr.mxu0 0.0
    %5148 = vmatpush1.msra.mxu0 0.0
    %5149 = vmatprep.subr.mxu0 0.0
    %5150 = vmatpush1.msra.mxu0 0.0
    %5151 = vmatprep.subr.mxu0 0.0
    %5152 = vmatpush1.msra.mxu0 0.0
    %5153 = vmatprep.subr.mxu0 0.0
    %5154 = vmatpush1.msra.mxu0 0.0
    %5155 = vmatprep.subr.mxu0 0.0
    %5156 = vmatpush1.msra.mxu0 0.0
    %5157 = vmatprep.subr.mxu0 0.0
    %5158 = vmatpush1.msra.mxu0 0.0
    %5159 = vmatprep.subr.mxu0 0.0
    %5160 = vmatpush1.msra.mxu0 0.0
    %5161 = vmatprep.subr.mxu0 0.0
    %5162 = vmatpush1.msra.mxu0 0.0
    %5163 = vmatprep.subr.mxu0 0.0
    %5164 = vmatpush1.msra.mxu0 0.0
    %5165 = vmatprep.subr.mxu0 0.0
    %5166 = vmatpush1.msra.mxu0 0.0
    %5167 = vmatprep.subr.mxu0 0.0
    %5168 = vmatpush1.msra.mxu0 0.0
    %5169 = vmatprep.subr.mxu0 0.0
    %5170 = vmatpush1.msra.mxu0 0.0
    %5171 = vmatprep.subr.mxu0 0.0
    %5172 = vmatpush1.msra.mxu0 0.0
    %5173 = vmatprep.subr.mxu0 0.0
    %5174 = vmatpush1.msra.mxu0 0.0
    %5175 = vmatprep.subr.mxu0 0.0
    %5176 = vmatpush1.msra.mxu0 0.0
    %5177 = vmatprep.subr.mxu0 0.0
    %5178 = vmatpush1.msra.mxu0 0.0
    %5179 = vmatprep.subr.mxu0 0.0
    %5180 = vmatpush1.msra.mxu0 0.0
    %5181 = vmatprep.subr.mxu0 0.0
    %5182 = vmatpush1.msra.mxu0 0.0
    %5183 = vmatprep.subr.mxu0 0.0
    %5184 = vmatpush1.msra.mxu0 0.0
    %5185 = vmatprep.subr.mxu0 0.0
    %5186 = vmatpush1.msra.mxu0 0.0
    %5187 = vmatprep.subr.mxu0 0.0
    %5188 = vmatpush1.msra.mxu0 0.0
    %5189 = vmatprep.subr.mxu0 0.0
    %5190 = vmatpush1.msra.mxu0 0.0
    %5191 = vmatprep.subr.mxu0 0.0
    %5192 = vmatpush1.msra.mxu0 0.0
    %5193 = vmatprep.subr.mxu0 0.0
    %5194 = vmatpush1.msra.mxu0 0.0
    %5195 = vmatprep.mubr.f32.mxu0 0.0
    %5196 = vmatmul.mubr.f32.gmra.mrb[0].mxu0 %v5126
    %v5197 = vpop.f32.mrb[0].mxu0
    %v5198 = vadd.f32 %v5124, %v5197
    %v5199 = vpop.f32.mrb[0].mxu0
    %5200 = vmatprep.mubr.f32.mxu0 0.0
    %5201 = vmatmul.mubr.f32.gmra.mrb[0].mxu0 %v5129
    %v5202 = vpop.f32.mrb[0].mxu0
    %v5203 = vadd.f32 %v5124, %v5202
    %v5204 = vpop.f32.mrb[0].mxu0
    %5205 = vdwg.mxu0
    %5206 = vst.msk [vmem:[#allocation5] sm:$0xff] %vm314, %v5198
    %5207 = vst.msk [vmem:[#allocation5 + $0x8] sm:$0xff] %vm314, %v5203
    // Predicated region
    $region18: #{tpu_custom_call.1} parent=1 // pred_check
      _
    $region19: #{tpu_custom_call.1} parent=1 // pred_check_branch
      %5209 = sbr.rel (0) target = $region21
    $region20: #{tpu_custom_call.1} parent=1 // pred_region
      %s5211 = ssub.s32 256, 256
      %5212 = vsyncadd [#allocation4], %s5211
      %s5213 = sshll.u32 [#allocation5], 4
      %s5214 = int_to_ptr.vmem [resolvable:$true] %s5213
      %5219 = dma.vmem_to_hbm [thread:$0]  %s5214, 256, %s3, [#allocation4], 128, 128, 8
    $region21: #{tpu_custom_call.1} parent=1 // pred_fallthru
      _
    // Predicated region
    $region22: #{tpu_custom_call.1} parent=1 // pred_check
      _
    $region23: #{tpu_custom_call.1} parent=1 // pred_check_branch
      %5221 = sbr.rel (0) target = $region25
    $region24: #{tpu_custom_call.1} parent=1 // pred_region
      %5222 = dma.done [#allocation4], 256
    $region25: #{tpu_custom_call.1} parent=1 // pred_fallthru
      _
    %5223 = vsyncpa [#allocation3], 1
    %5224 = vsyncpa [#allocation4], 1

</llo_original>
